<compile_context>
chip_gen: v7x
topology: tpu7x:2x2x1
jax: 0.10.0
libtpu: 0.0.40
codegen_flags: <defaults>
</compile_context>

<pallas_src>
import functools
import math

import jax
import jax.numpy as jnp
from jax import lax
from jax.experimental import pallas as pl
from jax.experimental.pallas import tpu as pltpu


def _conv_kernel(x_ref, w_ref, s_ref, b_ref, o_ref, *,
                 KH, KW, sh, sw, dh, dw, toh, OW, apply_relu):
    """Direct conv for one (image n, Cout tile, output-row tile) grid cell.

    x_ref : (1, Hp, Wp, Cin)   bf16  whole padded NHWC image (resident across c/r steps)
    w_ref : (KH*KW, Cin, tn)   bf16  weight taps for this Cout tile
    s_ref : (1, tn)            f32   fused scale  (BN gamma / sqrt(var+eps), or 1)
    b_ref : (1, tn)            f32   fused shift  (BN beta / conv-bias fold)
    o_ref : (toh*OW, tn)       out   lane-dense output slab tile
    """
    r = pl.program_id(2)
    row0 = r * (toh * sh)
    Cin = x_ref.shape[-1]
    tn = o_ref.shape[-1]

    acc = jnp.zeros((toh * OW, tn), jnp.float32)
    for i in range(KH):                       # small static tap loops -> fully unrolled
        for j in range(KW):
            rows = (pl.ds(row0 + i * dh, toh) if sh == 1
                    else pl.ds(row0 + i * dh, toh, sh))
            cols = (pl.ds(j * dw, OW) if sw == 1
                    else pl.ds(j * dw, OW, sw))
            xs = x_ref[0, rows, cols, :]                          # (toh, OW, Cin) bf16
            acc = acc + jnp.dot(xs.reshape(toh * OW, Cin),
                                w_ref[i * KW + j],
                                preferred_element_type=jnp.float32)

    y = acc * s_ref[...] + b_ref[...]        # fused conv-bias / eval-mode BN epilogue
    if apply_relu:
        y = jnp.maximum(y, 0.0)
    o_ref[...] = y.astype(o_ref.dtype)


def conv_module_forward(
    x,                      # (N, Cin, H, W)
    weight,                 # (Cout, Cin, KH, KW)
    bias=None,              # (Cout,) or None
    *,
    stride=(1, 1),
    padding=(1, 1),
    dilation=(1, 1),
    bn=None,                # None or (gamma, beta, running_mean, running_var, eps) -- eval BN
    activation="relu",      # "relu" or None
    weight_standardize=False,   # ConvWS2d variant
    ws_eps=1e-5,
    block_rows=256,         # target output pixels (M) per grid step
    block_cout=256,         # target Cout tile (rounded to multiples of 128)
    mxu_dtype=jnp.bfloat16, # dtype fed to the MXU (accumulation stays f32)
    out_layout="NCHW",      # "NCHW" (PyTorch semantics) or "NHWC" (skip final transpose)
):
    """ConvModule.forward (groups=1) as a direct-conv Pallas MXU kernel."""
    N, Cin, H, W = x.shape
    Cout, Cin_w, KH, KW = weight.shape
    assert Cin_w == Cin, "groups > 1 not supported"  # TODO(synk): grouped convolution
    sh, sw = stride
    ph, pw = padding
    dh, dw = dilation

    weight = weight.astype(jnp.float32)
    if weight_standardize:  # ConvWS2d: standardize weight over (Cin, KH, KW) per out-channel
        wf = weight.reshape(Cout, -1)
        mean = wf.mean(axis=1, keepdims=True)
        std = jnp.std(wf, axis=1, ddof=1, keepdims=True)
        weight = ((wf - mean) / (std + ws_eps)).reshape(weight.shape)

    OH = (H + 2 * ph - dh * (KH - 1) - 1) // sh + 1
    OW = (W + 2 * pw - dw * (KW - 1) - 1) // sw + 1
    Hp, Wp = H + 2 * ph, W + 2 * pw

    # NHWC + spatial zero-pad + single bf16 cast: one read+write of the activation
    # (the old wrapper materialized a KH*KW x larger im2col tensor through HBM).
    xp = jnp.pad(x.transpose(0, 2, 3, 1),
                 ((0, 0), (ph, ph), (pw, pw), (0, 0))).astype(mxu_dtype)

    # Lane-dense output channels: pad Cout up to a multiple of 128.
    Coutp = ((Cout + 127) // 128) * 128
    # weight (Cout, Cin, KH, KW) -> (KH*KW, Cin, Coutp) taps
    wk = weight.transpose(2, 3, 1, 0).reshape(KH * KW, Cin, Cout)
    wk = jnp.pad(wk, ((0, 0), (0, 0), (0, Coutp - Cout))).astype(mxu_dtype)

    # Fold conv bias and (eval-mode) BatchNorm into per-channel scale/shift.
    conv_b = jnp.zeros((Cout,), jnp.float32) if bias is None else bias.astype(jnp.float32)
    if bn is None:
        scale = jnp.ones((Cout,), jnp.float32)
        shift = conv_b
    else:
        gamma, beta, rmean, rvar, eps = bn
        scale = gamma.astype(jnp.float32) / jnp.sqrt(rvar.astype(jnp.float32) + eps)
        shift = beta.astype(jnp.float32) + (conv_b - rmean.astype(jnp.float32)) * scale
    scale = jnp.pad(scale, (0, Coutp - Cout)).reshape(1, Coutp)
    shift = jnp.pad(shift, (0, Coutp - Cout)).reshape(1, Coutp)

    # Output-row tile: ~block_rows output pixels per grid step; must divide OH so the
    # in-kernel shifted slices never leave the padded image.
    toh_target = max(1, min(OH, block_rows // max(OW, 1)))
    toh = 1
    for t in range(toh_target, 0, -1):
        if OH % t == 0:
            toh = t
            break
    R = OH // toh

    # Cout tile: a multiple of 128 that divides Coutp (keeps all blocks lane-aligned).
    tn = block_cout if (block_cout % 128 == 0 and Coutp % block_cout == 0) else 128
    tn = min(tn, Coutp)
    C = Coutp // tn

    out_dtype = x.dtype
    M = N * OH * OW

    itemsize = lambda dt: jnp.dtype(dt).itemsize
    blk_bytes = (math.prod((1, Hp, Wp, Cin)) * itemsize(mxu_dtype)
                 + math.prod((KH * KW, Cin, tn)) * itemsize(mxu_dtype)
                 + 2 * tn * 4
                 + (toh * OW) * tn * itemsize(out_dtype))
    vmem_limit = int(min(max(2 * blk_bytes + (2 << 20), 16 << 20), 100 << 20))

    flops = 2 * N * OH * OW * KH * KW * Cin * Coutp
    bytes_accessed = int(xp.size * itemsize(mxu_dtype) + wk.size * itemsize(mxu_dtype)
                         + 2 * Coutp * 4 + M * Coutp * itemsize(out_dtype))

    kernel = functools.partial(
        _conv_kernel, KH=KH, KW=KW, sh=sh, sw=sw, dh=dh, dw=dw,
        toh=toh, OW=OW, apply_relu=(activation == "relu"))

    # TODO(synk): weight/scale/shift have constant index_maps and could use
    # pipeline_mode=pl.Buffered(1) (single resident buffer); left default for portability.
    # TODO(synk): for very large feature maps the full-image input block should become a
    # halo-tiled H window (pl.Element / manual DMA) so input VMEM is bounded by the tile.
    out2d = pl.pallas_call(
        kernel,
        out_shape=jax.ShapeDtypeStruct((M, Coutp), out_dtype),
        grid_spec=pltpu.PrefetchScalarGridSpec(
            num_scalar_prefetch=0,
            grid=(N, C, R),                   # r innermost: image + weight tile stay resident
            in_specs=[
                pl.BlockSpec((1, Hp, Wp, Cin), lambda n, c, r: (n, 0, 0, 0)),
                pl.BlockSpec((KH * KW, Cin, tn), lambda n, c, r: (0, 0, c)),
                pl.BlockSpec((1, tn), lambda n, c, r: (0, c)),
                pl.BlockSpec((1, tn), lambda n, c, r: (0, c)),
            ],
            out_specs=pl.BlockSpec((toh * OW, tn), lambda n, c, r: (n * R + r, c)),
        ),
        compiler_params=pltpu.CompilerParams(
            dimension_semantics=("parallel", "parallel", "parallel"),
            vmem_limit_bytes=vmem_limit,
        ),
        cost_estimate=pl.CostEstimate(flops=flops, transcendentals=0,
                                      bytes_accessed=bytes_accessed),
    )(xp, wk, scale, shift)

    out = out2d.reshape(N, OH, OW, Coutp)[..., :Cout]
    if out_layout == "NHWC":
        return out                            # lets the consumer fuse/skip the transpose
    return out.transpose(0, 3, 1, 2)          # NCHW, matching the PyTorch module


if __name__ == "__main__":
    key = jax.random.PRNGKey(0)
    kx, kw, kb, kg, kbt, km, kv = jax.random.split(key, 7)

    N, Cin, H, W = 2, 4, 16, 16
    Cout, KH, KW = 8, 3, 3
    x = jax.random.normal(kx, (N, Cin, H, W), jnp.float32)
    w = jax.random.normal(kw, (Cout, Cin, KH, KW), jnp.float32) * 0.1
    b = jax.random.normal(kb, (Cout,), jnp.float32) * 0.1

    dn = ("NCHW", "OIHW", "NCHW")
    # References use the same bf16-rounded operands that the kernel feeds the MXU.
    xr = x.astype(jnp.bfloat16).astype(jnp.float32)
    wr = w.astype(jnp.bfloat16).astype(jnp.float32)

    # ---- Config 1: default ConvModule (no norm) = conv(+bias) -> relu ----
    y1 = conv_module_forward(x, w, b, stride=(1, 1), padding=(1, 1))
    jax.block_until_ready(y1)
    ref1 = lax.conv_general_dilated(xr, wr, (1, 1), [(1, 1), (1, 1)], dimension_numbers=dn)
    ref1 = jnp.maximum(ref1 + b.reshape(1, Cout, 1, 1), 0.0)
    assert y1.shape == (N, Cout, H, W) and y1.dtype == x.dtype
    assert bool(jnp.allclose(y1, ref1, rtol=5e-3, atol=5e-3))

    # ---- Config 2: ConvModule(norm_cfg=BN) in eval mode = conv(no bias) -> BN -> relu ----
    # TODO(synk): training-mode BatchNorm (batch statistics) is not fused; eval-mode running
    # stats are folded into the epilogue scale/shift instead.
    gamma = 1.0 + 0.1 * jax.random.normal(kg, (Cout,), jnp.float32)
    beta = 0.1 * jax.random.normal(kbt, (Cout,), jnp.float32)
    rmean = 0.1 * jax.random.normal(km, (Cout,), jnp.float32)
    rvar = jnp.abs(jax.random.normal(kv, (Cout,), jnp.float32)) + 0.5
    eps = 1e-5
    y2 = conv_module_forward(x, w, None, stride=(1, 1), padding=(1, 1),
                             bn=(gamma, beta, rmean, rvar, eps))
    jax.block_until_ready(y2)
    conv2 = lax.conv_general_dilated(xr, wr, (1, 1), [(1, 1), (1, 1)], dimension_numbers=dn)
    ref2 = (conv2 - rmean.reshape(1, Cout, 1, 1)) / jnp.sqrt(rvar.reshape(1, Cout, 1, 1) + eps)
    ref2 = jnp.maximum(ref2 * gamma.reshape(1, Cout, 1, 1) + beta.reshape(1, Cout, 1, 1), 0.0)
    assert bool(jnp.allclose(y2, ref2, rtol=5e-3, atol=5e-3))

    print("KERNEL_OK")
</pallas_src>

<mosaic_0001>
module attributes {stable_mosaic.version = 11 : i64} {
  func.func @_conv_kernel(%arg0: i32, %arg1: i32, %arg2: i32, %arg3: memref<1x18x18x4xbf16, #tpu.memory_space<vmem>>, %arg4: memref<9x4x128xbf16, #tpu.memory_space<vmem>>, %arg5: memref<1x128xf32, #tpu.memory_space<vmem>>, %arg6: memref<1x128xf32, #tpu.memory_space<vmem>>, %arg7: memref<256x128xf32, #tpu.memory_space<vmem>>) attributes {dimension_semantics = [#tpu.dimension_semantics<parallel>, #tpu.dimension_semantics<parallel>, #tpu.dimension_semantics<parallel>], iteration_bounds = array<i64: 2, 1, 1>, scalar_prefetch = 0 : i64, scratch_operands = 0 : i64, tpu.core_type = #tpu.core_type<tc>, window_params = [{transform_indices = @transform_0, window_bounds = array<i64: 1, 18, 18, 4>}, {transform_indices = @transform_1, window_bounds = array<i64: 9, 4, 128>}, {transform_indices = @transform_2, window_bounds = array<i64: 1, 128>}, {transform_indices = @transform_3, window_bounds = array<i64: 1, 128>}, {transform_indices = @transform_4, window_bounds = array<i64: 256, 128>}]} {
    %c16_i32 = arith.constant 16 : i32
    %0 = arith.muli %arg2, %c16_i32 : i32
    %cst = arith.constant 0.000000e+00 : f32
    %1 = vector.broadcast %cst : f32 to vector<256x128xf32>
    %c0_i32 = arith.constant 0 : i32
    %2 = arith.addi %0, %c0_i32 : i32
    %c0 = arith.constant 0 : index
    %3 = arith.index_cast %2 : i32 to index
    %c0_0 = arith.constant 0 : index
    %c0_1 = arith.constant 0 : index
    %4 = vector.load %arg3[%c0, %3, %c0_0, %c0_1] : memref<1x18x18x4xbf16, #tpu.memory_space<vmem>>, vector<1x16x16x4xbf16>
    %5 = vector.shape_cast %4 : vector<1x16x16x4xbf16> to vector<16x16x4xbf16>
    %6 = vector.shape_cast %5 : vector<16x16x4xbf16> to vector<256x4xbf16>
    %c0_2 = arith.constant 0 : index
    %c0_3 = arith.constant 0 : index
    %c0_4 = arith.constant 0 : index
    %7 = vector.load %arg4[%c0_2, %c0_3, %c0_4] : memref<9x4x128xbf16, #tpu.memory_space<vmem>>, vector<1x4x128xbf16>
    %8 = vector.shape_cast %7 : vector<1x4x128xbf16> to vector<4x128xbf16>
    %cst_5 = arith.constant dense<0.000000e+00> : vector<256x128xf32>
    %9 = tpu.matmul %6, %8, %cst_5 {dimension_numbers = #tpu.dot_dimension_numbers<[1], [0], [0], [1], [0, 0, 1, 1], [], []>} : vector<256x4xbf16>, vector<4x128xbf16>, vector<256x128xf32> -> vector<256x128xf32>
    %10 = arith.addf %1, %9 : vector<256x128xf32>
    %c0_i32_6 = arith.constant 0 : i32
    %11 = arith.addi %0, %c0_i32_6 : i32
    %c0_7 = arith.constant 0 : index
    %12 = arith.index_cast %11 : i32 to index
    %c1 = arith.constant 1 : index
    %c0_8 = arith.constant 0 : index
    %13 = vector.load %arg3[%c0_7, %12, %c1, %c0_8] : memref<1x18x18x4xbf16, #tpu.memory_space<vmem>>, vector<1x16x16x4xbf16>
    %14 = vector.shape_cast %13 : vector<1x16x16x4xbf16> to vector<16x16x4xbf16>
    %15 = vector.shape_cast %14 : vector<16x16x4xbf16> to vector<256x4xbf16>
    %c1_9 = arith.constant 1 : index
    %c0_10 = arith.constant 0 : index
    %c0_11 = arith.constant 0 : index
    %16 = vector.load %arg4[%c1_9, %c0_10, %c0_11] : memref<9x4x128xbf16, #tpu.memory_space<vmem>>, vector<1x4x128xbf16>
    %17 = vector.shape_cast %16 : vector<1x4x128xbf16> to vector<4x128xbf16>
    %cst_12 = arith.constant dense<0.000000e+00> : vector<256x128xf32>
    %18 = tpu.matmul %15, %17, %cst_12 {dimension_numbers = #tpu.dot_dimension_numbers<[1], [0], [0], [1], [0, 0, 1, 1], [], []>} : vector<256x4xbf16>, vector<4x128xbf16>, vector<256x128xf32> -> vector<256x128xf32>
    %19 = arith.addf %10, %18 : vector<256x128xf32>
    %c0_i32_13 = arith.constant 0 : i32
    %20 = arith.addi %0, %c0_i32_13 : i32
    %c0_14 = arith.constant 0 : index
    %21 = arith.index_cast %20 : i32 to index
    %c2 = arith.constant 2 : index
    %c0_15 = arith.constant 0 : index
    %22 = vector.load %arg3[%c0_14, %21, %c2, %c0_15] : memref<1x18x18x4xbf16, #tpu.memory_space<vmem>>, vector<1x16x16x4xbf16>
    %23 = vector.shape_cast %22 : vector<1x16x16x4xbf16> to vector<16x16x4xbf16>
    %24 = vector.shape_cast %23 : vector<16x16x4xbf16> to vector<256x4xbf16>
    %c2_16 = arith.constant 2 : index
    %c0_17 = arith.constant 0 : index
    %c0_18 = arith.constant 0 : index
    %25 = vector.load %arg4[%c2_16, %c0_17, %c0_18] : memref<9x4x128xbf16, #tpu.memory_space<vmem>>, vector<1x4x128xbf16>
    %26 = vector.shape_cast %25 : vector<1x4x128xbf16> to vector<4x128xbf16>
    %cst_19 = arith.constant dense<0.000000e+00> : vector<256x128xf32>
    %27 = tpu.matmul %24, %26, %cst_19 {dimension_numbers = #tpu.dot_dimension_numbers<[1], [0], [0], [1], [0, 0, 1, 1], [], []>} : vector<256x4xbf16>, vector<4x128xbf16>, vector<256x128xf32> -> vector<256x128xf32>
    %28 = arith.addf %19, %27 : vector<256x128xf32>
    %c1_i32 = arith.constant 1 : i32
    %29 = arith.addi %0, %c1_i32 : i32
    %c0_20 = arith.constant 0 : index
    %30 = arith.index_cast %29 : i32 to index
    %c0_21 = arith.constant 0 : index
    %c0_22 = arith.constant 0 : index
    %31 = vector.load %arg3[%c0_20, %30, %c0_21, %c0_22] : memref<1x18x18x4xbf16, #tpu.memory_space<vmem>>, vector<1x16x16x4xbf16>
    %32 = vector.shape_cast %31 : vector<1x16x16x4xbf16> to vector<16x16x4xbf16>
    %33 = vector.shape_cast %32 : vector<16x16x4xbf16> to vector<256x4xbf16>
    %c3 = arith.constant 3 : index
    %c0_23 = arith.constant 0 : index
    %c0_24 = arith.constant 0 : index
    %34 = vector.load %arg4[%c3, %c0_23, %c0_24] : memref<9x4x128xbf16, #tpu.memory_space<vmem>>, vector<1x4x128xbf16>
    %35 = vector.shape_cast %34 : vector<1x4x128xbf16> to vector<4x128xbf16>
    %cst_25 = arith.constant dense<0.000000e+00> : vector<256x128xf32>
    %36 = tpu.matmul %33, %35, %cst_25 {dimension_numbers = #tpu.dot_dimension_numbers<[1], [0], [0], [1], [0, 0, 1, 1], [], []>} : vector<256x4xbf16>, vector<4x128xbf16>, vector<256x128xf32> -> vector<256x128xf32>
    %37 = arith.addf %28, %36 : vector<256x128xf32>
    %c1_i32_26 = arith.constant 1 : i32
    %38 = arith.addi %0, %c1_i32_26 : i32
    %c0_27 = arith.constant 0 : index
    %39 = arith.index_cast %38 : i32 to index
    %c1_28 = arith.constant 1 : index
    %c0_29 = arith.constant 0 : index
    %40 = vector.load %arg3[%c0_27, %39, %c1_28, %c0_29] : memref<1x18x18x4xbf16, #tpu.memory_space<vmem>>, vector<1x16x16x4xbf16>
    %41 = vector.shape_cast %40 : vector<1x16x16x4xbf16> to vector<16x16x4xbf16>
    %42 = vector.shape_cast %41 : vector<16x16x4xbf16> to vector<256x4xbf16>
    %c4 = arith.constant 4 : index
    %c0_30 = arith.constant 0 : index
    %c0_31 = arith.constant 0 : index
    %43 = vector.load %arg4[%c4, %c0_30, %c0_31] : memref<9x4x128xbf16, #tpu.memory_space<vmem>>, vector<1x4x128xbf16>
    %44 = vector.shape_cast %43 : vector<1x4x128xbf16> to vector<4x128xbf16>
    %cst_32 = arith.constant dense<0.000000e+00> : vector<256x128xf32>
    %45 = tpu.matmul %42, %44, %cst_32 {dimension_numbers = #tpu.dot_dimension_numbers<[1], [0], [0], [1], [0, 0, 1, 1], [], []>} : vector<256x4xbf16>, vector<4x128xbf16>, vector<256x128xf32> -> vector<256x128xf32>
    %46 = arith.addf %37, %45 : vector<256x128xf32>
    %c1_i32_33 = arith.constant 1 : i32
    %47 = arith.addi %0, %c1_i32_33 : i32
    %c0_34 = arith.constant 0 : index
    %48 = arith.index_cast %47 : i32 to index
    %c2_35 = arith.constant 2 : index
    %c0_36 = arith.constant 0 : index
    %49 = vector.load %arg3[%c0_34, %48, %c2_35, %c0_36] : memref<1x18x18x4xbf16, #tpu.memory_space<vmem>>, vector<1x16x16x4xbf16>
    %50 = vector.shape_cast %49 : vector<1x16x16x4xbf16> to vector<16x16x4xbf16>
    %51 = vector.shape_cast %50 : vector<16x16x4xbf16> to vector<256x4xbf16>
    %c5 = arith.constant 5 : index
    %c0_37 = arith.constant 0 : index
    %c0_38 = arith.constant 0 : index
    %52 = vector.load %arg4[%c5, %c0_37, %c0_38] : memref<9x4x128xbf16, #tpu.memory_space<vmem>>, vector<1x4x128xbf16>
    %53 = vector.shape_cast %52 : vector<1x4x128xbf16> to vector<4x128xbf16>
    %cst_39 = arith.constant dense<0.000000e+00> : vector<256x128xf32>
    %54 = tpu.matmul %51, %53, %cst_39 {dimension_numbers = #tpu.dot_dimension_numbers<[1], [0], [0], [1], [0, 0, 1, 1], [], []>} : vector<256x4xbf16>, vector<4x128xbf16>, vector<256x128xf32> -> vector<256x128xf32>
    %55 = arith.addf %46, %54 : vector<256x128xf32>
    %c2_i32 = arith.constant 2 : i32
    %56 = arith.addi %0, %c2_i32 : i32
    %c0_40 = arith.constant 0 : index
    %57 = arith.index_cast %56 : i32 to index
    %c0_41 = arith.constant 0 : index
    %c0_42 = arith.constant 0 : index
    %58 = vector.load %arg3[%c0_40, %57, %c0_41, %c0_42] : memref<1x18x18x4xbf16, #tpu.memory_space<vmem>>, vector<1x16x16x4xbf16>
    %59 = vector.shape_cast %58 : vector<1x16x16x4xbf16> to vector<16x16x4xbf16>
    %60 = vector.shape_cast %59 : vector<16x16x4xbf16> to vector<256x4xbf16>
    %c6 = arith.constant 6 : index
    %c0_43 = arith.constant 0 : index
    %c0_44 = arith.constant 0 : index
    %61 = vector.load %arg4[%c6, %c0_43, %c0_44] : memref<9x4x128xbf16, #tpu.memory_space<vmem>>, vector<1x4x128xbf16>
    %62 = vector.shape_cast %61 : vector<1x4x128xbf16> to vector<4x128xbf16>
    %cst_45 = arith.constant dense<0.000000e+00> : vector<256x128xf32>
    %63 = tpu.matmul %60, %62, %cst_45 {dimension_numbers = #tpu.dot_dimension_numbers<[1], [0], [0], [1], [0, 0, 1, 1], [], []>} : vector<256x4xbf16>, vector<4x128xbf16>, vector<256x128xf32> -> vector<256x128xf32>
    %64 = arith.addf %55, %63 : vector<256x128xf32>
    %c2_i32_46 = arith.constant 2 : i32
    %65 = arith.addi %0, %c2_i32_46 : i32
    %c0_47 = arith.constant 0 : index
    %66 = arith.index_cast %65 : i32 to index
    %c1_48 = arith.constant 1 : index
    %c0_49 = arith.constant 0 : index
    %67 = vector.load %arg3[%c0_47, %66, %c1_48, %c0_49] : memref<1x18x18x4xbf16, #tpu.memory_space<vmem>>, vector<1x16x16x4xbf16>
    %68 = vector.shape_cast %67 : vector<1x16x16x4xbf16> to vector<16x16x4xbf16>
    %69 = vector.shape_cast %68 : vector<16x16x4xbf16> to vector<256x4xbf16>
    %c7 = arith.constant 7 : index
    %c0_50 = arith.constant 0 : index
    %c0_51 = arith.constant 0 : index
    %70 = vector.load %arg4[%c7, %c0_50, %c0_51] : memref<9x4x128xbf16, #tpu.memory_space<vmem>>, vector<1x4x128xbf16>
    %71 = vector.shape_cast %70 : vector<1x4x128xbf16> to vector<4x128xbf16>
    %cst_52 = arith.constant dense<0.000000e+00> : vector<256x128xf32>
    %72 = tpu.matmul %69, %71, %cst_52 {dimension_numbers = #tpu.dot_dimension_numbers<[1], [0], [0], [1], [0, 0, 1, 1], [], []>} : vector<256x4xbf16>, vector<4x128xbf16>, vector<256x128xf32> -> vector<256x128xf32>
    %73 = arith.addf %64, %72 : vector<256x128xf32>
    %c2_i32_53 = arith.constant 2 : i32
    %74 = arith.addi %0, %c2_i32_53 : i32
    %c0_54 = arith.constant 0 : index
    %75 = arith.index_cast %74 : i32 to index
    %c2_55 = arith.constant 2 : index
    %c0_56 = arith.constant 0 : index
    %76 = vector.load %arg3[%c0_54, %75, %c2_55, %c0_56] : memref<1x18x18x4xbf16, #tpu.memory_space<vmem>>, vector<1x16x16x4xbf16>
    %77 = vector.shape_cast %76 : vector<1x16x16x4xbf16> to vector<16x16x4xbf16>
    %78 = vector.shape_cast %77 : vector<16x16x4xbf16> to vector<256x4xbf16>
    %c8 = arith.constant 8 : index
    %c0_57 = arith.constant 0 : index
    %c0_58 = arith.constant 0 : index
    %79 = vector.load %arg4[%c8, %c0_57, %c0_58] : memref<9x4x128xbf16, #tpu.memory_space<vmem>>, vector<1x4x128xbf16>
    %80 = vector.shape_cast %79 : vector<1x4x128xbf16> to vector<4x128xbf16>
    %cst_59 = arith.constant dense<0.000000e+00> : vector<256x128xf32>
    %81 = tpu.matmul %78, %80, %cst_59 {dimension_numbers = #tpu.dot_dimension_numbers<[1], [0], [0], [1], [0, 0, 1, 1], [], []>} : vector<256x4xbf16>, vector<4x128xbf16>, vector<256x128xf32> -> vector<256x128xf32>
    %82 = arith.addf %73, %81 : vector<256x128xf32>
    %c0_60 = arith.constant 0 : index
    %c0_61 = arith.constant 0 : index
    %83 = vector.load %arg5[%c0_60, %c0_61] : memref<1x128xf32, #tpu.memory_space<vmem>>, vector<1x128xf32>
    %84 = vector.broadcast %83 : vector<1x128xf32> to vector<256x128xf32>
    %85 = arith.mulf %82, %84 : vector<256x128xf32>
    %c0_62 = arith.constant 0 : index
    %c0_63 = arith.constant 0 : index
    %86 = vector.load %arg6[%c0_62, %c0_63] : memref<1x128xf32, #tpu.memory_space<vmem>>, vector<1x128xf32>
    %87 = vector.broadcast %86 : vector<1x128xf32> to vector<256x128xf32>
    %88 = arith.addf %85, %87 : vector<256x128xf32>
    %cst_64 = arith.constant 0.000000e+00 : f32
    %89 = vector.broadcast %cst_64 : f32 to vector<256x128xf32>
    %90 = arith.maximumf %88, %89 : vector<256x128xf32>
    %c0_65 = arith.constant 0 : index
    %c0_66 = arith.constant 0 : index
    %91 = vector.load %arg7[%c0_65, %c0_66] : memref<256x128xf32, #tpu.memory_space<vmem>>, vector<256x128xf32>
    tpu.vector_store %arg7[%c0_65, %c0_66], %90 {strides = array<i32>} : memref<256x128xf32, #tpu.memory_space<vmem>>, vector<256x128xf32>,
    return
  }
  func.func @transform_0(%arg0: i32, %arg1: i32, %arg2: i32) -> (i32, i32, i32, i32) {
    %c0_i32 = arith.constant 0 : i32
    %c0_i32_0 = arith.constant 0 : i32
    %c0_i32_1 = arith.constant 0 : i32
    %c0_i32_2 = arith.constant 0 : i32
    return %arg0, %c0_i32, %c0_i32_0, %c0_i32_1 : i32, i32, i32, i32
  }
  func.func @transform_1(%arg0: i32, %arg1: i32, %arg2: i32) -> (i32, i32, i32) {
    %c0_i32 = arith.constant 0 : i32
    %c0_i32_0 = arith.constant 0 : i32
    %c0_i32_1 = arith.constant 0 : i32
    return %c0_i32, %c0_i32_0, %arg1 : i32, i32, i32
  }
  func.func @transform_2(%arg0: i32, %arg1: i32, %arg2: i32) -> (i32, i32) {
    %c0_i32 = arith.constant 0 : i32
    %c0_i32_0 = arith.constant 0 : i32
    return %c0_i32, %arg1 : i32, i32
  }
  func.func @transform_3(%arg0: i32, %arg1: i32, %arg2: i32) -> (i32, i32) {
    %c0_i32 = arith.constant 0 : i32
    %c0_i32_0 = arith.constant 0 : i32
    return %c0_i32, %arg1 : i32, i32
  }
  func.func @transform_4(%arg0: i32, %arg1: i32, %arg2: i32) -> (i32, i32) {
    %c1_i32 = arith.constant 1 : i32
    %0 = arith.muli %arg0, %c1_i32 : i32
    %1 = arith.addi %0, %arg2 : i32
    %c0_i32 = arith.constant 0 : i32
    return %1, %arg1 : i32, i32
  }
}

</mosaic_0001>

<llo_original>
// kernel: tpu_custom_call.1
$region0: #{tpu_custom_call.1}
  #allocation0 [shape = 'u32[]', space=smem, size = 0x4, offset = 0x4, fixed_abs, tag = 'smem constant byte address 0x4 - core index']
  #allocation1 [shape = 'u32[144,128]{1,0:T(1,128)}', space=vmem, size = 0x12000, scoped, tag = 'internal scratch']
  %s0 = inlined_call_operand.vmem [shape: bf16[2,18,18,4], index: 0, kind: input, shape index: {}]
  %s1 = inlined_call_operand.vmem [shape: bf16[9,4,128], index: 1, kind: input, shape index: {}]
  %s2 = inlined_call_operand.vmem [shape: f32[1,128], index: 2, kind: input, shape index: {}]
  %s3 = inlined_call_operand.vmem [shape: f32[1,128], index: 3, kind: input, shape index: {}]
  %s4 = inlined_call_operand.hbm [shape: f32[512,128], index: 4, kind: output, shape index: {}]
  %s5 = sld [smem:[#allocation0]]
  $region49: #{tpu_custom_call.1} parent=0
    _
  %s7 = ssub.s32 1, %s5
  %s8 = scalar_select 0, %s7, %s5
  $region1: #{tpu_custom_call.1} parent=0
    #allocation2 [shape = 'u8[262144]{0}', space=vmem, size = 0x40000, scoped, tag = 'output window, operand 0']
    #allocation3 [shape = 's32[2]{0}', space=sflag, size = 0x8, scoped, tag = 'scoped memory for tpu_custom_call.1']
    %9 = vsyncpa [#allocation3], 0
    %s10 = scalar_lea.sflag [#allocation3], 1
    %11 = vsyncpa %s10, 0
    loop: start=0, step=1, limit=4
    $region2: #{tpu_custom_call.1} parent=1 // loop_pre_header
      _
    $region3: #{tpu_custom_call.1} parent=1 // loop_header
      %s13 = sphi 0, %s17
      %p14 = scmp.ge.s32.totalorder %s13, 4
      %s20 = sphi 0, %s39
      %s21 = sphi 0, %s35
      %s22 = sphi 0, %s31
      %s23 = sphi 0, %s20
      %s24 = sphi 0, %s21
      %s25 = sphi 0, %s22
      %s26 = sphi 0, %s23
      %s27 = sphi 0, %s24
      %s28 = sphi 0, %s25
      %s42 = sphi 0, %s44
      %s45 = sphi 0, %s42
      %s46 = sphi 0, %s45
      %s62 = sphi 0, %s46
      %s68 = sphi 0, %s70
      %s71 = sphi 0, %s68
      %s72 = sphi 0, %s71
      %s88 = sphi 0, %s72
      %s94 = sphi 0, %s96
      %s97 = sphi 0, %s94
      %s98 = sphi 0, %s97
      %s114 = sphi 0, %s98
      %s120 = sphi 0, %s122
      %s123 = sphi 0, %s120
      %s124 = sphi 0, %s123
      %s140 = sphi 0, %s124
      %s150 = sphi 0, %s152
      %s153 = sphi 0, %s150
      %s154 = sphi 0, %s153
      %s170 = sphi 0, %s154
    $region4: #{tpu_custom_call.1} parent=1 // loop_header_branch
      %16 = sbr.rel (%p14) target = $region8
    $region5: #{tpu_custom_call.1} parent=1 // loop_body
      %s18 = ssub.s32 %s13, 1
      %s19 = ssub.s32 %s13, 2
      %s29 = sadd.s32 1, %s22
      %p30 = scmp.ge.s32.totalorder %s29, 1
      %s31 = scalar_select %p30, 0, %s29
      %s32 = sadd.s32 1, %s21
      %s33 = scalar_select %p30, %s32, %s21
      %p34 = scmp.ge.s32.totalorder %s33, 1
      %s35 = scalar_select %p34, 0, %s33
      %s36 = sadd.s32 1, %s20
      %s37 = scalar_select %p34, %s36, %s20
      %p38 = scmp.ge.s32.totalorder %s37, 2
      %s39 = scalar_select %p38, 0, %s37
      %s40 = ssub.s32 %s20, %s39
      %p41 = scmp.eq.s32.totalorder %s40, 0
      %s43 = sadd.s32 %s42, 1
      %s44 = scalar_select %p41, %s42, %s43
      %p47 = pneg %p41
      %p48 = scmp.eq.s32.totalorder %s13, 1
      %p49 = por %p47, %p48
      %p50 = scmp.ne.s32.totalorder %s42, %s45
      %p51 = scmp.eq.s32.totalorder %s13, 0
      %p52 = por %p50, %p51
      %p53 = scmp.ne.s32.totalorder %s42, %s45
      %p54 = scmp.eq.s32.totalorder %s18, 1
      %p55 = por %p53, %p54
      %p56 = scmp.ne.s32.totalorder %s45, %s46
      %p57 = scmp.eq.s32.totalorder %s18, 0
      %p58 = por %p56, %p57
      %p59 = scmp.ne.s32.totalorder %s45, %s46
      %p60 = scmp.eq.s32.totalorder %s19, 1
      %p61 = por %p59, %p60
      %p63 = scmp.ne.s32.totalorder %s46, %s62
      %p64 = scmp.eq.s32.totalorder %s19, 0
      %p65 = por %p63, %p64
      %s66 = ssub.s32 %s21, %s35
      %p67 = scmp.eq.s32.totalorder %s66, 0
      %s69 = sadd.s32 %s68, 1
      %s70 = scalar_select %p67, %s68, %s69
      %p73 = pneg %p67
      %p74 = scmp.eq.s32.totalorder %s13, 1
      %p75 = por %p73, %p74
      %p76 = scmp.ne.s32.totalorder %s68, %s71
      %p77 = scmp.eq.s32.totalorder %s13, 0
      %p78 = por %p76, %p77
      %p79 = scmp.ne.s32.totalorder %s68, %s71
      %p80 = scmp.eq.s32.totalorder %s18, 1
      %p81 = por %p79, %p80
      %p82 = scmp.ne.s32.totalorder %s71, %s72
      %p83 = scmp.eq.s32.totalorder %s18, 0
      %p84 = por %p82, %p83
      %p85 = scmp.ne.s32.totalorder %s71, %s72
      %p86 = scmp.eq.s32.totalorder %s19, 1
      %p87 = por %p85, %p86
      %p89 = scmp.ne.s32.totalorder %s72, %s88
      %p90 = scmp.eq.s32.totalorder %s19, 0
      %p91 = por %p89, %p90
      %s92 = ssub.s32 %s21, %s35
      %p93 = scmp.eq.s32.totalorder %s92, 0
      %s95 = sadd.s32 %s94, 1
      %s96 = scalar_select %p93, %s94, %s95
      %p99 = pneg %p93
      %p100 = scmp.eq.s32.totalorder %s13, 1
      %p101 = por %p99, %p100
      %p102 = scmp.ne.s32.totalorder %s94, %s97
      %p103 = scmp.eq.s32.totalorder %s13, 0
      %p104 = por %p102, %p103
      %p105 = scmp.ne.s32.totalorder %s94, %s97
      %p106 = scmp.eq.s32.totalorder %s18, 1
      %p107 = por %p105, %p106
      %p108 = scmp.ne.s32.totalorder %s97, %s98
      %p109 = scmp.eq.s32.totalorder %s18, 0
      %p110 = por %p108, %p109
      %p111 = scmp.ne.s32.totalorder %s97, %s98
      %p112 = scmp.eq.s32.totalorder %s19, 1
      %p113 = por %p111, %p112
      %p115 = scmp.ne.s32.totalorder %s98, %s114
      %p116 = scmp.eq.s32.totalorder %s19, 0
      %p117 = por %p115, %p116
      %s118 = ssub.s32 %s21, %s35
      %p119 = scmp.eq.s32.totalorder %s118, 0
      %s121 = sadd.s32 %s120, 1
      %s122 = scalar_select %p119, %s120, %s121
      %p125 = pneg %p119
      %p126 = scmp.eq.s32.totalorder %s13, 1
      %p127 = por %p125, %p126
      %p128 = scmp.ne.s32.totalorder %s120, %s123
      %p129 = scmp.eq.s32.totalorder %s13, 0
      %p130 = por %p128, %p129
      %p131 = scmp.ne.s32.totalorder %s120, %s123
      %p132 = scmp.eq.s32.totalorder %s18, 1
      %p133 = por %p131, %p132
      %p134 = scmp.ne.s32.totalorder %s123, %s124
      %p135 = scmp.eq.s32.totalorder %s18, 0
      %p136 = por %p134, %p135
      %p137 = scmp.ne.s32.totalorder %s123, %s124
      %p138 = scmp.eq.s32.totalorder %s19, 1
      %p139 = por %p137, %p138
      %p141 = scmp.ne.s32.totalorder %s124, %s140
      %p142 = scmp.eq.s32.totalorder %s19, 0
      %p143 = por %p141, %p142
      %s144 = sadd.s32 %s20, %s22
      %s145 = sadd.s32 %s39, %s31
      %s146 = ssub.s32 %s144, %s145
      %s147 = ssub.s32 %s21, %s35
      %s148 = sor.u32 %s146, %s147
      %p149 = scmp.eq.s32.totalorder %s148, 0
      %s151 = sadd.s32 %s150, 1
      %s152 = scalar_select %p149, %s150, %s151
      %p155 = pneg %p149
      %p156 = scmp.eq.s32.totalorder %s13, 1
      %p157 = por %p155, %p156
      %p158 = scmp.ne.s32.totalorder %s150, %s153
      %p159 = scmp.eq.s32.totalorder %s13, 0
      %p160 = por %p158, %p159
      %p161 = scmp.ne.s32.totalorder %s150, %s153
      %p162 = scmp.eq.s32.totalorder %s18, 1
      %p163 = por %p161, %p162
      %p164 = scmp.ne.s32.totalorder %s153, %s154
      %p165 = scmp.eq.s32.totalorder %s18, 0
      %p166 = por %p164, %p165
      %p167 = scmp.ne.s32.totalorder %s153, %s154
      %p168 = scmp.eq.s32.totalorder %s19, 1
      %p169 = por %p167, %p168
      %p171 = scmp.ne.s32.totalorder %s154, %s170
      %p172 = scmp.eq.s32.totalorder %s19, 0
      %p173 = por %p171, %p172
      %p174 = scmp.le.s32.totalorder 1, %s13
      %p175 = scmp.lt.s32.totalorder %s13, 3
      %p176 = pnand %p174, %p175
      %p177 = pneg %p176
      // Predicated region
      $region9: #{tpu_custom_call.1} parent=5 // pred_check
        _
      $region10: #{tpu_custom_call.1} parent=5 // pred_check_branch
        %179 = sbr.rel (%p176) target = $region12
      $region11: #{tpu_custom_call.1} parent=5 // pred_region
        %s180 = ssub.s32 %s13, 1
        // Predicated region
        $region13: #{tpu_custom_call.1} parent=11 // pred_check
          %p181 = pneg %p84
        $region14: #{tpu_custom_call.1} parent=11 // pred_check_branch
          %183 = sbr.rel (%p181) target = $region16
        $region15: #{tpu_custom_call.1} parent=11 // pred_region
          %p184 = scmp.lt.s32.totalorder %s24, 0
          %s185 = scalar_select %p184, %s24, 0
          %s186 = smul.addr %s185, 2
          %s187 = scalar_lea.vmem %s1, %s186
        $region16: #{tpu_custom_call.1} parent=11 // pred_fallthru
          _
        // Predicated region
        $region17: #{tpu_custom_call.1} parent=11 // pred_check
          %p188 = pneg %p110
        $region18: #{tpu_custom_call.1} parent=11 // pred_check_branch
          %190 = sbr.rel (%p188) target = $region20
        $region19: #{tpu_custom_call.1} parent=11 // pred_region
          %p191 = scmp.lt.s32.totalorder %s24, 0
          %s192 = scalar_select %p191, %s24, 0
          %s193 = scalar_lea.vmem %s2, %s192
        $region20: #{tpu_custom_call.1} parent=11 // pred_fallthru
          _
        // Predicated region
        $region21: #{tpu_custom_call.1} parent=11 // pred_check
          %p194 = pneg %p136
        $region22: #{tpu_custom_call.1} parent=11 // pred_check_branch
          %196 = sbr.rel (%p194) target = $region24
        $region23: #{tpu_custom_call.1} parent=11 // pred_region
          %p197 = scmp.lt.s32.totalorder %s24, 0
          %s198 = scalar_select %p197, %s24, 0
          %s199 = scalar_lea.vmem %s3, %s198
        $region24: #{tpu_custom_call.1} parent=11 // pred_fallthru
          _
      $region12: #{tpu_custom_call.1} parent=5 // pred_fallthru
        _
      %p200 = scmp.lt.s32.totalorder %s13, 2
      // Predicated region
      $region25: #{tpu_custom_call.1} parent=5 // pred_check
        %p201 = pneg %p200
      $region26: #{tpu_custom_call.1} parent=5 // pred_check_branch
        %203 = sbr.rel (%p201) target = $region28
      $region27: #{tpu_custom_call.1} parent=5 // pred_region
        // Predicated region
        $region29: #{tpu_custom_call.1} parent=27 // pred_check
          %p204 = pneg %p52
        $region30: #{tpu_custom_call.1} parent=27 // pred_check_branch
          %206 = sbr.rel (%p204) target = $region32
        $region31: #{tpu_custom_call.1} parent=27 // pred_region
          %p207 = scmp.lt.s32.totalorder %s20, 1
          %s208 = scalar_select %p207, %s20, 1
          %s209 = smul.addr %s208, 54
          %s210 = smul.addr %s209, 4
          %s211 = scalar_lea.vmem %s0, %s210
        $region32: #{tpu_custom_call.1} parent=27 // pred_fallthru
          _
      $region28: #{tpu_custom_call.1} parent=5 // pred_fallthru
        _
      %p212 = scmp.le.s32.totalorder 1, %s13
      %p213 = scmp.lt.s32.totalorder %s13, 3
      %p214 = pnand %p212, %p213
      %p215 = pneg %p214
      // Predicated region
      $region33: #{tpu_custom_call.1} parent=5 // pred_check
        _
      $region34: #{tpu_custom_call.1} parent=5 // pred_check_branch
        %217 = sbr.rel (%p214) target = $region36
      $region35: #{tpu_custom_call.1} parent=5 // pred_region
        %s218 = ssub.s32 %s13, 1
        %p219 = scmp.lt.s32.totalorder %s23, 1
        %s220 = scalar_select %p219, %s23, 1
        %s221 = smul.addr %s220, 54
        %s222 = smul.addr %s221, 4
        %s223 = scalar_lea.vmem %s0, %s222
        %p224 = pneg %p58
        %p225 = pneg %p55
        %p226 = scmp.lt.s32.totalorder %s24, 0
        %s227 = scalar_select %p226, %s24, 0
        %s228 = smul.addr %s227, 2
        %s229 = scalar_lea.vmem %s1, %s228
        %p230 = pneg %p84
        %p231 = pneg %p81
        %p232 = scmp.lt.s32.totalorder %s24, 0
        %s233 = scalar_select %p232, %s24, 0
        %s234 = scalar_lea.vmem %s2, %s233
        %p235 = pneg %p110
        %p236 = pneg %p107
        %p237 = scmp.lt.s32.totalorder %s24, 0
        %s238 = scalar_select %p237, %s24, 0
        %s239 = scalar_lea.vmem %s3, %s238
        %p240 = pneg %p136
        %p241 = pneg %p133
        %p242 = pneg %p166
        %p243 = pneg %p163
        %s244 = sand.u32 %s153, 1
        %s245 = scalar_lea.sflag [#allocation3], %s244
        %s246 = sand.u32 %s153, 1
        %s247 = smul.addr %s246, 256
        %s248 = scalar_lea.vmem [#allocation2], %s247
        %p249 = scmp.lt.s32.totalorder %s23, 1
        %s250 = scalar_select %p249, %s23, 1
        %s251 = smul.addr %s250, 54
        %s252 = smul.addr %s251, 4
        %s253 = scalar_lea.vmem %s0, %s252
        %p254 = scmp.lt.s32.totalorder %s24, 0
        %s255 = scalar_select %p254, %s24, 0
        %s256 = smul.addr %s255, 2
        %s257 = scalar_lea.vmem %s1, %s256
        %p258 = scmp.lt.s32.totalorder %s24, 0
        %s259 = scalar_select %p258, %s24, 0
        %s260 = scalar_lea.vmem %s2, %s259
        %p261 = scmp.lt.s32.totalorder %s24, 0
        %s262 = scalar_select %p261, %s24, 0
        %s263 = scalar_lea.vmem %s3, %s262
        %s264 = sadd.s32 %s23, %s25
        %s265 = smul.u32 32, %s264
        %s267 = smul.u32 %s25, 16
        %s268 = smul.u32 %s267, 3
        %s269 = smul.addr %s268, 4
        %s270 = scalar_lea.vmem %s253, %s269
        %v271 = vld [vmem:[%s270] sm:$0xf]
        %v272 = vld [vmem:[%s270 + $0x4] sm:$0xf]
        %v273 = vld [vmem:[%s270 + $0xc] sm:$0xf]
        %v274 = vld [vmem:[%s270 + $0x10] sm:$0xf]
        %v275 = vld [vmem:[%s270 + $0x18] sm:$0xf]
        %v276 = vld [vmem:[%s270 + $0x1c] sm:$0xf]
        %v277 = vld [vmem:[%s270 + $0x24] sm:$0xf]
        %v278 = vld [vmem:[%s270 + $0x28] sm:$0xf]
        %v279 = vld [vmem:[%s270 + $0x30] sm:$0xf]
        %v280 = vld [vmem:[%s270 + $0x34] sm:$0xf]
        %v281 = vld [vmem:[%s270 + $0x3c] sm:$0xf]
        %v282 = vld [vmem:[%s270 + $0x40] sm:$0xf]
        %v283 = vld [vmem:[%s270 + $0x48] sm:$0xf]
        %v284 = vld [vmem:[%s270 + $0x4c] sm:$0xf]
        %v285 = vld [vmem:[%s270 + $0x54] sm:$0xf]
        %v286 = vld [vmem:[%s270 + $0x58] sm:$0xf]
        %v287 = vld [vmem:[%s270 + $0x60] sm:$0xf]
        %v288 = vld [vmem:[%s270 + $0x64] sm:$0xf]
        %v289 = vld [vmem:[%s270 + $0x6c] sm:$0xf]
        %v290 = vld [vmem:[%s270 + $0x70] sm:$0xf]
        %v291 = vld [vmem:[%s270 + $0x78] sm:$0xf]
        %v292 = vld [vmem:[%s270 + $0x7c] sm:$0xf]
        %v293 = vld [vmem:[%s270 + $0x84] sm:$0xf]
        %v294 = vld [vmem:[%s270 + $0x88] sm:$0xf]
        %v295 = vld [vmem:[%s270 + $0x90] sm:$0xf]
        %v296 = vld [vmem:[%s270 + $0x94] sm:$0xf]
        %v297 = vld [vmem:[%s270 + $0x9c] sm:$0xf]
        %v298 = vld [vmem:[%s270 + $0xa0] sm:$0xf]
        %v299 = vld [vmem:[%s270 + $0xa8] sm:$0xf]
        %v300 = vld [vmem:[%s270 + $0xac] sm:$0xf]
        %v301 = vld [vmem:[%s270 + $0xb4] sm:$0xf]
        %v302 = vld [vmem:[%s270 + $0xb8] sm:$0xf]
        %v303 = vld [vmem:[%s257] sm:$0x3]
        %v304 = vld [vmem:[%s270 + $0x8] sm:$0x1]
        %v305 = vld [vmem:[%s270 + $0x14] sm:$0x1]
        %v306 = vld [vmem:[%s270 + $0x20] sm:$0x1]
        %v307 = vld [vmem:[%s270 + $0x2c] sm:$0x1]
        %v308 = vld [vmem:[%s270 + $0x38] sm:$0x1]
        %v309 = vld [vmem:[%s270 + $0x44] sm:$0x1]
        %v310 = vld [vmem:[%s270 + $0x50] sm:$0x1]
        %v311 = vld [vmem:[%s270 + $0x5c] sm:$0x1]
        %v312 = vld [vmem:[%s270 + $0x68] sm:$0x1]
        %v313 = vld [vmem:[%s270 + $0x74] sm:$0x1]
        %v314 = vld [vmem:[%s270 + $0x80] sm:$0x1]
        %v315 = vld [vmem:[%s270 + $0x8c] sm:$0x1]
        %v316 = vld [vmem:[%s270 + $0x98] sm:$0x1]
        %v317 = vld [vmem:[%s270 + $0xa4] sm:$0x1]
        %v318 = vld [vmem:[%s270 + $0xb0] sm:$0x1]
        %v319 = vld [vmem:[%s270 + $0xbc] sm:$0x1]
        %vm320 = vsmask.f32 3328
        %vm321 = vsmask.f32 7440
        %vm322 = vmor %vm320, %vm321
        %v324 = vshrl.u32 %v271, 16
        %v326 = vrot.slane %v324, 4
        %v327 = vshll.u32 %v271, 16
        %v329 = vrot.slane %v327, 5
        %v330 = vor.u32 %v326, %v329
        %v331 = vrot.slane %v330, 4
        %v333 = vshll.u32 %v272, 16
        %v335 = vrot.slane %v333, 5
        %v336 = vsel %vm322, %v331, %v335
        %v337 = vshrl.u32 %v272, 16
        %v339 = vrot.slane %v337, 4
        %v340 = vor.u32 %v339, %v335
        %v341 = vrot.slane %v340, 4
        %v343 = vshll.u32 %v304, 16
        %v345 = vrot.slane %v343, 5
        %v346 = vsel %vm322, %v341, %v345
        %v348 = vshrl.u32 %v273, 16
        %v350 = vrot.slane %v348, 4
        %v351 = vshll.u32 %v273, 16
        %v353 = vrot.slane %v351, 5
        %v354 = vor.u32 %v350, %v353
        %v355 = vrot.slane %v354, 4
        %v357 = vshll.u32 %v274, 16
        %v359 = vrot.slane %v357, 5
        %v360 = vsel %vm322, %v355, %v359
        %v361 = vshrl.u32 %v274, 16
        %v363 = vrot.slane %v361, 4
        %v364 = vor.u32 %v363, %v359
        %v365 = vrot.slane %v364, 4
        %v367 = vshll.u32 %v305, 16
        %v369 = vrot.slane %v367, 5
        %v370 = vsel %vm322, %v365, %v369
        %v372 = vshrl.u32 %v275, 16
        %v374 = vrot.slane %v372, 4
        %v375 = vshll.u32 %v275, 16
        %v377 = vrot.slane %v375, 5
        %v378 = vor.u32 %v374, %v377
        %v379 = vrot.slane %v378, 4
        %v381 = vshll.u32 %v276, 16
        %v383 = vrot.slane %v381, 5
        %v384 = vsel %vm322, %v379, %v383
        %v385 = vshrl.u32 %v276, 16
        %v387 = vrot.slane %v385, 4
        %v388 = vor.u32 %v387, %v383
        %v389 = vrot.slane %v388, 4
        %v391 = vshll.u32 %v306, 16
        %v393 = vrot.slane %v391, 5
        %v394 = vsel %vm322, %v389, %v393
        %v396 = vshrl.u32 %v277, 16
        %v398 = vrot.slane %v396, 4
        %v399 = vshll.u32 %v277, 16
        %v401 = vrot.slane %v399, 5
        %v402 = vor.u32 %v398, %v401
        %v403 = vrot.slane %v402, 4
        %v405 = vshll.u32 %v278, 16
        %v407 = vrot.slane %v405, 5
        %v408 = vsel %vm322, %v403, %v407
        %v409 = vshrl.u32 %v278, 16
        %v411 = vrot.slane %v409, 4
        %v412 = vor.u32 %v411, %v407
        %v413 = vrot.slane %v412, 4
        %v415 = vshll.u32 %v307, 16
        %v417 = vrot.slane %v415, 5
        %v418 = vsel %vm322, %v413, %v417
        %v420 = vshrl.u32 %v279, 16
        %v422 = vrot.slane %v420, 4
        %v423 = vshll.u32 %v279, 16
        %v425 = vrot.slane %v423, 5
        %v426 = vor.u32 %v422, %v425
        %v427 = vrot.slane %v426, 4
        %v429 = vshll.u32 %v280, 16
        %v431 = vrot.slane %v429, 5
        %v432 = vsel %vm322, %v427, %v431
        %v433 = vshrl.u32 %v280, 16
        %v435 = vrot.slane %v433, 4
        %v436 = vor.u32 %v435, %v431
        %v437 = vrot.slane %v436, 4
        %v439 = vshll.u32 %v308, 16
        %v441 = vrot.slane %v439, 5
        %v442 = vsel %vm322, %v437, %v441
        %v444 = vshrl.u32 %v281, 16
        %v446 = vrot.slane %v444, 4
        %v447 = vshll.u32 %v281, 16
        %v449 = vrot.slane %v447, 5
        %v450 = vor.u32 %v446, %v449
        %v451 = vrot.slane %v450, 4
        %v453 = vshll.u32 %v282, 16
        %v455 = vrot.slane %v453, 5
        %v456 = vsel %vm322, %v451, %v455
        %v457 = vshrl.u32 %v282, 16
        %v459 = vrot.slane %v457, 4
        %v460 = vor.u32 %v459, %v455
        %v461 = vrot.slane %v460, 4
        %v463 = vshll.u32 %v309, 16
        %v465 = vrot.slane %v463, 5
        %v466 = vsel %vm322, %v461, %v465
        %v468 = vshrl.u32 %v283, 16
        %v470 = vrot.slane %v468, 4
        %v471 = vshll.u32 %v283, 16
        %v473 = vrot.slane %v471, 5
        %v474 = vor.u32 %v470, %v473
        %v475 = vrot.slane %v474, 4
        %v477 = vshll.u32 %v284, 16
        %v479 = vrot.slane %v477, 5
        %v480 = vsel %vm322, %v475, %v479
        %v481 = vshrl.u32 %v284, 16
        %v483 = vrot.slane %v481, 4
        %v484 = vor.u32 %v483, %v479
        %v485 = vrot.slane %v484, 4
        %v487 = vshll.u32 %v310, 16
        %v489 = vrot.slane %v487, 5
        %v490 = vsel %vm322, %v485, %v489
        %v492 = vshrl.u32 %v285, 16
        %v494 = vrot.slane %v492, 4
        %v495 = vshll.u32 %v285, 16
        %v497 = vrot.slane %v495, 5
        %v498 = vor.u32 %v494, %v497
        %v499 = vrot.slane %v498, 4
        %v501 = vshll.u32 %v286, 16
        %v503 = vrot.slane %v501, 5
        %v504 = vsel %vm322, %v499, %v503
        %v505 = vshrl.u32 %v286, 16
        %v507 = vrot.slane %v505, 4
        %v508 = vor.u32 %v507, %v503
        %v509 = vrot.slane %v508, 4
        %v511 = vshll.u32 %v311, 16
        %v513 = vrot.slane %v511, 5
        %v514 = vsel %vm322, %v509, %v513
        %v516 = vshrl.u32 %v287, 16
        %v518 = vrot.slane %v516, 4
        %v519 = vshll.u32 %v287, 16
        %v521 = vrot.slane %v519, 5
        %v522 = vor.u32 %v518, %v521
        %v523 = vrot.slane %v522, 4
        %v525 = vshll.u32 %v288, 16
        %v527 = vrot.slane %v525, 5
        %v528 = vsel %vm322, %v523, %v527
        %v529 = vshrl.u32 %v288, 16
        %v531 = vrot.slane %v529, 4
        %v532 = vor.u32 %v531, %v527
        %v533 = vrot.slane %v532, 4
        %v535 = vshll.u32 %v312, 16
        %v537 = vrot.slane %v535, 5
        %v538 = vsel %vm322, %v533, %v537
        %v540 = vshrl.u32 %v289, 16
        %v542 = vrot.slane %v540, 4
        %v543 = vshll.u32 %v289, 16
        %v545 = vrot.slane %v543, 5
        %v546 = vor.u32 %v542, %v545
        %v547 = vrot.slane %v546, 4
        %v549 = vshll.u32 %v290, 16
        %v551 = vrot.slane %v549, 5
        %v552 = vsel %vm322, %v547, %v551
        %v553 = vshrl.u32 %v290, 16
        %v555 = vrot.slane %v553, 4
        %v556 = vor.u32 %v555, %v551
        %v557 = vrot.slane %v556, 4
        %v559 = vshll.u32 %v313, 16
        %v561 = vrot.slane %v559, 5
        %v562 = vsel %vm322, %v557, %v561
        %v564 = vshrl.u32 %v291, 16
        %v566 = vrot.slane %v564, 4
        %v567 = vshll.u32 %v291, 16
        %v569 = vrot.slane %v567, 5
        %v570 = vor.u32 %v566, %v569
        %v571 = vrot.slane %v570, 4
        %v573 = vshll.u32 %v292, 16
        %v575 = vrot.slane %v573, 5
        %v576 = vsel %vm322, %v571, %v575
        %v577 = vshrl.u32 %v292, 16
        %v579 = vrot.slane %v577, 4
        %v580 = vor.u32 %v579, %v575
        %v581 = vrot.slane %v580, 4
        %v583 = vshll.u32 %v314, 16
        %v585 = vrot.slane %v583, 5
        %v586 = vsel %vm322, %v581, %v585
        %v588 = vshrl.u32 %v293, 16
        %v590 = vrot.slane %v588, 4
        %v591 = vshll.u32 %v293, 16
        %v593 = vrot.slane %v591, 5
        %v594 = vor.u32 %v590, %v593
        %v595 = vrot.slane %v594, 4
        %v597 = vshll.u32 %v294, 16
        %v599 = vrot.slane %v597, 5
        %v600 = vsel %vm322, %v595, %v599
        %v601 = vshrl.u32 %v294, 16
        %v603 = vrot.slane %v601, 4
        %v604 = vor.u32 %v603, %v599
        %v605 = vrot.slane %v604, 4
        %v607 = vshll.u32 %v315, 16
        %v609 = vrot.slane %v607, 5
        %v610 = vsel %vm322, %v605, %v609
        %v612 = vshrl.u32 %v295, 16
        %v614 = vrot.slane %v612, 4
        %v615 = vshll.u32 %v295, 16
        %v617 = vrot.slane %v615, 5
        %v618 = vor.u32 %v614, %v617
        %v619 = vrot.slane %v618, 4
        %v621 = vshll.u32 %v296, 16
        %v623 = vrot.slane %v621, 5
        %v624 = vsel %vm322, %v619, %v623
        %v625 = vshrl.u32 %v296, 16
        %v627 = vrot.slane %v625, 4
        %v628 = vor.u32 %v627, %v623
        %v629 = vrot.slane %v628, 4
        %v631 = vshll.u32 %v316, 16
        %v633 = vrot.slane %v631, 5
        %v634 = vsel %vm322, %v629, %v633
        %v636 = vshrl.u32 %v297, 16
        %v638 = vrot.slane %v636, 4
        %v639 = vshll.u32 %v297, 16
        %v641 = vrot.slane %v639, 5
        %v642 = vor.u32 %v638, %v641
        %v643 = vrot.slane %v642, 4
        %v645 = vshll.u32 %v298, 16
        %v647 = vrot.slane %v645, 5
        %v648 = vsel %vm322, %v643, %v647
        %v649 = vshrl.u32 %v298, 16
        %v651 = vrot.slane %v649, 4
        %v652 = vor.u32 %v651, %v647
        %v653 = vrot.slane %v652, 4
        %v655 = vshll.u32 %v317, 16
        %v657 = vrot.slane %v655, 5
        %v658 = vsel %vm322, %v653, %v657
        %v660 = vshrl.u32 %v299, 16
        %v662 = vrot.slane %v660, 4
        %v663 = vshll.u32 %v299, 16
        %v665 = vrot.slane %v663, 5
        %v666 = vor.u32 %v662, %v665
        %v667 = vrot.slane %v666, 4
        %v669 = vshll.u32 %v300, 16
        %v671 = vrot.slane %v669, 5
        %v672 = vsel %vm322, %v667, %v671
        %v673 = vshrl.u32 %v300, 16
        %v675 = vrot.slane %v673, 4
        %v676 = vor.u32 %v675, %v671
        %v677 = vrot.slane %v676, 4
        %v679 = vshll.u32 %v318, 16
        %v681 = vrot.slane %v679, 5
        %v682 = vsel %vm322, %v677, %v681
        %v684 = vshrl.u32 %v301, 16
        %v686 = vrot.slane %v684, 4
        %v687 = vshll.u32 %v301, 16
        %v689 = vrot.slane %v687, 5
        %v690 = vor.u32 %v686, %v689
        %v691 = vrot.slane %v690, 4
        %v693 = vshll.u32 %v302, 16
        %v695 = vrot.slane %v693, 5
        %v696 = vsel %vm322, %v691, %v695
        %v697 = vshrl.u32 %v302, 16
        %v699 = vrot.slane %v697, 4
        %v700 = vor.u32 %v699, %v695
        %v701 = vrot.slane %v700, 4
        %v703 = vshll.u32 %v319, 16
        %v705 = vrot.slane %v703, 5
        %v706 = vsel %vm322, %v701, %v705
        %s707 = scalar_lea.vmem %s257, 2
        %v708 = vld [vmem:[%s707] sm:$0x3]
        %v709 = vunpack.c.l.b16 %v336
        %v710 = vunpack.c.l.b16 %v346
        %v711 = vunpack.c.l.b16 %v360
        %v712 = vunpack.c.l.b16 %v370
        %v713 = vunpack.c.l.b16 %v384
        %v714 = vunpack.c.l.b16 %v394
        %v715 = vunpack.c.l.b16 %v408
        %v716 = vunpack.c.l.b16 %v418
        %v717 = vunpack.c.l.b16 %v432
        %v718 = vunpack.c.l.b16 %v442
        %v719 = vunpack.c.l.b16 %v456
        %v720 = vunpack.c.l.b16 %v466
        %v721 = vunpack.c.l.b16 %v480
        %v722 = vunpack.c.l.b16 %v490
        %v723 = vunpack.c.l.b16 %v504
        %v724 = vunpack.c.l.b16 %v514
        %v725 = vunpack.c.l.b16 %v528
        %v726 = vunpack.c.l.b16 %v538
        %v727 = vunpack.c.l.b16 %v552
        %v728 = vunpack.c.l.b16 %v562
        %v729 = vunpack.c.l.b16 %v576
        %v730 = vunpack.c.l.b16 %v586
        %v731 = vunpack.c.l.b16 %v600
        %v732 = vunpack.c.l.b16 %v610
        %v733 = vunpack.c.l.b16 %v624
        %v734 = vunpack.c.l.b16 %v634
        %v735 = vunpack.c.l.b16 %v648
        %v736 = vunpack.c.l.b16 %v658
        %v737 = vunpack.c.l.b16 %v672
        %v738 = vunpack.c.l.b16 %v682
        %v739 = vunpack.c.l.b16 %v696
        %v740 = vunpack.c.l.b16 %v706
        %v741 = vpack.c.b16 %v710, %v709
        %v742 = vpack.c.b16 %v712, %v711
        %v743 = vpack.c.b16 %v714, %v713
        %v744 = vpack.c.b16 %v716, %v715
        %v745 = vpack.c.b16 %v718, %v717
        %v746 = vpack.c.b16 %v720, %v719
        %v747 = vpack.c.b16 %v722, %v721
        %v748 = vpack.c.b16 %v724, %v723
        %v749 = vpack.c.b16 %v726, %v725
        %v750 = vpack.c.b16 %v728, %v727
        %v751 = vpack.c.b16 %v730, %v729
        %v752 = vpack.c.b16 %v732, %v731
        %v753 = vpack.c.b16 %v734, %v733
        %v754 = vpack.c.b16 %v736, %v735
        %v755 = vpack.c.b16 %v738, %v737
        %v756 = vpack.c.b16 %v740, %v739
        %vm757 = vcmask 31744
        %v759 = vsel %vm757, %v741, 0
        %v762 = vsel %vm757, %v742, 0
        %v765 = vsel %vm757, %v743, 0
        %v768 = vsel %vm757, %v744, 0
        %v771 = vsel %vm757, %v745, 0
        %v774 = vsel %vm757, %v746, 0
        %v777 = vsel %vm757, %v747, 0
        %v780 = vsel %vm757, %v748, 0
        %v783 = vsel %vm757, %v749, 0
        %v786 = vsel %vm757, %v750, 0
        %v789 = vsel %vm757, %v751, 0
        %v792 = vsel %vm757, %v752, 0
        %v795 = vsel %vm757, %v753, 0
        %v798 = vsel %vm757, %v754, 0
        %v801 = vsel %vm757, %v755, 0
        %v804 = vsel %vm757, %v756, 0
        %vm806 = vcmask 1041408
        %v808 = vsel %vm806, %v708, 0
        %810 = vmatprep.subr.bf16.mxu0 0
        %811 = vmatpush1.bf16.msra.mxu0 %v808
        %812 = vmatprep.subr.bf16.mxu0 0
        %813 = vmatpush1.bf16.msra.mxu0 0
        %814 = vmatprep.subr.bf16.mxu0 0
        %815 = vmatpush1.bf16.msra.mxu0 0
        %816 = vmatprep.subr.bf16.mxu0 0
        %817 = vmatpush1.bf16.msra.mxu0 0
        %818 = vmatprep.subr.bf16.mxu0 0
        %819 = vmatpush1.bf16.msra.mxu0 0
        %820 = vmatprep.subr.bf16.mxu0 0
        %821 = vmatpush1.bf16.msra.mxu0 0
        %822 = vmatprep.subr.bf16.mxu0 0
        %823 = vmatpush1.bf16.msra.mxu0 0
        %824 = vmatprep.subr.bf16.mxu0 0
        %825 = vmatpush1.bf16.msra.mxu0 0
        %826 = vmatprep.subr.bf16.mxu0 0
        %827 = vmatpush1.bf16.msra.mxu0 0
        %828 = vmatprep.subr.bf16.mxu0 0
        %829 = vmatpush1.bf16.msra.mxu0 0
        %830 = vmatprep.subr.bf16.mxu0 0
        %831 = vmatpush1.bf16.msra.mxu0 0
        %832 = vmatprep.subr.bf16.mxu0 0
        %833 = vmatpush1.bf16.msra.mxu0 0
        %834 = vmatprep.subr.bf16.mxu0 0
        %835 = vmatpush1.bf16.msra.mxu0 0
        %836 = vmatprep.subr.bf16.mxu0 0
        %837 = vmatpush1.bf16.msra.mxu0 0
        %838 = vmatprep.subr.bf16.mxu0 0
        %839 = vmatpush1.bf16.msra.mxu0 0
        %840 = vmatprep.subr.bf16.mxu0 0
        %841 = vmatpush1.bf16.msra.mxu0 0
        %842 = vmatprep.mubr.bf16.mxu0 0
        %843 = vmatmul.mubr.bf16.gmra.mrb[0].mxu0 %v759
        %v844 = vpop.f32.mrb[0].mxu0
        %v845 = vadd.f32 0.0, %v844
        %v846 = vpop.f32.mrb[0].mxu0
        %v847 = vpop.f32.mrb[0].mxu0
        %v848 = vadd.f32 0.0, %v847
        %v849 = vpop.f32.mrb[0].mxu0
        %850 = vmatprep.mubr.bf16.mxu0 0
        %851 = vmatmul.mubr.bf16.gmra.mrb[0].mxu0 %v762
        %v852 = vpop.f32.mrb[0].mxu0
        %v853 = vadd.f32 0.0, %v852
        %v854 = vpop.f32.mrb[0].mxu0
        %v855 = vpop.f32.mrb[0].mxu0
        %v856 = vadd.f32 0.0, %v855
        %v857 = vpop.f32.mrb[0].mxu0
        %858 = vmatprep.mubr.bf16.mxu0 0
        %859 = vmatmul.mubr.bf16.gmra.mrb[0].mxu0 %v765
        %v860 = vpop.f32.mrb[0].mxu0
        %v861 = vadd.f32 0.0, %v860
        %v862 = vpop.f32.mrb[0].mxu0
        %v863 = vpop.f32.mrb[0].mxu0
        %v864 = vadd.f32 0.0, %v863
        %v865 = vpop.f32.mrb[0].mxu0
        %866 = vmatprep.mubr.bf16.mxu0 0
        %867 = vmatmul.mubr.bf16.gmra.mrb[0].mxu0 %v768
        %v868 = vpop.f32.mrb[0].mxu0
        %v869 = vadd.f32 0.0, %v868
        %v870 = vpop.f32.mrb[0].mxu0
        %v871 = vpop.f32.mrb[0].mxu0
        %v872 = vadd.f32 0.0, %v871
        %v873 = vpop.f32.mrb[0].mxu0
        %874 = vmatprep.mubr.bf16.mxu0 0
        %875 = vmatmul.mubr.bf16.gmra.mrb[0].mxu0 %v771
        %v876 = vpop.f32.mrb[0].mxu0
        %v877 = vadd.f32 0.0, %v876
        %v878 = vpop.f32.mrb[0].mxu0
        %v879 = vpop.f32.mrb[0].mxu0
        %v880 = vadd.f32 0.0, %v879
        %v881 = vpop.f32.mrb[0].mxu0
        %882 = vmatprep.mubr.bf16.mxu0 0
        %883 = vmatmul.mubr.bf16.gmra.mrb[0].mxu0 %v774
        %v884 = vpop.f32.mrb[0].mxu0
        %v885 = vadd.f32 0.0, %v884
        %v886 = vpop.f32.mrb[0].mxu0
        %v887 = vpop.f32.mrb[0].mxu0
        %v888 = vadd.f32 0.0, %v887
        %v889 = vpop.f32.mrb[0].mxu0
        %890 = vmatprep.mubr.bf16.mxu0 0
        %891 = vmatmul.mubr.bf16.gmra.mrb[0].mxu0 %v777
        %v892 = vpop.f32.mrb[0].mxu0
        %v893 = vadd.f32 0.0, %v892
        %v894 = vpop.f32.mrb[0].mxu0
        %v895 = vpop.f32.mrb[0].mxu0
        %v896 = vadd.f32 0.0, %v895
        %v897 = vpop.f32.mrb[0].mxu0
        %898 = vmatprep.mubr.bf16.mxu0 0
        %899 = vmatmul.mubr.bf16.gmra.mrb[0].mxu0 %v780
        %v900 = vpop.f32.mrb[0].mxu0
        %v901 = vadd.f32 0.0, %v900
        %v902 = vpop.f32.mrb[0].mxu0
        %v903 = vpop.f32.mrb[0].mxu0
        %v904 = vadd.f32 0.0, %v903
        %v905 = vpop.f32.mrb[0].mxu0
        %906 = vmatprep.mubr.bf16.mxu0 0
        %907 = vmatmul.mubr.bf16.gmra.mrb[0].mxu0 %v783
        %v908 = vpop.f32.mrb[0].mxu0
        %v909 = vadd.f32 0.0, %v908
        %v910 = vpop.f32.mrb[0].mxu0
        %v911 = vpop.f32.mrb[0].mxu0
        %v912 = vadd.f32 0.0, %v911
        %v913 = vpop.f32.mrb[0].mxu0
        %914 = vmatprep.mubr.bf16.mxu0 0
        %915 = vmatmul.mubr.bf16.gmra.mrb[0].mxu0 %v786
        %v916 = vpop.f32.mrb[0].mxu0
        %v917 = vadd.f32 0.0, %v916
        %v918 = vpop.f32.mrb[0].mxu0
        %v919 = vpop.f32.mrb[0].mxu0
        %v920 = vadd.f32 0.0, %v919
        %v921 = vpop.f32.mrb[0].mxu0
        %922 = vmatprep.mubr.bf16.mxu0 0
        %923 = vmatmul.mubr.bf16.gmra.mrb[0].mxu0 %v789
        %v924 = vpop.f32.mrb[0].mxu0
        %v925 = vadd.f32 0.0, %v924
        %v926 = vpop.f32.mrb[0].mxu0
        %v927 = vpop.f32.mrb[0].mxu0
        %v928 = vadd.f32 0.0, %v927
        %v929 = vpop.f32.mrb[0].mxu0
        %930 = vmatprep.mubr.bf16.mxu0 0
        %931 = vmatmul.mubr.bf16.gmra.mrb[0].mxu0 %v792
        %v932 = vpop.f32.mrb[0].mxu0
        %v933 = vadd.f32 0.0, %v932
        %v934 = vpop.f32.mrb[0].mxu0
        %v935 = vpop.f32.mrb[0].mxu0
        %v936 = vadd.f32 0.0, %v935
        %v937 = vpop.f32.mrb[0].mxu0
        %938 = vmatprep.mubr.bf16.mxu0 0
        %939 = vmatmul.mubr.bf16.gmra.mrb[0].mxu0 %v795
        %v940 = vpop.f32.mrb[0].mxu0
        %v941 = vadd.f32 0.0, %v940
        %v942 = vpop.f32.mrb[0].mxu0
        %v943 = vpop.f32.mrb[0].mxu0
        %v944 = vadd.f32 0.0, %v943
        %v945 = vpop.f32.mrb[0].mxu0
        %946 = vmatprep.mubr.bf16.mxu0 0
        %947 = vmatmul.mubr.bf16.gmra.mrb[0].mxu0 %v798
        %v948 = vpop.f32.mrb[0].mxu0
        %v949 = vadd.f32 0.0, %v948
        %v950 = vpop.f32.mrb[0].mxu0
        %v951 = vpop.f32.mrb[0].mxu0
        %v952 = vadd.f32 0.0, %v951
        %v953 = vpop.f32.mrb[0].mxu0
        %954 = vmatprep.mubr.bf16.mxu0 0
        %955 = vmatmul.mubr.bf16.gmra.mrb[0].mxu0 %v801
        %v956 = vpop.f32.mrb[0].mxu0
        %v957 = vadd.f32 0.0, %v956
        %v958 = vpop.f32.mrb[0].mxu0
        %v959 = vpop.f32.mrb[0].mxu0
        %v960 = vadd.f32 0.0, %v959
        %v961 = vpop.f32.mrb[0].mxu0
        %962 = vmatprep.mubr.bf16.mxu0 0
        %963 = vmatmul.mubr.bf16.gmra.mrb[0].mxu0 %v804
        %v964 = vpop.f32.mrb[0].mxu0
        %v965 = vadd.f32 0.0, %v964
        %v966 = vpop.f32.mrb[0].mxu0
        %v967 = vpop.f32.mrb[0].mxu0
        %v968 = vadd.f32 0.0, %v967
        %v969 = vpop.f32.mrb[0].mxu0
        %970 = vdwg.mxu0
        %v1003 = vunpack.c.l.b16 %v271
        %v1004 = vunpack.c.l.b16 %v272
        %v1005 = vunpack.c.l.b16 %v273
        %v1006 = vunpack.c.l.b16 %v274
        %v1007 = vunpack.c.l.b16 %v275
        %v1008 = vunpack.c.l.b16 %v276
        %v1009 = vunpack.c.l.b16 %v277
        %v1010 = vunpack.c.l.b16 %v278
        %v1011 = vunpack.c.l.b16 %v279
        %v1012 = vunpack.c.l.b16 %v280
        %v1013 = vunpack.c.l.b16 %v281
        %v1014 = vunpack.c.l.b16 %v282
        %v1015 = vunpack.c.l.b16 %v283
        %v1016 = vunpack.c.l.b16 %v284
        %v1017 = vunpack.c.l.b16 %v285
        %v1018 = vunpack.c.l.b16 %v286
        %v1019 = vunpack.c.l.b16 %v287
        %v1020 = vunpack.c.l.b16 %v288
        %v1021 = vunpack.c.l.b16 %v289
        %v1022 = vunpack.c.l.b16 %v290
        %v1023 = vunpack.c.l.b16 %v291
        %v1024 = vunpack.c.l.b16 %v292
        %v1025 = vunpack.c.l.b16 %v293
        %v1026 = vunpack.c.l.b16 %v294
        %v1027 = vunpack.c.l.b16 %v295
        %v1028 = vunpack.c.l.b16 %v296
        %v1029 = vunpack.c.l.b16 %v297
        %v1030 = vunpack.c.l.b16 %v298
        %v1031 = vunpack.c.l.b16 %v299
        %v1032 = vunpack.c.l.b16 %v300
        %v1033 = vunpack.c.l.b16 %v301
        %v1034 = vunpack.c.l.b16 %v302
        %v1035 = vpack.c.b16 %v1004, %v1003
        %v1036 = vpack.c.b16 %v1006, %v1005
        %v1037 = vpack.c.b16 %v1008, %v1007
        %v1038 = vpack.c.b16 %v1010, %v1009
        %v1039 = vpack.c.b16 %v1012, %v1011
        %v1040 = vpack.c.b16 %v1014, %v1013
        %v1041 = vpack.c.b16 %v1016, %v1015
        %v1042 = vpack.c.b16 %v1018, %v1017
        %v1043 = vpack.c.b16 %v1020, %v1019
        %v1044 = vpack.c.b16 %v1022, %v1021
        %v1045 = vpack.c.b16 %v1024, %v1023
        %v1046 = vpack.c.b16 %v1026, %v1025
        %v1047 = vpack.c.b16 %v1028, %v1027
        %v1048 = vpack.c.b16 %v1030, %v1029
        %v1049 = vpack.c.b16 %v1032, %v1031
        %v1050 = vpack.c.b16 %v1034, %v1033
        %v1052 = vsel %vm757, %v1035, 0
        %v1055 = vsel %vm757, %v1036, 0
        %v1058 = vsel %vm757, %v1037, 0
        %v1061 = vsel %vm757, %v1038, 0
        %v1064 = vsel %vm757, %v1039, 0
        %v1067 = vsel %vm757, %v1040, 0
        %v1070 = vsel %vm757, %v1041, 0
        %v1073 = vsel %vm757, %v1042, 0
        %v1076 = vsel %vm757, %v1043, 0
        %v1079 = vsel %vm757, %v1044, 0
        %v1082 = vsel %vm757, %v1045, 0
        %v1085 = vsel %vm757, %v1046, 0
        %v1088 = vsel %vm757, %v1047, 0
        %v1091 = vsel %vm757, %v1048, 0
        %v1094 = vsel %vm757, %v1049, 0
        %v1097 = vsel %vm757, %v1050, 0
        %v1100 = vsel %vm806, %v303, 0
        %1102 = vmatprep.subr.bf16.mxu0 0
        %1103 = vmatpush1.bf16.msra.mxu0 %v1100
        %1104 = vmatprep.subr.bf16.mxu0 0
        %1105 = vmatpush1.bf16.msra.mxu0 0
        %1106 = vmatprep.subr.bf16.mxu0 0
        %1107 = vmatpush1.bf16.msra.mxu0 0
        %1108 = vmatprep.subr.bf16.mxu0 0
        %1109 = vmatpush1.bf16.msra.mxu0 0
        %1110 = vmatprep.subr.bf16.mxu0 0
        %1111 = vmatpush1.bf16.msra.mxu0 0
        %1112 = vmatprep.subr.bf16.mxu0 0
        %1113 = vmatpush1.bf16.msra.mxu0 0
        %1114 = vmatprep.subr.bf16.mxu0 0
        %1115 = vmatpush1.bf16.msra.mxu0 0
        %1116 = vmatprep.subr.bf16.mxu0 0
        %1117 = vmatpush1.bf16.msra.mxu0 0
        %1118 = vmatprep.subr.bf16.mxu0 0
        %1119 = vmatpush1.bf16.msra.mxu0 0
        %1120 = vmatprep.subr.bf16.mxu0 0
        %1121 = vmatpush1.bf16.msra.mxu0 0
        %1122 = vmatprep.subr.bf16.mxu0 0
        %1123 = vmatpush1.bf16.msra.mxu0 0
        %1124 = vmatprep.subr.bf16.mxu0 0
        %1125 = vmatpush1.bf16.msra.mxu0 0
        %1126 = vmatprep.subr.bf16.mxu0 0
        %1127 = vmatpush1.bf16.msra.mxu0 0
        %1128 = vmatprep.subr.bf16.mxu0 0
        %1129 = vmatpush1.bf16.msra.mxu0 0
        %1130 = vmatprep.subr.bf16.mxu0 0
        %1131 = vmatpush1.bf16.msra.mxu0 0
        %1132 = vmatprep.subr.bf16.mxu0 0
        %1133 = vmatpush1.bf16.msra.mxu0 0
        %1134 = vmatprep.mubr.bf16.mxu0 0
        %1135 = vmatmul.mubr.bf16.gmra.mrb[0].mxu0 %v1052
        %v1136 = vpop.f32.mrb[0].mxu0
        %v1137 = vadd.f32 %v845, %v1136
        %v1138 = vpop.f32.mrb[0].mxu0
        %v1139 = vpop.f32.mrb[0].mxu0
        %v1140 = vadd.f32 %v848, %v1139
        %v1141 = vpop.f32.mrb[0].mxu0
        %1142 = vmatprep.mubr.bf16.mxu0 0
        %1143 = vmatmul.mubr.bf16.gmra.mrb[0].mxu0 %v1055
        %v1144 = vpop.f32.mrb[0].mxu0
        %v1145 = vadd.f32 %v853, %v1144
        %v1146 = vpop.f32.mrb[0].mxu0
        %v1147 = vpop.f32.mrb[0].mxu0
        %v1148 = vadd.f32 %v856, %v1147
        %v1149 = vpop.f32.mrb[0].mxu0
        %1150 = vmatprep.mubr.bf16.mxu0 0
        %1151 = vmatmul.mubr.bf16.gmra.mrb[0].mxu0 %v1058
        %v1152 = vpop.f32.mrb[0].mxu0
        %v1153 = vadd.f32 %v861, %v1152
        %v1154 = vpop.f32.mrb[0].mxu0
        %v1155 = vpop.f32.mrb[0].mxu0
        %v1156 = vadd.f32 %v864, %v1155
        %v1157 = vpop.f32.mrb[0].mxu0
        %1158 = vmatprep.mubr.bf16.mxu0 0
        %1159 = vmatmul.mubr.bf16.gmra.mrb[0].mxu0 %v1061
        %v1160 = vpop.f32.mrb[0].mxu0
        %v1161 = vadd.f32 %v869, %v1160
        %v1162 = vpop.f32.mrb[0].mxu0
        %v1163 = vpop.f32.mrb[0].mxu0
        %v1164 = vadd.f32 %v872, %v1163
        %v1165 = vpop.f32.mrb[0].mxu0
        %1166 = vmatprep.mubr.bf16.mxu0 0
        %1167 = vmatmul.mubr.bf16.gmra.mrb[0].mxu0 %v1064
        %v1168 = vpop.f32.mrb[0].mxu0
        %v1169 = vadd.f32 %v877, %v1168
        %v1170 = vpop.f32.mrb[0].mxu0
        %v1171 = vpop.f32.mrb[0].mxu0
        %v1172 = vadd.f32 %v880, %v1171
        %v1173 = vpop.f32.mrb[0].mxu0
        %1174 = vmatprep.mubr.bf16.mxu0 0
        %1175 = vmatmul.mubr.bf16.gmra.mrb[0].mxu0 %v1067
        %v1176 = vpop.f32.mrb[0].mxu0
        %v1177 = vadd.f32 %v885, %v1176
        %v1178 = vpop.f32.mrb[0].mxu0
        %v1179 = vpop.f32.mrb[0].mxu0
        %v1180 = vadd.f32 %v888, %v1179
        %v1181 = vpop.f32.mrb[0].mxu0
        %1182 = vmatprep.mubr.bf16.mxu0 0
        %1183 = vmatmul.mubr.bf16.gmra.mrb[0].mxu0 %v1070
        %v1184 = vpop.f32.mrb[0].mxu0
        %v1185 = vadd.f32 %v893, %v1184
        %v1186 = vpop.f32.mrb[0].mxu0
        %v1187 = vpop.f32.mrb[0].mxu0
        %v1188 = vadd.f32 %v896, %v1187
        %v1189 = vpop.f32.mrb[0].mxu0
        %1190 = vmatprep.mubr.bf16.mxu0 0
        %1191 = vmatmul.mubr.bf16.gmra.mrb[0].mxu0 %v1073
        %v1192 = vpop.f32.mrb[0].mxu0
        %v1193 = vadd.f32 %v901, %v1192
        %v1194 = vpop.f32.mrb[0].mxu0
        %v1195 = vpop.f32.mrb[0].mxu0
        %v1196 = vadd.f32 %v904, %v1195
        %v1197 = vpop.f32.mrb[0].mxu0
        %1198 = vmatprep.mubr.bf16.mxu0 0
        %1199 = vmatmul.mubr.bf16.gmra.mrb[0].mxu0 %v1076
        %v1200 = vpop.f32.mrb[0].mxu0
        %v1201 = vadd.f32 %v909, %v1200
        %v1202 = vpop.f32.mrb[0].mxu0
        %v1203 = vpop.f32.mrb[0].mxu0
        %v1204 = vadd.f32 %v912, %v1203
        %v1205 = vpop.f32.mrb[0].mxu0
        %1206 = vmatprep.mubr.bf16.mxu0 0
        %1207 = vmatmul.mubr.bf16.gmra.mrb[0].mxu0 %v1079
        %v1208 = vpop.f32.mrb[0].mxu0
        %v1209 = vadd.f32 %v917, %v1208
        %v1210 = vpop.f32.mrb[0].mxu0
        %v1211 = vpop.f32.mrb[0].mxu0
        %v1212 = vadd.f32 %v920, %v1211
        %v1213 = vpop.f32.mrb[0].mxu0
        %1214 = vmatprep.mubr.bf16.mxu0 0
        %1215 = vmatmul.mubr.bf16.gmra.mrb[0].mxu0 %v1082
        %v1216 = vpop.f32.mrb[0].mxu0
        %v1217 = vadd.f32 %v925, %v1216
        %v1218 = vpop.f32.mrb[0].mxu0
        %v1219 = vpop.f32.mrb[0].mxu0
        %v1220 = vadd.f32 %v928, %v1219
        %v1221 = vpop.f32.mrb[0].mxu0
        %1222 = vmatprep.mubr.bf16.mxu0 0
        %1223 = vmatmul.mubr.bf16.gmra.mrb[0].mxu0 %v1085
        %v1224 = vpop.f32.mrb[0].mxu0
        %v1225 = vadd.f32 %v933, %v1224
        %v1226 = vpop.f32.mrb[0].mxu0
        %v1227 = vpop.f32.mrb[0].mxu0
        %v1228 = vadd.f32 %v936, %v1227
        %v1229 = vpop.f32.mrb[0].mxu0
        %1230 = vmatprep.mubr.bf16.mxu0 0
        %1231 = vmatmul.mubr.bf16.gmra.mrb[0].mxu0 %v1088
        %v1232 = vpop.f32.mrb[0].mxu0
        %v1233 = vadd.f32 %v941, %v1232
        %v1234 = vpop.f32.mrb[0].mxu0
        %v1235 = vpop.f32.mrb[0].mxu0
        %v1236 = vadd.f32 %v944, %v1235
        %v1237 = vpop.f32.mrb[0].mxu0
        %1238 = vmatprep.mubr.bf16.mxu0 0
        %1239 = vmatmul.mubr.bf16.gmra.mrb[0].mxu0 %v1091
        %v1240 = vpop.f32.mrb[0].mxu0
        %v1241 = vadd.f32 %v949, %v1240
        %v1242 = vpop.f32.mrb[0].mxu0
        %v1243 = vpop.f32.mrb[0].mxu0
        %v1244 = vadd.f32 %v952, %v1243
        %v1245 = vpop.f32.mrb[0].mxu0
        %1246 = vmatprep.mubr.bf16.mxu0 0
        %1247 = vmatmul.mubr.bf16.gmra.mrb[0].mxu0 %v1094
        %v1248 = vpop.f32.mrb[0].mxu0
        %v1249 = vadd.f32 %v957, %v1248
        %v1250 = vpop.f32.mrb[0].mxu0
        %v1251 = vpop.f32.mrb[0].mxu0
        %v1252 = vadd.f32 %v960, %v1251
        %v1253 = vpop.f32.mrb[0].mxu0
        %1254 = vmatprep.mubr.bf16.mxu0 0
        %1255 = vmatmul.mubr.bf16.gmra.mrb[0].mxu0 %v1097
        %v1256 = vpop.f32.mrb[0].mxu0
        %v1257 = vadd.f32 %v965, %v1256
        %v1258 = vpop.f32.mrb[0].mxu0
        %v1259 = vpop.f32.mrb[0].mxu0
        %v1260 = vadd.f32 %v968, %v1259
        %v1261 = vpop.f32.mrb[0].mxu0
        %1262 = vdwg.mxu0
        %v1263 = vld [vmem:[%s270] sm:$0xe]
        %v1264 = vld [vmem:[%s270 + $0xc] sm:$0xe]
        %v1265 = vld [vmem:[%s270 + $0x18] sm:$0xe]
        %v1266 = vld [vmem:[%s270 + $0x24] sm:$0xe]
        %v1267 = vld [vmem:[%s270 + $0x30] sm:$0xe]
        %v1268 = vld [vmem:[%s270 + $0x3c] sm:$0xe]
        %v1269 = vld [vmem:[%s270 + $0x48] sm:$0xe]
        %v1270 = vld [vmem:[%s270 + $0x54] sm:$0xe]
        %v1271 = vld [vmem:[%s270 + $0x60] sm:$0xe]
        %v1272 = vld [vmem:[%s270 + $0x6c] sm:$0xe]
        %v1273 = vld [vmem:[%s270 + $0x78] sm:$0xe]
        %v1274 = vld [vmem:[%s270 + $0x84] sm:$0xe]
        %v1275 = vld [vmem:[%s270 + $0x90] sm:$0xe]
        %v1276 = vld [vmem:[%s270 + $0x9c] sm:$0xe]
        %v1277 = vld [vmem:[%s270 + $0xa8] sm:$0xe]
        %v1278 = vld [vmem:[%s270 + $0xb4] sm:$0xe]
        %vm1311 = vcmask 1042432
        %vm1312 = vcmask 1046532
        %vm1313 = vmor %vm1311, %vm1312
        %v1314 = vrot.slane %v1263, 5
        %v1315 = vrot.slane %v1314, 4
        %v1316 = vrot.slane %v272, 5
        %v1317 = vsel %vm1313, %v1315, %v1316
        %v1318 = vrot.slane %v1316, 4
        %v1319 = vrot.slane %v304, 5
        %v1320 = vsel %vm1313, %v1318, %v1319
        %v1321 = vrot.slane %v1264, 5
        %v1322 = vrot.slane %v1321, 4
        %v1323 = vrot.slane %v274, 5
        %v1324 = vsel %vm1313, %v1322, %v1323
        %v1325 = vrot.slane %v1323, 4
        %v1326 = vrot.slane %v305, 5
        %v1327 = vsel %vm1313, %v1325, %v1326
        %v1328 = vrot.slane %v1265, 5
        %v1329 = vrot.slane %v1328, 4
        %v1330 = vrot.slane %v276, 5
        %v1331 = vsel %vm1313, %v1329, %v1330
        %v1332 = vrot.slane %v1330, 4
        %v1333 = vrot.slane %v306, 5
        %v1334 = vsel %vm1313, %v1332, %v1333
        %v1335 = vrot.slane %v1266, 5
        %v1336 = vrot.slane %v1335, 4
        %v1337 = vrot.slane %v278, 5
        %v1338 = vsel %vm1313, %v1336, %v1337
        %v1339 = vrot.slane %v1337, 4
        %v1340 = vrot.slane %v307, 5
        %v1341 = vsel %vm1313, %v1339, %v1340
        %v1342 = vrot.slane %v1267, 5
        %v1343 = vrot.slane %v1342, 4
        %v1344 = vrot.slane %v280, 5
        %v1345 = vsel %vm1313, %v1343, %v1344
        %v1346 = vrot.slane %v1344, 4
        %v1347 = vrot.slane %v308, 5
        %v1348 = vsel %vm1313, %v1346, %v1347
        %v1349 = vrot.slane %v1268, 5
        %v1350 = vrot.slane %v1349, 4
        %v1351 = vrot.slane %v282, 5
        %v1352 = vsel %vm1313, %v1350, %v1351
        %v1353 = vrot.slane %v1351, 4
        %v1354 = vrot.slane %v309, 5
        %v1355 = vsel %vm1313, %v1353, %v1354
        %v1356 = vrot.slane %v1269, 5
        %v1357 = vrot.slane %v1356, 4
        %v1358 = vrot.slane %v284, 5
        %v1359 = vsel %vm1313, %v1357, %v1358
        %v1360 = vrot.slane %v1358, 4
        %v1361 = vrot.slane %v310, 5
        %v1362 = vsel %vm1313, %v1360, %v1361
        %v1363 = vrot.slane %v1270, 5
        %v1364 = vrot.slane %v1363, 4
        %v1365 = vrot.slane %v286, 5
        %v1366 = vsel %vm1313, %v1364, %v1365
        %v1367 = vrot.slane %v1365, 4
        %v1368 = vrot.slane %v311, 5
        %v1369 = vsel %vm1313, %v1367, %v1368
        %v1370 = vrot.slane %v1271, 5
        %v1371 = vrot.slane %v1370, 4
        %v1372 = vrot.slane %v288, 5
        %v1373 = vsel %vm1313, %v1371, %v1372
        %v1374 = vrot.slane %v1372, 4
        %v1375 = vrot.slane %v312, 5
        %v1376 = vsel %vm1313, %v1374, %v1375
        %v1377 = vrot.slane %v1272, 5
        %v1378 = vrot.slane %v1377, 4
        %v1379 = vrot.slane %v290, 5
        %v1380 = vsel %vm1313, %v1378, %v1379
        %v1381 = vrot.slane %v1379, 4
        %v1382 = vrot.slane %v313, 5
        %v1383 = vsel %vm1313, %v1381, %v1382
        %v1384 = vrot.slane %v1273, 5
        %v1385 = vrot.slane %v1384, 4
        %v1386 = vrot.slane %v292, 5
        %v1387 = vsel %vm1313, %v1385, %v1386
        %v1388 = vrot.slane %v1386, 4
        %v1389 = vrot.slane %v314, 5
        %v1390 = vsel %vm1313, %v1388, %v1389
        %v1391 = vrot.slane %v1274, 5
        %v1392 = vrot.slane %v1391, 4
        %v1393 = vrot.slane %v294, 5
        %v1394 = vsel %vm1313, %v1392, %v1393
        %v1395 = vrot.slane %v1393, 4
        %v1396 = vrot.slane %v315, 5
        %v1397 = vsel %vm1313, %v1395, %v1396
        %v1398 = vrot.slane %v1275, 5
        %v1399 = vrot.slane %v1398, 4
        %v1400 = vrot.slane %v296, 5
        %v1401 = vsel %vm1313, %v1399, %v1400
        %v1402 = vrot.slane %v1400, 4
        %v1403 = vrot.slane %v316, 5
        %v1404 = vsel %vm1313, %v1402, %v1403
        %v1405 = vrot.slane %v1276, 5
        %v1406 = vrot.slane %v1405, 4
        %v1407 = vrot.slane %v298, 5
        %v1408 = vsel %vm1313, %v1406, %v1407
        %v1409 = vrot.slane %v1407, 4
        %v1410 = vrot.slane %v317, 5
        %v1411 = vsel %vm1313, %v1409, %v1410
        %v1412 = vrot.slane %v1277, 5
        %v1413 = vrot.slane %v1412, 4
        %v1414 = vrot.slane %v300, 5
        %v1415 = vsel %vm1313, %v1413, %v1414
        %v1416 = vrot.slane %v1414, 4
        %v1417 = vrot.slane %v318, 5
        %v1418 = vsel %vm1313, %v1416, %v1417
        %v1419 = vrot.slane %v1278, 5
        %v1420 = vrot.slane %v1419, 4
        %v1421 = vrot.slane %v302, 5
        %v1422 = vsel %vm1313, %v1420, %v1421
        %v1423 = vrot.slane %v1421, 4
        %v1424 = vrot.slane %v319, 5
        %v1425 = vsel %vm1313, %v1423, %v1424
        %s1426 = scalar_lea.vmem %s257, 4
        %v1427 = vld [vmem:[%s1426] sm:$0x3]
        %v1428 = vunpack.c.l.b16 %v1317
        %v1429 = vunpack.c.l.b16 %v1320
        %v1430 = vunpack.c.l.b16 %v1324
        %v1431 = vunpack.c.l.b16 %v1327
        %v1432 = vunpack.c.l.b16 %v1331
        %v1433 = vunpack.c.l.b16 %v1334
        %v1434 = vunpack.c.l.b16 %v1338
        %v1435 = vunpack.c.l.b16 %v1341
        %v1436 = vunpack.c.l.b16 %v1345
        %v1437 = vunpack.c.l.b16 %v1348
        %v1438 = vunpack.c.l.b16 %v1352
        %v1439 = vunpack.c.l.b16 %v1355
        %v1440 = vunpack.c.l.b16 %v1359
        %v1441 = vunpack.c.l.b16 %v1362
        %v1442 = vunpack.c.l.b16 %v1366
        %v1443 = vunpack.c.l.b16 %v1369
        %v1444 = vunpack.c.l.b16 %v1373
        %v1445 = vunpack.c.l.b16 %v1376
        %v1446 = vunpack.c.l.b16 %v1380
        %v1447 = vunpack.c.l.b16 %v1383
        %v1448 = vunpack.c.l.b16 %v1387
        %v1449 = vunpack.c.l.b16 %v1390
        %v1450 = vunpack.c.l.b16 %v1394
        %v1451 = vunpack.c.l.b16 %v1397
        %v1452 = vunpack.c.l.b16 %v1401
        %v1453 = vunpack.c.l.b16 %v1404
        %v1454 = vunpack.c.l.b16 %v1408
        %v1455 = vunpack.c.l.b16 %v1411
        %v1456 = vunpack.c.l.b16 %v1415
        %v1457 = vunpack.c.l.b16 %v1418
        %v1458 = vunpack.c.l.b16 %v1422
        %v1459 = vunpack.c.l.b16 %v1425
        %v1460 = vpack.c.b16 %v1429, %v1428
        %v1461 = vpack.c.b16 %v1431, %v1430
        %v1462 = vpack.c.b16 %v1433, %v1432
        %v1463 = vpack.c.b16 %v1435, %v1434
        %v1464 = vpack.c.b16 %v1437, %v1436
        %v1465 = vpack.c.b16 %v1439, %v1438
        %v1466 = vpack.c.b16 %v1441, %v1440
        %v1467 = vpack.c.b16 %v1443, %v1442
        %v1468 = vpack.c.b16 %v1445, %v1444
        %v1469 = vpack.c.b16 %v1447, %v1446
        %v1470 = vpack.c.b16 %v1449, %v1448
        %v1471 = vpack.c.b16 %v1451, %v1450
        %v1472 = vpack.c.b16 %v1453, %v1452
        %v1473 = vpack.c.b16 %v1455, %v1454
        %v1474 = vpack.c.b16 %v1457, %v1456
        %v1475 = vpack.c.b16 %v1459, %v1458
        %v1477 = vsel %vm757, %v1460, 0
        %v1480 = vsel %vm757, %v1461, 0
        %v1483 = vsel %vm757, %v1462, 0
        %v1486 = vsel %vm757, %v1463, 0
        %v1489 = vsel %vm757, %v1464, 0
        %v1492 = vsel %vm757, %v1465, 0
        %v1495 = vsel %vm757, %v1466, 0
        %v1498 = vsel %vm757, %v1467, 0
        %v1501 = vsel %vm757, %v1468, 0
        %v1504 = vsel %vm757, %v1469, 0
        %v1507 = vsel %vm757, %v1470, 0
        %v1510 = vsel %vm757, %v1471, 0
        %v1513 = vsel %vm757, %v1472, 0
        %v1516 = vsel %vm757, %v1473, 0
        %v1519 = vsel %vm757, %v1474, 0
        %v1522 = vsel %vm757, %v1475, 0
        %v1525 = vsel %vm806, %v1427, 0
        %1527 = vmatprep.subr.bf16.mxu0 0
        %1528 = vmatpush1.bf16.msra.mxu0 %v1525
        %1529 = vmatprep.subr.bf16.mxu0 0
        %1530 = vmatpush1.bf16.msra.mxu0 0
        %1531 = vmatprep.subr.bf16.mxu0 0
        %1532 = vmatpush1.bf16.msra.mxu0 0
        %1533 = vmatprep.subr.bf16.mxu0 0
        %1534 = vmatpush1.bf16.msra.mxu0 0
        %1535 = vmatprep.subr.bf16.mxu0 0
        %1536 = vmatpush1.bf16.msra.mxu0 0
        %1537 = vmatprep.subr.bf16.mxu0 0
        %1538 = vmatpush1.bf16.msra.mxu0 0
        %1539 = vmatprep.subr.bf16.mxu0 0
        %1540 = vmatpush1.bf16.msra.mxu0 0
        %1541 = vmatprep.subr.bf16.mxu0 0
        %1542 = vmatpush1.bf16.msra.mxu0 0
        %1543 = vmatprep.subr.bf16.mxu0 0
        %1544 = vmatpush1.bf16.msra.mxu0 0
        %1545 = vmatprep.subr.bf16.mxu0 0
        %1546 = vmatpush1.bf16.msra.mxu0 0
        %1547 = vmatprep.subr.bf16.mxu0 0
        %1548 = vmatpush1.bf16.msra.mxu0 0
        %1549 = vmatprep.subr.bf16.mxu0 0
        %1550 = vmatpush1.bf16.msra.mxu0 0
        %1551 = vmatprep.subr.bf16.mxu0 0
        %1552 = vmatpush1.bf16.msra.mxu0 0
        %1553 = vmatprep.subr.bf16.mxu0 0
        %1554 = vmatpush1.bf16.msra.mxu0 0
        %1555 = vmatprep.subr.bf16.mxu0 0
        %1556 = vmatpush1.bf16.msra.mxu0 0
        %1557 = vmatprep.subr.bf16.mxu0 0
        %1558 = vmatpush1.bf16.msra.mxu0 0
        %1559 = vmatprep.mubr.bf16.mxu0 0
        %1560 = vmatmul.mubr.bf16.gmra.mrb[0].mxu0 %v1477
        %v1561 = vpop.f32.mrb[0].mxu0
        %v1562 = vadd.f32 0.0, %v1561
        %v1563 = vpop.f32.mrb[0].mxu0
        %v1564 = vpop.f32.mrb[0].mxu0
        %v1565 = vadd.f32 0.0, %v1564
        %v1566 = vpop.f32.mrb[0].mxu0
        %1567 = vmatprep.mubr.bf16.mxu0 0
        %1568 = vmatmul.mubr.bf16.gmra.mrb[0].mxu0 %v1480
        %v1569 = vpop.f32.mrb[0].mxu0
        %v1570 = vadd.f32 0.0, %v1569
        %v1571 = vpop.f32.mrb[0].mxu0
        %v1572 = vpop.f32.mrb[0].mxu0
        %v1573 = vadd.f32 0.0, %v1572
        %v1574 = vpop.f32.mrb[0].mxu0
        %1575 = vmatprep.mubr.bf16.mxu0 0
        %1576 = vmatmul.mubr.bf16.gmra.mrb[0].mxu0 %v1483
        %v1577 = vpop.f32.mrb[0].mxu0
        %v1578 = vadd.f32 0.0, %v1577
        %v1579 = vpop.f32.mrb[0].mxu0
        %v1580 = vpop.f32.mrb[0].mxu0
        %v1581 = vadd.f32 0.0, %v1580
        %v1582 = vpop.f32.mrb[0].mxu0
        %1583 = vmatprep.mubr.bf16.mxu0 0
        %1584 = vmatmul.mubr.bf16.gmra.mrb[0].mxu0 %v1486
        %v1585 = vpop.f32.mrb[0].mxu0
        %v1586 = vadd.f32 0.0, %v1585
        %v1587 = vpop.f32.mrb[0].mxu0
        %v1588 = vpop.f32.mrb[0].mxu0
        %v1589 = vadd.f32 0.0, %v1588
        %v1590 = vpop.f32.mrb[0].mxu0
        %1591 = vmatprep.mubr.bf16.mxu0 0
        %1592 = vmatmul.mubr.bf16.gmra.mrb[0].mxu0 %v1489
        %v1593 = vpop.f32.mrb[0].mxu0
        %v1594 = vadd.f32 0.0, %v1593
        %v1595 = vpop.f32.mrb[0].mxu0
        %v1596 = vpop.f32.mrb[0].mxu0
        %v1597 = vadd.f32 0.0, %v1596
        %v1598 = vpop.f32.mrb[0].mxu0
        %1599 = vmatprep.mubr.bf16.mxu0 0
        %1600 = vmatmul.mubr.bf16.gmra.mrb[0].mxu0 %v1492
        %v1601 = vpop.f32.mrb[0].mxu0
        %v1602 = vadd.f32 0.0, %v1601
        %v1603 = vpop.f32.mrb[0].mxu0
        %v1604 = vpop.f32.mrb[0].mxu0
        %v1605 = vadd.f32 0.0, %v1604
        %v1606 = vpop.f32.mrb[0].mxu0
        %1607 = vmatprep.mubr.bf16.mxu0 0
        %1608 = vmatmul.mubr.bf16.gmra.mrb[0].mxu0 %v1495
        %v1609 = vpop.f32.mrb[0].mxu0
        %v1610 = vadd.f32 0.0, %v1609
        %v1611 = vpop.f32.mrb[0].mxu0
        %v1612 = vpop.f32.mrb[0].mxu0
        %v1613 = vadd.f32 0.0, %v1612
        %v1614 = vpop.f32.mrb[0].mxu0
        %1615 = vmatprep.mubr.bf16.mxu0 0
        %1616 = vmatmul.mubr.bf16.gmra.mrb[0].mxu0 %v1498
        %v1617 = vpop.f32.mrb[0].mxu0
        %v1618 = vadd.f32 0.0, %v1617
        %v1619 = vpop.f32.mrb[0].mxu0
        %v1620 = vpop.f32.mrb[0].mxu0
        %v1621 = vadd.f32 0.0, %v1620
        %v1622 = vpop.f32.mrb[0].mxu0
        %1623 = vmatprep.mubr.bf16.mxu0 0
        %1624 = vmatmul.mubr.bf16.gmra.mrb[0].mxu0 %v1501
        %v1625 = vpop.f32.mrb[0].mxu0
        %v1626 = vadd.f32 0.0, %v1625
        %v1627 = vpop.f32.mrb[0].mxu0
        %v1628 = vpop.f32.mrb[0].mxu0
        %v1629 = vadd.f32 0.0, %v1628
        %v1630 = vpop.f32.mrb[0].mxu0
        %1631 = vmatprep.mubr.bf16.mxu0 0
        %1632 = vmatmul.mubr.bf16.gmra.mrb[0].mxu0 %v1504
        %v1633 = vpop.f32.mrb[0].mxu0
        %v1634 = vadd.f32 0.0, %v1633
        %v1635 = vpop.f32.mrb[0].mxu0
        %v1636 = vpop.f32.mrb[0].mxu0
        %v1637 = vadd.f32 0.0, %v1636
        %v1638 = vpop.f32.mrb[0].mxu0
        %1639 = vmatprep.mubr.bf16.mxu0 0
        %1640 = vmatmul.mubr.bf16.gmra.mrb[0].mxu0 %v1507
        %v1641 = vpop.f32.mrb[0].mxu0
        %v1642 = vadd.f32 0.0, %v1641
        %v1643 = vpop.f32.mrb[0].mxu0
        %v1644 = vpop.f32.mrb[0].mxu0
        %v1645 = vadd.f32 0.0, %v1644
        %v1646 = vpop.f32.mrb[0].mxu0
        %1647 = vmatprep.mubr.bf16.mxu0 0
        %1648 = vmatmul.mubr.bf16.gmra.mrb[0].mxu0 %v1510
        %v1649 = vpop.f32.mrb[0].mxu0
        %v1650 = vadd.f32 0.0, %v1649
        %v1651 = vpop.f32.mrb[0].mxu0
        %v1652 = vpop.f32.mrb[0].mxu0
        %v1653 = vadd.f32 0.0, %v1652
        %v1654 = vpop.f32.mrb[0].mxu0
        %1655 = vmatprep.mubr.bf16.mxu0 0
        %1656 = vmatmul.mubr.bf16.gmra.mrb[0].mxu0 %v1513
        %v1657 = vpop.f32.mrb[0].mxu0
        %v1658 = vadd.f32 0.0, %v1657
        %v1659 = vpop.f32.mrb[0].mxu0
        %v1660 = vpop.f32.mrb[0].mxu0
        %v1661 = vadd.f32 0.0, %v1660
        %v1662 = vpop.f32.mrb[0].mxu0
        %1663 = vmatprep.mubr.bf16.mxu0 0
        %1664 = vmatmul.mubr.bf16.gmra.mrb[0].mxu0 %v1516
        %v1665 = vpop.f32.mrb[0].mxu0
        %v1666 = vadd.f32 0.0, %v1665
        %v1667 = vpop.f32.mrb[0].mxu0
        %v1668 = vpop.f32.mrb[0].mxu0
        %v1669 = vadd.f32 0.0, %v1668
        %v1670 = vpop.f32.mrb[0].mxu0
        %1671 = vmatprep.mubr.bf16.mxu0 0
        %1672 = vmatmul.mubr.bf16.gmra.mrb[0].mxu0 %v1519
        %v1673 = vpop.f32.mrb[0].mxu0
        %v1674 = vadd.f32 0.0, %v1673
        %v1675 = vpop.f32.mrb[0].mxu0
        %v1676 = vpop.f32.mrb[0].mxu0
        %v1677 = vadd.f32 0.0, %v1676
        %v1678 = vpop.f32.mrb[0].mxu0
        %1679 = vmatprep.mubr.bf16.mxu0 0
        %1680 = vmatmul.mubr.bf16.gmra.mrb[0].mxu0 %v1522
        %v1681 = vpop.f32.mrb[0].mxu0
        %v1682 = vadd.f32 0.0, %v1681
        %v1683 = vpop.f32.mrb[0].mxu0
        %v1684 = vpop.f32.mrb[0].mxu0
        %v1685 = vadd.f32 0.0, %v1684
        %v1686 = vpop.f32.mrb[0].mxu0
        %1687 = vdwg.mxu0
        %v1688 = vadd.f32 %v1137, %v1562
        %v1689 = vadd.f32 %v1140, %v1565
        %v1690 = vadd.f32 %v1145, %v1570
        %v1691 = vadd.f32 %v1148, %v1573
        %v1692 = vadd.f32 %v1153, %v1578
        %v1693 = vadd.f32 %v1156, %v1581
        %v1694 = vadd.f32 %v1161, %v1586
        %v1695 = vadd.f32 %v1164, %v1589
        %v1696 = vadd.f32 %v1169, %v1594
        %v1697 = vadd.f32 %v1172, %v1597
        %v1698 = vadd.f32 %v1177, %v1602
        %v1699 = vadd.f32 %v1180, %v1605
        %v1700 = vadd.f32 %v1185, %v1610
        %v1701 = vadd.f32 %v1188, %v1613
        %v1702 = vadd.f32 %v1193, %v1618
        %v1703 = vadd.f32 %v1196, %v1621
        %v1704 = vadd.f32 %v1201, %v1626
        %v1705 = vadd.f32 %v1204, %v1629
        %v1706 = vadd.f32 %v1209, %v1634
        %v1707 = vadd.f32 %v1212, %v1637
        %v1708 = vadd.f32 %v1217, %v1642
        %v1709 = vadd.f32 %v1220, %v1645
        %v1710 = vadd.f32 %v1225, %v1650
        %v1711 = vadd.f32 %v1228, %v1653
        %v1712 = vadd.f32 %v1233, %v1658
        %v1713 = vadd.f32 %v1236, %v1661
        %v1714 = vadd.f32 %v1241, %v1666
        %v1715 = vadd.f32 %v1244, %v1669
        %v1716 = vadd.f32 %v1249, %v1674
        %v1717 = vadd.f32 %v1252, %v1677
        %v1718 = vadd.f32 %v1257, %v1682
        %v1719 = vadd.f32 %v1260, %v1685
        %s1720 = sadd.s32 %s267, 1
        %s1721 = smul.u32 %s1720, 3
        %s1722 = smul.addr %s1721, 4
        %s1723 = scalar_lea.vmem %s253, %s1722
        %v1724 = vld [vmem:[%s1723] sm:$0xf]
        %v1725 = vld [vmem:[%s1723 + $0x4] sm:$0xf]
        %v1726 = vld [vmem:[%s1723 + $0xc] sm:$0xf]
        %v1727 = vld [vmem:[%s1723 + $0x10] sm:$0xf]
        %v1728 = vld [vmem:[%s1723 + $0x18] sm:$0xf]
        %v1729 = vld [vmem:[%s1723 + $0x1c] sm:$0xf]
        %v1730 = vld [vmem:[%s1723 + $0x24] sm:$0xf]
        %v1731 = vld [vmem:[%s1723 + $0x28] sm:$0xf]
        %v1732 = vld [vmem:[%s1723 + $0x30] sm:$0xf]
        %v1733 = vld [vmem:[%s1723 + $0x34] sm:$0xf]
        %v1734 = vld [vmem:[%s1723 + $0x3c] sm:$0xf]
        %v1735 = vld [vmem:[%s1723 + $0x40] sm:$0xf]
        %v1736 = vld [vmem:[%s1723 + $0x48] sm:$0xf]
        %v1737 = vld [vmem:[%s1723 + $0x4c] sm:$0xf]
        %v1738 = vld [vmem:[%s1723 + $0x54] sm:$0xf]
        %v1739 = vld [vmem:[%s1723 + $0x58] sm:$0xf]
        %v1740 = vld [vmem:[%s1723 + $0x60] sm:$0xf]
        %v1741 = vld [vmem:[%s1723 + $0x64] sm:$0xf]
        %v1742 = vld [vmem:[%s1723 + $0x6c] sm:$0xf]
        %v1743 = vld [vmem:[%s1723 + $0x70] sm:$0xf]
        %v1744 = vld [vmem:[%s1723 + $0x78] sm:$0xf]
        %v1745 = vld [vmem:[%s1723 + $0x7c] sm:$0xf]
        %v1746 = vld [vmem:[%s1723 + $0x84] sm:$0xf]
        %v1747 = vld [vmem:[%s1723 + $0x88] sm:$0xf]
        %v1748 = vld [vmem:[%s1723 + $0x90] sm:$0xf]
        %v1749 = vld [vmem:[%s1723 + $0x94] sm:$0xf]
        %v1750 = vld [vmem:[%s1723 + $0x9c] sm:$0xf]
        %v1751 = vld [vmem:[%s1723 + $0xa0] sm:$0xf]
        %v1752 = vld [vmem:[%s1723 + $0xa8] sm:$0xf]
        %v1753 = vld [vmem:[%s1723 + $0xac] sm:$0xf]
        %v1754 = vld [vmem:[%s1723 + $0xb4] sm:$0xf]
        %v1755 = vld [vmem:[%s1723 + $0xb8] sm:$0xf]
        %s1756 = scalar_lea.vmem %s257, 6
        %v1757 = vld [vmem:[%s1756] sm:$0x3]
        %v1790 = vunpack.c.l.b16 %v1724
        %v1791 = vunpack.c.l.b16 %v1725
        %v1792 = vunpack.c.l.b16 %v1726
        %v1793 = vunpack.c.l.b16 %v1727
        %v1794 = vunpack.c.l.b16 %v1728
        %v1795 = vunpack.c.l.b16 %v1729
        %v1796 = vunpack.c.l.b16 %v1730
        %v1797 = vunpack.c.l.b16 %v1731
        %v1798 = vunpack.c.l.b16 %v1732
        %v1799 = vunpack.c.l.b16 %v1733
        %v1800 = vunpack.c.l.b16 %v1734
        %v1801 = vunpack.c.l.b16 %v1735
        %v1802 = vunpack.c.l.b16 %v1736
        %v1803 = vunpack.c.l.b16 %v1737
        %v1804 = vunpack.c.l.b16 %v1738
        %v1805 = vunpack.c.l.b16 %v1739
        %v1806 = vunpack.c.l.b16 %v1740
        %v1807 = vunpack.c.l.b16 %v1741
        %v1808 = vunpack.c.l.b16 %v1742
        %v1809 = vunpack.c.l.b16 %v1743
        %v1810 = vunpack.c.l.b16 %v1744
        %v1811 = vunpack.c.l.b16 %v1745
        %v1812 = vunpack.c.l.b16 %v1746
        %v1813 = vunpack.c.l.b16 %v1747
        %v1814 = vunpack.c.l.b16 %v1748
        %v1815 = vunpack.c.l.b16 %v1749
        %v1816 = vunpack.c.l.b16 %v1750
        %v1817 = vunpack.c.l.b16 %v1751
        %v1818 = vunpack.c.l.b16 %v1752
        %v1819 = vunpack.c.l.b16 %v1753
        %v1820 = vunpack.c.l.b16 %v1754
        %v1821 = vunpack.c.l.b16 %v1755
        %v1822 = vpack.c.b16 %v1791, %v1790
        %v1823 = vpack.c.b16 %v1793, %v1792
        %v1824 = vpack.c.b16 %v1795, %v1794
        %v1825 = vpack.c.b16 %v1797, %v1796
        %v1826 = vpack.c.b16 %v1799, %v1798
        %v1827 = vpack.c.b16 %v1801, %v1800
        %v1828 = vpack.c.b16 %v1803, %v1802
        %v1829 = vpack.c.b16 %v1805, %v1804
        %v1830 = vpack.c.b16 %v1807, %v1806
        %v1831 = vpack.c.b16 %v1809, %v1808
        %v1832 = vpack.c.b16 %v1811, %v1810
        %v1833 = vpack.c.b16 %v1813, %v1812
        %v1834 = vpack.c.b16 %v1815, %v1814
        %v1835 = vpack.c.b16 %v1817, %v1816
        %v1836 = vpack.c.b16 %v1819, %v1818
        %v1837 = vpack.c.b16 %v1821, %v1820
        %v1839 = vsel %vm757, %v1822, 0
        %v1842 = vsel %vm757, %v1823, 0
        %v1845 = vsel %vm757, %v1824, 0
        %v1848 = vsel %vm757, %v1825, 0
        %v1851 = vsel %vm757, %v1826, 0
        %v1854 = vsel %vm757, %v1827, 0
        %v1857 = vsel %vm757, %v1828, 0
        %v1860 = vsel %vm757, %v1829, 0
        %v1863 = vsel %vm757, %v1830, 0
        %v1866 = vsel %vm757, %v1831, 0
        %v1869 = vsel %vm757, %v1832, 0
        %v1872 = vsel %vm757, %v1833, 0
        %v1875 = vsel %vm757, %v1834, 0
        %v1878 = vsel %vm757, %v1835, 0
        %v1881 = vsel %vm757, %v1836, 0
        %v1884 = vsel %vm757, %v1837, 0
        %v1887 = vsel %vm806, %v1757, 0
        %1889 = vmatprep.subr.bf16.mxu0 0
        %1890 = vmatpush1.bf16.msra.mxu0 %v1887
        %1891 = vmatprep.subr.bf16.mxu0 0
        %1892 = vmatpush1.bf16.msra.mxu0 0
        %1893 = vmatprep.subr.bf16.mxu0 0
        %1894 = vmatpush1.bf16.msra.mxu0 0
        %1895 = vmatprep.subr.bf16.mxu0 0
        %1896 = vmatpush1.bf16.msra.mxu0 0
        %1897 = vmatprep.subr.bf16.mxu0 0
        %1898 = vmatpush1.bf16.msra.mxu0 0
        %1899 = vmatprep.subr.bf16.mxu0 0
        %1900 = vmatpush1.bf16.msra.mxu0 0
        %1901 = vmatprep.subr.bf16.mxu0 0
        %1902 = vmatpush1.bf16.msra.mxu0 0
        %1903 = vmatprep.subr.bf16.mxu0 0
        %1904 = vmatpush1.bf16.msra.mxu0 0
        %1905 = vmatprep.subr.bf16.mxu0 0
        %1906 = vmatpush1.bf16.msra.mxu0 0
        %1907 = vmatprep.subr.bf16.mxu0 0
        %1908 = vmatpush1.bf16.msra.mxu0 0
        %1909 = vmatprep.subr.bf16.mxu0 0
        %1910 = vmatpush1.bf16.msra.mxu0 0
        %1911 = vmatprep.subr.bf16.mxu0 0
        %1912 = vmatpush1.bf16.msra.mxu0 0
        %1913 = vmatprep.subr.bf16.mxu0 0
        %1914 = vmatpush1.bf16.msra.mxu0 0
        %1915 = vmatprep.subr.bf16.mxu0 0
        %1916 = vmatpush1.bf16.msra.mxu0 0
        %1917 = vmatprep.subr.bf16.mxu0 0
        %1918 = vmatpush1.bf16.msra.mxu0 0
        %1919 = vmatprep.subr.bf16.mxu0 0
        %1920 = vmatpush1.bf16.msra.mxu0 0
        %1921 = vmatprep.mubr.bf16.mxu0 0
        %1922 = vmatmul.mubr.bf16.gmra.mrb[0].mxu0 %v1839
        %v1923 = vpop.f32.mrb[0].mxu0
        %v1924 = vadd.f32 0.0, %v1923
        %v1925 = vpop.f32.mrb[0].mxu0
        %v1926 = vpop.f32.mrb[0].mxu0
        %v1927 = vadd.f32 0.0, %v1926
        %v1928 = vpop.f32.mrb[0].mxu0
        %1929 = vmatprep.mubr.bf16.mxu0 0
        %1930 = vmatmul.mubr.bf16.gmra.mrb[0].mxu0 %v1842
        %v1931 = vpop.f32.mrb[0].mxu0
        %v1932 = vadd.f32 0.0, %v1931
        %v1933 = vpop.f32.mrb[0].mxu0
        %v1934 = vpop.f32.mrb[0].mxu0
        %v1935 = vadd.f32 0.0, %v1934
        %v1936 = vpop.f32.mrb[0].mxu0
        %1937 = vmatprep.mubr.bf16.mxu0 0
        %1938 = vmatmul.mubr.bf16.gmra.mrb[0].mxu0 %v1845
        %v1939 = vpop.f32.mrb[0].mxu0
        %v1940 = vadd.f32 0.0, %v1939
        %v1941 = vpop.f32.mrb[0].mxu0
        %v1942 = vpop.f32.mrb[0].mxu0
        %v1943 = vadd.f32 0.0, %v1942
        %v1944 = vpop.f32.mrb[0].mxu0
        %1945 = vmatprep.mubr.bf16.mxu0 0
        %1946 = vmatmul.mubr.bf16.gmra.mrb[0].mxu0 %v1848
        %v1947 = vpop.f32.mrb[0].mxu0
        %v1948 = vadd.f32 0.0, %v1947
        %v1949 = vpop.f32.mrb[0].mxu0
        %v1950 = vpop.f32.mrb[0].mxu0
        %v1951 = vadd.f32 0.0, %v1950
        %v1952 = vpop.f32.mrb[0].mxu0
        %1953 = vmatprep.mubr.bf16.mxu0 0
        %1954 = vmatmul.mubr.bf16.gmra.mrb[0].mxu0 %v1851
        %v1955 = vpop.f32.mrb[0].mxu0
        %v1956 = vadd.f32 0.0, %v1955
        %v1957 = vpop.f32.mrb[0].mxu0
        %v1958 = vpop.f32.mrb[0].mxu0
        %v1959 = vadd.f32 0.0, %v1958
        %v1960 = vpop.f32.mrb[0].mxu0
        %1961 = vmatprep.mubr.bf16.mxu0 0
        %1962 = vmatmul.mubr.bf16.gmra.mrb[0].mxu0 %v1854
        %v1963 = vpop.f32.mrb[0].mxu0
        %v1964 = vadd.f32 0.0, %v1963
        %v1965 = vpop.f32.mrb[0].mxu0
        %v1966 = vpop.f32.mrb[0].mxu0
        %v1967 = vadd.f32 0.0, %v1966
        %v1968 = vpop.f32.mrb[0].mxu0
        %1969 = vmatprep.mubr.bf16.mxu0 0
        %1970 = vmatmul.mubr.bf16.gmra.mrb[0].mxu0 %v1857
        %v1971 = vpop.f32.mrb[0].mxu0
        %v1972 = vadd.f32 0.0, %v1971
        %v1973 = vpop.f32.mrb[0].mxu0
        %v1974 = vpop.f32.mrb[0].mxu0
        %v1975 = vadd.f32 0.0, %v1974
        %v1976 = vpop.f32.mrb[0].mxu0
        %1977 = vmatprep.mubr.bf16.mxu0 0
        %1978 = vmatmul.mubr.bf16.gmra.mrb[0].mxu0 %v1860
        %v1979 = vpop.f32.mrb[0].mxu0
        %v1980 = vadd.f32 0.0, %v1979
        %v1981 = vpop.f32.mrb[0].mxu0
        %v1982 = vpop.f32.mrb[0].mxu0
        %v1983 = vadd.f32 0.0, %v1982
        %v1984 = vpop.f32.mrb[0].mxu0
        %1985 = vmatprep.mubr.bf16.mxu0 0
        %1986 = vmatmul.mubr.bf16.gmra.mrb[0].mxu0 %v1863
        %v1987 = vpop.f32.mrb[0].mxu0
        %v1988 = vadd.f32 0.0, %v1987
        %v1989 = vpop.f32.mrb[0].mxu0
        %v1990 = vpop.f32.mrb[0].mxu0
        %v1991 = vadd.f32 0.0, %v1990
        %v1992 = vpop.f32.mrb[0].mxu0
        %1993 = vmatprep.mubr.bf16.mxu0 0
        %1994 = vmatmul.mubr.bf16.gmra.mrb[0].mxu0 %v1866
        %v1995 = vpop.f32.mrb[0].mxu0
        %v1996 = vadd.f32 0.0, %v1995
        %v1997 = vpop.f32.mrb[0].mxu0
        %v1998 = vpop.f32.mrb[0].mxu0
        %v1999 = vadd.f32 0.0, %v1998
        %v2000 = vpop.f32.mrb[0].mxu0
        %2001 = vmatprep.mubr.bf16.mxu0 0
        %2002 = vmatmul.mubr.bf16.gmra.mrb[0].mxu0 %v1869
        %v2003 = vpop.f32.mrb[0].mxu0
        %v2004 = vadd.f32 0.0, %v2003
        %v2005 = vpop.f32.mrb[0].mxu0
        %v2006 = vpop.f32.mrb[0].mxu0
        %v2007 = vadd.f32 0.0, %v2006
        %v2008 = vpop.f32.mrb[0].mxu0
        %2009 = vmatprep.mubr.bf16.mxu0 0
        %2010 = vmatmul.mubr.bf16.gmra.mrb[0].mxu0 %v1872
        %v2011 = vpop.f32.mrb[0].mxu0
        %v2012 = vadd.f32 0.0, %v2011
        %v2013 = vpop.f32.mrb[0].mxu0
        %v2014 = vpop.f32.mrb[0].mxu0
        %v2015 = vadd.f32 0.0, %v2014
        %v2016 = vpop.f32.mrb[0].mxu0
        %2017 = vmatprep.mubr.bf16.mxu0 0
        %2018 = vmatmul.mubr.bf16.gmra.mrb[0].mxu0 %v1875
        %v2019 = vpop.f32.mrb[0].mxu0
        %v2020 = vadd.f32 0.0, %v2019
        %v2021 = vpop.f32.mrb[0].mxu0
        %v2022 = vpop.f32.mrb[0].mxu0
        %v2023 = vadd.f32 0.0, %v2022
        %v2024 = vpop.f32.mrb[0].mxu0
        %2025 = vmatprep.mubr.bf16.mxu0 0
        %2026 = vmatmul.mubr.bf16.gmra.mrb[0].mxu0 %v1878
        %v2027 = vpop.f32.mrb[0].mxu0
        %v2028 = vadd.f32 0.0, %v2027
        %v2029 = vpop.f32.mrb[0].mxu0
        %v2030 = vpop.f32.mrb[0].mxu0
        %v2031 = vadd.f32 0.0, %v2030
        %v2032 = vpop.f32.mrb[0].mxu0
        %2033 = vmatprep.mubr.bf16.mxu0 0
        %2034 = vmatmul.mubr.bf16.gmra.mrb[0].mxu0 %v1881
        %v2035 = vpop.f32.mrb[0].mxu0
        %v2036 = vadd.f32 0.0, %v2035
        %v2037 = vpop.f32.mrb[0].mxu0
        %v2038 = vpop.f32.mrb[0].mxu0
        %v2039 = vadd.f32 0.0, %v2038
        %v2040 = vpop.f32.mrb[0].mxu0
        %2041 = vmatprep.mubr.bf16.mxu0 0
        %2042 = vmatmul.mubr.bf16.gmra.mrb[0].mxu0 %v1884
        %v2043 = vpop.f32.mrb[0].mxu0
        %v2044 = vadd.f32 0.0, %v2043
        %v2045 = vpop.f32.mrb[0].mxu0
        %v2046 = vpop.f32.mrb[0].mxu0
        %v2047 = vadd.f32 0.0, %v2046
        %v2048 = vpop.f32.mrb[0].mxu0
        %2049 = vdwg.mxu0
        %v2050 = vadd.f32 %v1688, %v1924
        %v2051 = vadd.f32 %v1689, %v1927
        %v2052 = vadd.f32 %v1690, %v1932
        %v2053 = vadd.f32 %v1691, %v1935
        %v2054 = vadd.f32 %v1692, %v1940
        %v2055 = vadd.f32 %v1693, %v1943
        %v2056 = vadd.f32 %v1694, %v1948
        %v2057 = vadd.f32 %v1695, %v1951
        %v2058 = vadd.f32 %v1696, %v1956
        %v2059 = vadd.f32 %v1697, %v1959
        %v2060 = vadd.f32 %v1698, %v1964
        %v2061 = vadd.f32 %v1699, %v1967
        %v2062 = vadd.f32 %v1700, %v1972
        %v2063 = vadd.f32 %v1701, %v1975
        %v2064 = vadd.f32 %v1702, %v1980
        %v2065 = vadd.f32 %v1703, %v1983
        %v2066 = vadd.f32 %v1704, %v1988
        %v2067 = vadd.f32 %v1705, %v1991
        %v2068 = vadd.f32 %v1706, %v1996
        %v2069 = vadd.f32 %v1707, %v1999
        %v2070 = vadd.f32 %v1708, %v2004
        %v2071 = vadd.f32 %v1709, %v2007
        %v2072 = vadd.f32 %v1710, %v2012
        %v2073 = vadd.f32 %v1711, %v2015
        %v2074 = vadd.f32 %v1712, %v2020
        %v2075 = vadd.f32 %v1713, %v2023
        %v2076 = vadd.f32 %v1714, %v2028
        %v2077 = vadd.f32 %v1715, %v2031
        %v2078 = vadd.f32 %v1716, %v2036
        %v2079 = vadd.f32 %v1717, %v2039
        %v2080 = vadd.f32 %v1718, %v2044
        %v2081 = vadd.f32 %v1719, %v2047
        %v2082 = vld [vmem:[%s1723] sm:$0xf]
        %v2083 = vld [vmem:[%s1723 + $0x4] sm:$0xf]
        %v2084 = vld [vmem:[%s1723 + $0x8] sm:$0x1]
        %v2085 = vld [vmem:[%s1723 + $0xc] sm:$0xf]
        %v2086 = vld [vmem:[%s1723 + $0x10] sm:$0xf]
        %v2087 = vld [vmem:[%s1723 + $0x14] sm:$0x1]
        %v2088 = vld [vmem:[%s1723 + $0x18] sm:$0xf]
        %v2089 = vld [vmem:[%s1723 + $0x1c] sm:$0xf]
        %v2090 = vld [vmem:[%s1723 + $0x20] sm:$0x1]
        %v2091 = vld [vmem:[%s1723 + $0x24] sm:$0xf]
        %v2092 = vld [vmem:[%s1723 + $0x28] sm:$0xf]
        %v2093 = vld [vmem:[%s1723 + $0x2c] sm:$0x1]
        %v2094 = vld [vmem:[%s1723 + $0x30] sm:$0xf]
        %v2095 = vld [vmem:[%s1723 + $0x34] sm:$0xf]
        %v2096 = vld [vmem:[%s1723 + $0x38] sm:$0x1]
        %v2097 = vld [vmem:[%s1723 + $0x3c] sm:$0xf]
        %v2098 = vld [vmem:[%s1723 + $0x40] sm:$0xf]
        %v2099 = vld [vmem:[%s1723 + $0x44] sm:$0x1]
        %v2100 = vld [vmem:[%s1723 + $0x48] sm:$0xf]
        %v2101 = vld [vmem:[%s1723 + $0x4c] sm:$0xf]
        %v2102 = vld [vmem:[%s1723 + $0x50] sm:$0x1]
        %v2103 = vld [vmem:[%s1723 + $0x54] sm:$0xf]
        %v2104 = vld [vmem:[%s1723 + $0x58] sm:$0xf]
        %v2105 = vld [vmem:[%s1723 + $0x5c] sm:$0x1]
        %v2106 = vld [vmem:[%s1723 + $0x60] sm:$0xf]
        %v2107 = vld [vmem:[%s1723 + $0x64] sm:$0xf]
        %v2108 = vld [vmem:[%s1723 + $0x68] sm:$0x1]
        %v2109 = vld [vmem:[%s1723 + $0x6c] sm:$0xf]
        %v2110 = vld [vmem:[%s1723 + $0x70] sm:$0xf]
        %v2111 = vld [vmem:[%s1723 + $0x74] sm:$0x1]
        %v2112 = vld [vmem:[%s1723 + $0x78] sm:$0xf]
        %v2113 = vld [vmem:[%s1723 + $0x7c] sm:$0xf]
        %v2114 = vld [vmem:[%s1723 + $0x80] sm:$0x1]
        %v2115 = vld [vmem:[%s1723 + $0x84] sm:$0xf]
        %v2116 = vld [vmem:[%s1723 + $0x88] sm:$0xf]
        %v2117 = vld [vmem:[%s1723 + $0x8c] sm:$0x1]
        %v2118 = vld [vmem:[%s1723 + $0x90] sm:$0xf]
        %v2119 = vld [vmem:[%s1723 + $0x94] sm:$0xf]
        %v2120 = vld [vmem:[%s1723 + $0x98] sm:$0x1]
        %v2121 = vld [vmem:[%s1723 + $0x9c] sm:$0xf]
        %v2122 = vld [vmem:[%s1723 + $0xa0] sm:$0xf]
        %v2123 = vld [vmem:[%s1723 + $0xa4] sm:$0x1]
        %v2124 = vld [vmem:[%s1723 + $0xa8] sm:$0xf]
        %v2125 = vld [vmem:[%s1723 + $0xac] sm:$0xf]
        %v2126 = vld [vmem:[%s1723 + $0xb0] sm:$0x1]
        %v2127 = vld [vmem:[%s1723 + $0xb4] sm:$0xf]
        %v2128 = vld [vmem:[%s1723 + $0xb8] sm:$0xf]
        %v2129 = vld [vmem:[%s1723 + $0xbc] sm:$0x1]
        %v2131 = vshrl.u32 %v2082, 16
        %v2133 = vrot.slane %v2131, 4
        %v2134 = vshll.u32 %v2082, 16
        %v2136 = vrot.slane %v2134, 5
        %v2137 = vor.u32 %v2133, %v2136
        %v2138 = vrot.slane %v2137, 4
        %v2140 = vshll.u32 %v2083, 16
        %v2142 = vrot.slane %v2140, 5
        %v2143 = vsel %vm322, %v2138, %v2142
        %v2144 = vshrl.u32 %v2083, 16
        %v2146 = vrot.slane %v2144, 4
        %v2147 = vor.u32 %v2146, %v2142
        %v2148 = vrot.slane %v2147, 4
        %v2150 = vshll.u32 %v2084, 16
        %v2152 = vrot.slane %v2150, 5
        %v2153 = vsel %vm322, %v2148, %v2152
        %v2155 = vshrl.u32 %v2085, 16
        %v2157 = vrot.slane %v2155, 4
        %v2158 = vshll.u32 %v2085, 16
        %v2160 = vrot.slane %v2158, 5
        %v2161 = vor.u32 %v2157, %v2160
        %v2162 = vrot.slane %v2161, 4
        %v2164 = vshll.u32 %v2086, 16
        %v2166 = vrot.slane %v2164, 5
        %v2167 = vsel %vm322, %v2162, %v2166
        %v2168 = vshrl.u32 %v2086, 16
        %v2170 = vrot.slane %v2168, 4
        %v2171 = vor.u32 %v2170, %v2166
        %v2172 = vrot.slane %v2171, 4
        %v2174 = vshll.u32 %v2087, 16
        %v2176 = vrot.slane %v2174, 5
        %v2177 = vsel %vm322, %v2172, %v2176
        %v2179 = vshrl.u32 %v2088, 16
        %v2181 = vrot.slane %v2179, 4
        %v2182 = vshll.u32 %v2088, 16
        %v2184 = vrot.slane %v2182, 5
        %v2185 = vor.u32 %v2181, %v2184
        %v2186 = vrot.slane %v2185, 4
        %v2188 = vshll.u32 %v2089, 16
        %v2190 = vrot.slane %v2188, 5
        %v2191 = vsel %vm322, %v2186, %v2190
        %v2192 = vshrl.u32 %v2089, 16
        %v2194 = vrot.slane %v2192, 4
        %v2195 = vor.u32 %v2194, %v2190
        %v2196 = vrot.slane %v2195, 4
        %v2198 = vshll.u32 %v2090, 16
        %v2200 = vrot.slane %v2198, 5
        %v2201 = vsel %vm322, %v2196, %v2200
        %v2203 = vshrl.u32 %v2091, 16
        %v2205 = vrot.slane %v2203, 4
        %v2206 = vshll.u32 %v2091, 16
        %v2208 = vrot.slane %v2206, 5
        %v2209 = vor.u32 %v2205, %v2208
        %v2210 = vrot.slane %v2209, 4
        %v2212 = vshll.u32 %v2092, 16
        %v2214 = vrot.slane %v2212, 5
        %v2215 = vsel %vm322, %v2210, %v2214
        %v2216 = vshrl.u32 %v2092, 16
        %v2218 = vrot.slane %v2216, 4
        %v2219 = vor.u32 %v2218, %v2214
        %v2220 = vrot.slane %v2219, 4
        %v2222 = vshll.u32 %v2093, 16
        %v2224 = vrot.slane %v2222, 5
        %v2225 = vsel %vm322, %v2220, %v2224
        %v2227 = vshrl.u32 %v2094, 16
        %v2229 = vrot.slane %v2227, 4
        %v2230 = vshll.u32 %v2094, 16
        %v2232 = vrot.slane %v2230, 5
        %v2233 = vor.u32 %v2229, %v2232
        %v2234 = vrot.slane %v2233, 4
        %v2236 = vshll.u32 %v2095, 16
        %v2238 = vrot.slane %v2236, 5
        %v2239 = vsel %vm322, %v2234, %v2238
        %v2240 = vshrl.u32 %v2095, 16
        %v2242 = vrot.slane %v2240, 4
        %v2243 = vor.u32 %v2242, %v2238
        %v2244 = vrot.slane %v2243, 4
        %v2246 = vshll.u32 %v2096, 16
        %v2248 = vrot.slane %v2246, 5
        %v2249 = vsel %vm322, %v2244, %v2248
        %v2251 = vshrl.u32 %v2097, 16
        %v2253 = vrot.slane %v2251, 4
        %v2254 = vshll.u32 %v2097, 16
        %v2256 = vrot.slane %v2254, 5
        %v2257 = vor.u32 %v2253, %v2256
        %v2258 = vrot.slane %v2257, 4
        %v2260 = vshll.u32 %v2098, 16
        %v2262 = vrot.slane %v2260, 5
        %v2263 = vsel %vm322, %v2258, %v2262
        %v2264 = vshrl.u32 %v2098, 16
        %v2266 = vrot.slane %v2264, 4
        %v2267 = vor.u32 %v2266, %v2262
        %v2268 = vrot.slane %v2267, 4
        %v2270 = vshll.u32 %v2099, 16
        %v2272 = vrot.slane %v2270, 5
        %v2273 = vsel %vm322, %v2268, %v2272
        %v2275 = vshrl.u32 %v2100, 16
        %v2277 = vrot.slane %v2275, 4
        %v2278 = vshll.u32 %v2100, 16
        %v2280 = vrot.slane %v2278, 5
        %v2281 = vor.u32 %v2277, %v2280
        %v2282 = vrot.slane %v2281, 4
        %v2284 = vshll.u32 %v2101, 16
        %v2286 = vrot.slane %v2284, 5
        %v2287 = vsel %vm322, %v2282, %v2286
        %v2288 = vshrl.u32 %v2101, 16
        %v2290 = vrot.slane %v2288, 4
        %v2291 = vor.u32 %v2290, %v2286
        %v2292 = vrot.slane %v2291, 4
        %v2294 = vshll.u32 %v2102, 16
        %v2296 = vrot.slane %v2294, 5
        %v2297 = vsel %vm322, %v2292, %v2296
        %v2299 = vshrl.u32 %v2103, 16
        %v2301 = vrot.slane %v2299, 4
        %v2302 = vshll.u32 %v2103, 16
        %v2304 = vrot.slane %v2302, 5
        %v2305 = vor.u32 %v2301, %v2304
        %v2306 = vrot.slane %v2305, 4
        %v2308 = vshll.u32 %v2104, 16
        %v2310 = vrot.slane %v2308, 5
        %v2311 = vsel %vm322, %v2306, %v2310
        %v2312 = vshrl.u32 %v2104, 16
        %v2314 = vrot.slane %v2312, 4
        %v2315 = vor.u32 %v2314, %v2310
        %v2316 = vrot.slane %v2315, 4
        %v2318 = vshll.u32 %v2105, 16
        %v2320 = vrot.slane %v2318, 5
        %v2321 = vsel %vm322, %v2316, %v2320
        %v2323 = vshrl.u32 %v2106, 16
        %v2325 = vrot.slane %v2323, 4
        %v2326 = vshll.u32 %v2106, 16
        %v2328 = vrot.slane %v2326, 5
        %v2329 = vor.u32 %v2325, %v2328
        %v2330 = vrot.slane %v2329, 4
        %v2332 = vshll.u32 %v2107, 16
        %v2334 = vrot.slane %v2332, 5
        %v2335 = vsel %vm322, %v2330, %v2334
        %v2336 = vshrl.u32 %v2107, 16
        %v2338 = vrot.slane %v2336, 4
        %v2339 = vor.u32 %v2338, %v2334
        %v2340 = vrot.slane %v2339, 4
        %v2342 = vshll.u32 %v2108, 16
        %v2344 = vrot.slane %v2342, 5
        %v2345 = vsel %vm322, %v2340, %v2344
        %v2347 = vshrl.u32 %v2109, 16
        %v2349 = vrot.slane %v2347, 4
        %v2350 = vshll.u32 %v2109, 16
        %v2352 = vrot.slane %v2350, 5
        %v2353 = vor.u32 %v2349, %v2352
        %v2354 = vrot.slane %v2353, 4
        %v2356 = vshll.u32 %v2110, 16
        %v2358 = vrot.slane %v2356, 5
        %v2359 = vsel %vm322, %v2354, %v2358
        %v2360 = vshrl.u32 %v2110, 16
        %v2362 = vrot.slane %v2360, 4
        %v2363 = vor.u32 %v2362, %v2358
        %v2364 = vrot.slane %v2363, 4
        %v2366 = vshll.u32 %v2111, 16
        %v2368 = vrot.slane %v2366, 5
        %v2369 = vsel %vm322, %v2364, %v2368
        %v2371 = vshrl.u32 %v2112, 16
        %v2373 = vrot.slane %v2371, 4
        %v2374 = vshll.u32 %v2112, 16
        %v2376 = vrot.slane %v2374, 5
        %v2377 = vor.u32 %v2373, %v2376
        %v2378 = vrot.slane %v2377, 4
        %v2380 = vshll.u32 %v2113, 16
        %v2382 = vrot.slane %v2380, 5
        %v2383 = vsel %vm322, %v2378, %v2382
        %v2384 = vshrl.u32 %v2113, 16
        %v2386 = vrot.slane %v2384, 4
        %v2387 = vor.u32 %v2386, %v2382
        %v2388 = vrot.slane %v2387, 4
        %v2390 = vshll.u32 %v2114, 16
        %v2392 = vrot.slane %v2390, 5
        %v2393 = vsel %vm322, %v2388, %v2392
        %v2395 = vshrl.u32 %v2115, 16
        %v2397 = vrot.slane %v2395, 4
        %v2398 = vshll.u32 %v2115, 16
        %v2400 = vrot.slane %v2398, 5
        %v2401 = vor.u32 %v2397, %v2400
        %v2402 = vrot.slane %v2401, 4
        %v2404 = vshll.u32 %v2116, 16
        %v2406 = vrot.slane %v2404, 5
        %v2407 = vsel %vm322, %v2402, %v2406
        %v2408 = vshrl.u32 %v2116, 16
        %v2410 = vrot.slane %v2408, 4
        %v2411 = vor.u32 %v2410, %v2406
        %v2412 = vrot.slane %v2411, 4
        %v2414 = vshll.u32 %v2117, 16
        %v2416 = vrot.slane %v2414, 5
        %v2417 = vsel %vm322, %v2412, %v2416
        %v2419 = vshrl.u32 %v2118, 16
        %v2421 = vrot.slane %v2419, 4
        %v2422 = vshll.u32 %v2118, 16
        %v2424 = vrot.slane %v2422, 5
        %v2425 = vor.u32 %v2421, %v2424
        %v2426 = vrot.slane %v2425, 4
        %v2428 = vshll.u32 %v2119, 16
        %v2430 = vrot.slane %v2428, 5
        %v2431 = vsel %vm322, %v2426, %v2430
        %v2432 = vshrl.u32 %v2119, 16
        %v2434 = vrot.slane %v2432, 4
        %v2435 = vor.u32 %v2434, %v2430
        %v2436 = vrot.slane %v2435, 4
        %v2438 = vshll.u32 %v2120, 16
        %v2440 = vrot.slane %v2438, 5
        %v2441 = vsel %vm322, %v2436, %v2440
        %v2443 = vshrl.u32 %v2121, 16
        %v2445 = vrot.slane %v2443, 4
        %v2446 = vshll.u32 %v2121, 16
        %v2448 = vrot.slane %v2446, 5
        %v2449 = vor.u32 %v2445, %v2448
        %v2450 = vrot.slane %v2449, 4
        %v2452 = vshll.u32 %v2122, 16
        %v2454 = vrot.slane %v2452, 5
        %v2455 = vsel %vm322, %v2450, %v2454
        %v2456 = vshrl.u32 %v2122, 16
        %v2458 = vrot.slane %v2456, 4
        %v2459 = vor.u32 %v2458, %v2454
        %v2460 = vrot.slane %v2459, 4
        %v2462 = vshll.u32 %v2123, 16
        %v2464 = vrot.slane %v2462, 5
        %v2465 = vsel %vm322, %v2460, %v2464
        %v2467 = vshrl.u32 %v2124, 16
        %v2469 = vrot.slane %v2467, 4
        %v2470 = vshll.u32 %v2124, 16
        %v2472 = vrot.slane %v2470, 5
        %v2473 = vor.u32 %v2469, %v2472
        %v2474 = vrot.slane %v2473, 4
        %v2476 = vshll.u32 %v2125, 16
        %v2478 = vrot.slane %v2476, 5
        %v2479 = vsel %vm322, %v2474, %v2478
        %v2480 = vshrl.u32 %v2125, 16
        %v2482 = vrot.slane %v2480, 4
        %v2483 = vor.u32 %v2482, %v2478
        %v2484 = vrot.slane %v2483, 4
        %v2486 = vshll.u32 %v2126, 16
        %v2488 = vrot.slane %v2486, 5
        %v2489 = vsel %vm322, %v2484, %v2488
        %v2491 = vshrl.u32 %v2127, 16
        %v2493 = vrot.slane %v2491, 4
        %v2494 = vshll.u32 %v2127, 16
        %v2496 = vrot.slane %v2494, 5
        %v2497 = vor.u32 %v2493, %v2496
        %v2498 = vrot.slane %v2497, 4
        %v2500 = vshll.u32 %v2128, 16
        %v2502 = vrot.slane %v2500, 5
        %v2503 = vsel %vm322, %v2498, %v2502
        %v2504 = vshrl.u32 %v2128, 16
        %v2506 = vrot.slane %v2504, 4
        %v2507 = vor.u32 %v2506, %v2502
        %v2508 = vrot.slane %v2507, 4
        %v2510 = vshll.u32 %v2129, 16
        %v2512 = vrot.slane %v2510, 5
        %v2513 = vsel %vm322, %v2508, %v2512
        %s2514 = scalar_lea.vmem %s257, 8
        %v2515 = vld [vmem:[%s2514] sm:$0x3]
        %v2516 = vunpack.c.l.b16 %v2143
        %v2517 = vunpack.c.l.b16 %v2153
        %v2518 = vunpack.c.l.b16 %v2167
        %v2519 = vunpack.c.l.b16 %v2177
        %v2520 = vunpack.c.l.b16 %v2191
        %v2521 = vunpack.c.l.b16 %v2201
        %v2522 = vunpack.c.l.b16 %v2215
        %v2523 = vunpack.c.l.b16 %v2225
        %v2524 = vunpack.c.l.b16 %v2239
        %v2525 = vunpack.c.l.b16 %v2249
        %v2526 = vunpack.c.l.b16 %v2263
        %v2527 = vunpack.c.l.b16 %v2273
        %v2528 = vunpack.c.l.b16 %v2287
        %v2529 = vunpack.c.l.b16 %v2297
        %v2530 = vunpack.c.l.b16 %v2311
        %v2531 = vunpack.c.l.b16 %v2321
        %v2532 = vunpack.c.l.b16 %v2335
        %v2533 = vunpack.c.l.b16 %v2345
        %v2534 = vunpack.c.l.b16 %v2359
        %v2535 = vunpack.c.l.b16 %v2369
        %v2536 = vunpack.c.l.b16 %v2383
        %v2537 = vunpack.c.l.b16 %v2393
        %v2538 = vunpack.c.l.b16 %v2407
        %v2539 = vunpack.c.l.b16 %v2417
        %v2540 = vunpack.c.l.b16 %v2431
        %v2541 = vunpack.c.l.b16 %v2441
        %v2542 = vunpack.c.l.b16 %v2455
        %v2543 = vunpack.c.l.b16 %v2465
        %v2544 = vunpack.c.l.b16 %v2479
        %v2545 = vunpack.c.l.b16 %v2489
        %v2546 = vunpack.c.l.b16 %v2503
        %v2547 = vunpack.c.l.b16 %v2513
        %v2548 = vpack.c.b16 %v2517, %v2516
        %v2549 = vpack.c.b16 %v2519, %v2518
        %v2550 = vpack.c.b16 %v2521, %v2520
        %v2551 = vpack.c.b16 %v2523, %v2522
        %v2552 = vpack.c.b16 %v2525, %v2524
        %v2553 = vpack.c.b16 %v2527, %v2526
        %v2554 = vpack.c.b16 %v2529, %v2528
        %v2555 = vpack.c.b16 %v2531, %v2530
        %v2556 = vpack.c.b16 %v2533, %v2532
        %v2557 = vpack.c.b16 %v2535, %v2534
        %v2558 = vpack.c.b16 %v2537, %v2536
        %v2559 = vpack.c.b16 %v2539, %v2538
        %v2560 = vpack.c.b16 %v2541, %v2540
        %v2561 = vpack.c.b16 %v2543, %v2542
        %v2562 = vpack.c.b16 %v2545, %v2544
        %v2563 = vpack.c.b16 %v2547, %v2546
        %v2565 = vsel %vm757, %v2548, 0
        %v2568 = vsel %vm757, %v2549, 0
        %v2571 = vsel %vm757, %v2550, 0
        %v2574 = vsel %vm757, %v2551, 0
        %v2577 = vsel %vm757, %v2552, 0
        %v2580 = vsel %vm757, %v2553, 0
        %v2583 = vsel %vm757, %v2554, 0
        %v2586 = vsel %vm757, %v2555, 0
        %v2589 = vsel %vm757, %v2556, 0
        %v2592 = vsel %vm757, %v2557, 0
        %v2595 = vsel %vm757, %v2558, 0
        %v2598 = vsel %vm757, %v2559, 0
        %v2601 = vsel %vm757, %v2560, 0
        %v2604 = vsel %vm757, %v2561, 0
        %v2607 = vsel %vm757, %v2562, 0
        %v2610 = vsel %vm757, %v2563, 0
        %v2613 = vsel %vm806, %v2515, 0
        %2615 = vmatprep.subr.bf16.mxu0 0
        %2616 = vmatpush1.bf16.msra.mxu0 %v2613
        %2617 = vmatprep.subr.bf16.mxu0 0
        %2618 = vmatpush1.bf16.msra.mxu0 0
        %2619 = vmatprep.subr.bf16.mxu0 0
        %2620 = vmatpush1.bf16.msra.mxu0 0
        %2621 = vmatprep.subr.bf16.mxu0 0
        %2622 = vmatpush1.bf16.msra.mxu0 0
        %2623 = vmatprep.subr.bf16.mxu0 0
        %2624 = vmatpush1.bf16.msra.mxu0 0
        %2625 = vmatprep.subr.bf16.mxu0 0
        %2626 = vmatpush1.bf16.msra.mxu0 0
        %2627 = vmatprep.subr.bf16.mxu0 0
        %2628 = vmatpush1.bf16.msra.mxu0 0
        %2629 = vmatprep.subr.bf16.mxu0 0
        %2630 = vmatpush1.bf16.msra.mxu0 0
        %2631 = vmatprep.subr.bf16.mxu0 0
        %2632 = vmatpush1.bf16.msra.mxu0 0
        %2633 = vmatprep.subr.bf16.mxu0 0
        %2634 = vmatpush1.bf16.msra.mxu0 0
        %2635 = vmatprep.subr.bf16.mxu0 0
        %2636 = vmatpush1.bf16.msra.mxu0 0
        %2637 = vmatprep.subr.bf16.mxu0 0
        %2638 = vmatpush1.bf16.msra.mxu0 0
        %2639 = vmatprep.subr.bf16.mxu0 0
        %2640 = vmatpush1.bf16.msra.mxu0 0
        %2641 = vmatprep.subr.bf16.mxu0 0
        %2642 = vmatpush1.bf16.msra.mxu0 0
        %2643 = vmatprep.subr.bf16.mxu0 0
        %2644 = vmatpush1.bf16.msra.mxu0 0
        %2645 = vmatprep.subr.bf16.mxu0 0
        %2646 = vmatpush1.bf16.msra.mxu0 0
        %2647 = vmatprep.mubr.bf16.mxu0 0
        %2648 = vmatmul.mubr.bf16.gmra.mrb[0].mxu0 %v2565
        %v2649 = vpop.f32.mrb[0].mxu0
        %v2650 = vadd.f32 0.0, %v2649
        %v2651 = vpop.f32.mrb[0].mxu0
        %v2652 = vpop.f32.mrb[0].mxu0
        %v2653 = vadd.f32 0.0, %v2652
        %v2654 = vpop.f32.mrb[0].mxu0
        %2655 = vmatprep.mubr.bf16.mxu0 0
        %2656 = vmatmul.mubr.bf16.gmra.mrb[0].mxu0 %v2568
        %v2657 = vpop.f32.mrb[0].mxu0
        %v2658 = vadd.f32 0.0, %v2657
        %v2659 = vpop.f32.mrb[0].mxu0
        %v2660 = vpop.f32.mrb[0].mxu0
        %v2661 = vadd.f32 0.0, %v2660
        %v2662 = vpop.f32.mrb[0].mxu0
        %2663 = vmatprep.mubr.bf16.mxu0 0
        %2664 = vmatmul.mubr.bf16.gmra.mrb[0].mxu0 %v2571
        %v2665 = vpop.f32.mrb[0].mxu0
        %v2666 = vadd.f32 0.0, %v2665
        %v2667 = vpop.f32.mrb[0].mxu0
        %v2668 = vpop.f32.mrb[0].mxu0
        %v2669 = vadd.f32 0.0, %v2668
        %v2670 = vpop.f32.mrb[0].mxu0
        %2671 = vmatprep.mubr.bf16.mxu0 0
        %2672 = vmatmul.mubr.bf16.gmra.mrb[0].mxu0 %v2574
        %v2673 = vpop.f32.mrb[0].mxu0
        %v2674 = vadd.f32 0.0, %v2673
        %v2675 = vpop.f32.mrb[0].mxu0
        %v2676 = vpop.f32.mrb[0].mxu0
        %v2677 = vadd.f32 0.0, %v2676
        %v2678 = vpop.f32.mrb[0].mxu0
        %2679 = vmatprep.mubr.bf16.mxu0 0
        %2680 = vmatmul.mubr.bf16.gmra.mrb[0].mxu0 %v2577
        %v2681 = vpop.f32.mrb[0].mxu0
        %v2682 = vadd.f32 0.0, %v2681
        %v2683 = vpop.f32.mrb[0].mxu0
        %v2684 = vpop.f32.mrb[0].mxu0
        %v2685 = vadd.f32 0.0, %v2684
        %v2686 = vpop.f32.mrb[0].mxu0
        %2687 = vmatprep.mubr.bf16.mxu0 0
        %2688 = vmatmul.mubr.bf16.gmra.mrb[0].mxu0 %v2580
        %v2689 = vpop.f32.mrb[0].mxu0
        %v2690 = vadd.f32 0.0, %v2689
        %v2691 = vpop.f32.mrb[0].mxu0
        %v2692 = vpop.f32.mrb[0].mxu0
        %v2693 = vadd.f32 0.0, %v2692
        %v2694 = vpop.f32.mrb[0].mxu0
        %2695 = vmatprep.mubr.bf16.mxu0 0
        %2696 = vmatmul.mubr.bf16.gmra.mrb[0].mxu0 %v2583
        %v2697 = vpop.f32.mrb[0].mxu0
        %v2698 = vadd.f32 0.0, %v2697
        %v2699 = vpop.f32.mrb[0].mxu0
        %v2700 = vpop.f32.mrb[0].mxu0
        %v2701 = vadd.f32 0.0, %v2700
        %v2702 = vpop.f32.mrb[0].mxu0
        %2703 = vmatprep.mubr.bf16.mxu0 0
        %2704 = vmatmul.mubr.bf16.gmra.mrb[0].mxu0 %v2586
        %v2705 = vpop.f32.mrb[0].mxu0
        %v2706 = vadd.f32 0.0, %v2705
        %v2707 = vpop.f32.mrb[0].mxu0
        %v2708 = vpop.f32.mrb[0].mxu0
        %v2709 = vadd.f32 0.0, %v2708
        %v2710 = vpop.f32.mrb[0].mxu0
        %2711 = vmatprep.mubr.bf16.mxu0 0
        %2712 = vmatmul.mubr.bf16.gmra.mrb[0].mxu0 %v2589
        %v2713 = vpop.f32.mrb[0].mxu0
        %v2714 = vadd.f32 0.0, %v2713
        %v2715 = vpop.f32.mrb[0].mxu0
        %v2716 = vpop.f32.mrb[0].mxu0
        %v2717 = vadd.f32 0.0, %v2716
        %v2718 = vpop.f32.mrb[0].mxu0
        %2719 = vmatprep.mubr.bf16.mxu0 0
        %2720 = vmatmul.mubr.bf16.gmra.mrb[0].mxu0 %v2592
        %v2721 = vpop.f32.mrb[0].mxu0
        %v2722 = vadd.f32 0.0, %v2721
        %v2723 = vpop.f32.mrb[0].mxu0
        %v2724 = vpop.f32.mrb[0].mxu0
        %v2725 = vadd.f32 0.0, %v2724
        %v2726 = vpop.f32.mrb[0].mxu0
        %2727 = vmatprep.mubr.bf16.mxu0 0
        %2728 = vmatmul.mubr.bf16.gmra.mrb[0].mxu0 %v2595
        %v2729 = vpop.f32.mrb[0].mxu0
        %v2730 = vadd.f32 0.0, %v2729
        %v2731 = vpop.f32.mrb[0].mxu0
        %v2732 = vpop.f32.mrb[0].mxu0
        %v2733 = vadd.f32 0.0, %v2732
        %v2734 = vpop.f32.mrb[0].mxu0
        %2735 = vmatprep.mubr.bf16.mxu0 0
        %2736 = vmatmul.mubr.bf16.gmra.mrb[0].mxu0 %v2598
        %v2737 = vpop.f32.mrb[0].mxu0
        %v2738 = vadd.f32 0.0, %v2737
        %v2739 = vpop.f32.mrb[0].mxu0
        %v2740 = vpop.f32.mrb[0].mxu0
        %v2741 = vadd.f32 0.0, %v2740
        %v2742 = vpop.f32.mrb[0].mxu0
        %2743 = vmatprep.mubr.bf16.mxu0 0
        %2744 = vmatmul.mubr.bf16.gmra.mrb[0].mxu0 %v2601
        %v2745 = vpop.f32.mrb[0].mxu0
        %v2746 = vadd.f32 0.0, %v2745
        %v2747 = vpop.f32.mrb[0].mxu0
        %v2748 = vpop.f32.mrb[0].mxu0
        %v2749 = vadd.f32 0.0, %v2748
        %v2750 = vpop.f32.mrb[0].mxu0
        %2751 = vmatprep.mubr.bf16.mxu0 0
        %2752 = vmatmul.mubr.bf16.gmra.mrb[0].mxu0 %v2604
        %v2753 = vpop.f32.mrb[0].mxu0
        %v2754 = vadd.f32 0.0, %v2753
        %v2755 = vpop.f32.mrb[0].mxu0
        %v2756 = vpop.f32.mrb[0].mxu0
        %v2757 = vadd.f32 0.0, %v2756
        %v2758 = vpop.f32.mrb[0].mxu0
        %2759 = vmatprep.mubr.bf16.mxu0 0
        %2760 = vmatmul.mubr.bf16.gmra.mrb[0].mxu0 %v2607
        %v2761 = vpop.f32.mrb[0].mxu0
        %v2762 = vadd.f32 0.0, %v2761
        %v2763 = vpop.f32.mrb[0].mxu0
        %v2764 = vpop.f32.mrb[0].mxu0
        %v2765 = vadd.f32 0.0, %v2764
        %v2766 = vpop.f32.mrb[0].mxu0
        %2767 = vmatprep.mubr.bf16.mxu0 0
        %2768 = vmatmul.mubr.bf16.gmra.mrb[0].mxu0 %v2610
        %v2769 = vpop.f32.mrb[0].mxu0
        %v2770 = vadd.f32 0.0, %v2769
        %v2771 = vpop.f32.mrb[0].mxu0
        %v2772 = vpop.f32.mrb[0].mxu0
        %v2773 = vadd.f32 0.0, %v2772
        %v2774 = vpop.f32.mrb[0].mxu0
        %2775 = vdwg.mxu0
        %v2776 = vadd.f32 %v2050, %v2650
        %v2777 = vadd.f32 %v2051, %v2653
        %v2778 = vadd.f32 %v2052, %v2658
        %v2779 = vadd.f32 %v2053, %v2661
        %v2780 = vadd.f32 %v2054, %v2666
        %v2781 = vadd.f32 %v2055, %v2669
        %v2782 = vadd.f32 %v2056, %v2674
        %v2783 = vadd.f32 %v2057, %v2677
        %v2784 = vadd.f32 %v2058, %v2682
        %v2785 = vadd.f32 %v2059, %v2685
        %v2786 = vadd.f32 %v2060, %v2690
        %v2787 = vadd.f32 %v2061, %v2693
        %v2788 = vadd.f32 %v2062, %v2698
        %v2789 = vadd.f32 %v2063, %v2701
        %v2790 = vadd.f32 %v2064, %v2706
        %v2791 = vadd.f32 %v2065, %v2709
        %v2792 = vadd.f32 %v2066, %v2714
        %v2793 = vadd.f32 %v2067, %v2717
        %v2794 = vadd.f32 %v2068, %v2722
        %v2795 = vadd.f32 %v2069, %v2725
        %v2796 = vadd.f32 %v2070, %v2730
        %v2797 = vadd.f32 %v2071, %v2733
        %v2798 = vadd.f32 %v2072, %v2738
        %v2799 = vadd.f32 %v2073, %v2741
        %v2800 = vadd.f32 %v2074, %v2746
        %v2801 = vadd.f32 %v2075, %v2749
        %v2802 = vadd.f32 %v2076, %v2754
        %v2803 = vadd.f32 %v2077, %v2757
        %v2804 = vadd.f32 %v2078, %v2762
        %v2805 = vadd.f32 %v2079, %v2765
        %v2806 = vadd.f32 %v2080, %v2770
        %v2807 = vadd.f32 %v2081, %v2773
        %v2808 = vld [vmem:[%s1723] sm:$0xe]
        %v2809 = vld [vmem:[%s1723 + $0xc] sm:$0xe]
        %v2810 = vld [vmem:[%s1723 + $0x18] sm:$0xe]
        %v2811 = vld [vmem:[%s1723 + $0x24] sm:$0xe]
        %v2812 = vld [vmem:[%s1723 + $0x30] sm:$0xe]
        %v2813 = vld [vmem:[%s1723 + $0x3c] sm:$0xe]
        %v2814 = vld [vmem:[%s1723 + $0x48] sm:$0xe]
        %v2815 = vld [vmem:[%s1723 + $0x54] sm:$0xe]
        %v2816 = vld [vmem:[%s1723 + $0x60] sm:$0xe]
        %v2817 = vld [vmem:[%s1723 + $0x6c] sm:$0xe]
        %v2818 = vld [vmem:[%s1723 + $0x78] sm:$0xe]
        %v2819 = vld [vmem:[%s1723 + $0x84] sm:$0xe]
        %v2820 = vld [vmem:[%s1723 + $0x90] sm:$0xe]
        %v2821 = vld [vmem:[%s1723 + $0x9c] sm:$0xe]
        %v2822 = vld [vmem:[%s1723 + $0xa8] sm:$0xe]
        %v2823 = vld [vmem:[%s1723 + $0xb4] sm:$0xe]
        %v2872 = vrot.slane %v2808, 5
        %v2873 = vrot.slane %v2872, 4
        %v2874 = vrot.slane %v2083, 5
        %v2875 = vsel %vm1313, %v2873, %v2874
        %v2876 = vrot.slane %v2874, 4
        %v2877 = vrot.slane %v2084, 5
        %v2878 = vsel %vm1313, %v2876, %v2877
        %v2879 = vrot.slane %v2809, 5
        %v2880 = vrot.slane %v2879, 4
        %v2881 = vrot.slane %v2086, 5
        %v2882 = vsel %vm1313, %v2880, %v2881
        %v2883 = vrot.slane %v2881, 4
        %v2884 = vrot.slane %v2087, 5
        %v2885 = vsel %vm1313, %v2883, %v2884
        %v2886 = vrot.slane %v2810, 5
        %v2887 = vrot.slane %v2886, 4
        %v2888 = vrot.slane %v2089, 5
        %v2889 = vsel %vm1313, %v2887, %v2888
        %v2890 = vrot.slane %v2888, 4
        %v2891 = vrot.slane %v2090, 5
        %v2892 = vsel %vm1313, %v2890, %v2891
        %v2893 = vrot.slane %v2811, 5
        %v2894 = vrot.slane %v2893, 4
        %v2895 = vrot.slane %v2092, 5
        %v2896 = vsel %vm1313, %v2894, %v2895
        %v2897 = vrot.slane %v2895, 4
        %v2898 = vrot.slane %v2093, 5
        %v2899 = vsel %vm1313, %v2897, %v2898
        %v2900 = vrot.slane %v2812, 5
        %v2901 = vrot.slane %v2900, 4
        %v2902 = vrot.slane %v2095, 5
        %v2903 = vsel %vm1313, %v2901, %v2902
        %v2904 = vrot.slane %v2902, 4
        %v2905 = vrot.slane %v2096, 5
        %v2906 = vsel %vm1313, %v2904, %v2905
        %v2907 = vrot.slane %v2813, 5
        %v2908 = vrot.slane %v2907, 4
        %v2909 = vrot.slane %v2098, 5
        %v2910 = vsel %vm1313, %v2908, %v2909
        %v2911 = vrot.slane %v2909, 4
        %v2912 = vrot.slane %v2099, 5
        %v2913 = vsel %vm1313, %v2911, %v2912
        %v2914 = vrot.slane %v2814, 5
        %v2915 = vrot.slane %v2914, 4
        %v2916 = vrot.slane %v2101, 5
        %v2917 = vsel %vm1313, %v2915, %v2916
        %v2918 = vrot.slane %v2916, 4
        %v2919 = vrot.slane %v2102, 5
        %v2920 = vsel %vm1313, %v2918, %v2919
        %v2921 = vrot.slane %v2815, 5
        %v2922 = vrot.slane %v2921, 4
        %v2923 = vrot.slane %v2104, 5
        %v2924 = vsel %vm1313, %v2922, %v2923
        %v2925 = vrot.slane %v2923, 4
        %v2926 = vrot.slane %v2105, 5
        %v2927 = vsel %vm1313, %v2925, %v2926
        %v2928 = vrot.slane %v2816, 5
        %v2929 = vrot.slane %v2928, 4
        %v2930 = vrot.slane %v2107, 5
        %v2931 = vsel %vm1313, %v2929, %v2930
        %v2932 = vrot.slane %v2930, 4
        %v2933 = vrot.slane %v2108, 5
        %v2934 = vsel %vm1313, %v2932, %v2933
        %v2935 = vrot.slane %v2817, 5
        %v2936 = vrot.slane %v2935, 4
        %v2937 = vrot.slane %v2110, 5
        %v2938 = vsel %vm1313, %v2936, %v2937
        %v2939 = vrot.slane %v2937, 4
        %v2940 = vrot.slane %v2111, 5
        %v2941 = vsel %vm1313, %v2939, %v2940
        %v2942 = vrot.slane %v2818, 5
        %v2943 = vrot.slane %v2942, 4
        %v2944 = vrot.slane %v2113, 5
        %v2945 = vsel %vm1313, %v2943, %v2944
        %v2946 = vrot.slane %v2944, 4
        %v2947 = vrot.slane %v2114, 5
        %v2948 = vsel %vm1313, %v2946, %v2947
        %v2949 = vrot.slane %v2819, 5
        %v2950 = vrot.slane %v2949, 4
        %v2951 = vrot.slane %v2116, 5
        %v2952 = vsel %vm1313, %v2950, %v2951
        %v2953 = vrot.slane %v2951, 4
        %v2954 = vrot.slane %v2117, 5
        %v2955 = vsel %vm1313, %v2953, %v2954
        %v2956 = vrot.slane %v2820, 5
        %v2957 = vrot.slane %v2956, 4
        %v2958 = vrot.slane %v2119, 5
        %v2959 = vsel %vm1313, %v2957, %v2958
        %v2960 = vrot.slane %v2958, 4
        %v2961 = vrot.slane %v2120, 5
        %v2962 = vsel %vm1313, %v2960, %v2961
        %v2963 = vrot.slane %v2821, 5
        %v2964 = vrot.slane %v2963, 4
        %v2965 = vrot.slane %v2122, 5
        %v2966 = vsel %vm1313, %v2964, %v2965
        %v2967 = vrot.slane %v2965, 4
        %v2968 = vrot.slane %v2123, 5
        %v2969 = vsel %vm1313, %v2967, %v2968
        %v2970 = vrot.slane %v2822, 5
        %v2971 = vrot.slane %v2970, 4
        %v2972 = vrot.slane %v2125, 5
        %v2973 = vsel %vm1313, %v2971, %v2972
        %v2974 = vrot.slane %v2972, 4
        %v2975 = vrot.slane %v2126, 5
        %v2976 = vsel %vm1313, %v2974, %v2975
        %v2977 = vrot.slane %v2823, 5
        %v2978 = vrot.slane %v2977, 4
        %v2979 = vrot.slane %v2128, 5
        %v2980 = vsel %vm1313, %v2978, %v2979
        %v2981 = vrot.slane %v2979, 4
        %v2982 = vrot.slane %v2129, 5
        %v2983 = vsel %vm1313, %v2981, %v2982
        %s2984 = scalar_lea.vmem %s257, 10
        %v2985 = vld [vmem:[%s2984] sm:$0x3]
        %v2986 = vunpack.c.l.b16 %v2875
        %v2987 = vunpack.c.l.b16 %v2878
        %v2988 = vunpack.c.l.b16 %v2882
        %v2989 = vunpack.c.l.b16 %v2885
        %v2990 = vunpack.c.l.b16 %v2889
        %v2991 = vunpack.c.l.b16 %v2892
        %v2992 = vunpack.c.l.b16 %v2896
        %v2993 = vunpack.c.l.b16 %v2899
        %v2994 = vunpack.c.l.b16 %v2903
        %v2995 = vunpack.c.l.b16 %v2906
        %v2996 = vunpack.c.l.b16 %v2910
        %v2997 = vunpack.c.l.b16 %v2913
        %v2998 = vunpack.c.l.b16 %v2917
        %v2999 = vunpack.c.l.b16 %v2920
        %v3000 = vunpack.c.l.b16 %v2924
        %v3001 = vunpack.c.l.b16 %v2927
        %v3002 = vunpack.c.l.b16 %v2931
        %v3003 = vunpack.c.l.b16 %v2934
        %v3004 = vunpack.c.l.b16 %v2938
        %v3005 = vunpack.c.l.b16 %v2941
        %v3006 = vunpack.c.l.b16 %v2945
        %v3007 = vunpack.c.l.b16 %v2948
        %v3008 = vunpack.c.l.b16 %v2952
        %v3009 = vunpack.c.l.b16 %v2955
        %v3010 = vunpack.c.l.b16 %v2959
        %v3011 = vunpack.c.l.b16 %v2962
        %v3012 = vunpack.c.l.b16 %v2966
        %v3013 = vunpack.c.l.b16 %v2969
        %v3014 = vunpack.c.l.b16 %v2973
        %v3015 = vunpack.c.l.b16 %v2976
        %v3016 = vunpack.c.l.b16 %v2980
        %v3017 = vunpack.c.l.b16 %v2983
        %v3018 = vpack.c.b16 %v2987, %v2986
        %v3019 = vpack.c.b16 %v2989, %v2988
        %v3020 = vpack.c.b16 %v2991, %v2990
        %v3021 = vpack.c.b16 %v2993, %v2992
        %v3022 = vpack.c.b16 %v2995, %v2994
        %v3023 = vpack.c.b16 %v2997, %v2996
        %v3024 = vpack.c.b16 %v2999, %v2998
        %v3025 = vpack.c.b16 %v3001, %v3000
        %v3026 = vpack.c.b16 %v3003, %v3002
        %v3027 = vpack.c.b16 %v3005, %v3004
        %v3028 = vpack.c.b16 %v3007, %v3006
        %v3029 = vpack.c.b16 %v3009, %v3008
        %v3030 = vpack.c.b16 %v3011, %v3010
        %v3031 = vpack.c.b16 %v3013, %v3012
        %v3032 = vpack.c.b16 %v3015, %v3014
        %v3033 = vpack.c.b16 %v3017, %v3016
        %v3035 = vsel %vm757, %v3018, 0
        %v3038 = vsel %vm757, %v3019, 0
        %v3041 = vsel %vm757, %v3020, 0
        %v3044 = vsel %vm757, %v3021, 0
        %v3047 = vsel %vm757, %v3022, 0
        %v3050 = vsel %vm757, %v3023, 0
        %v3053 = vsel %vm757, %v3024, 0
        %v3056 = vsel %vm757, %v3025, 0
        %v3059 = vsel %vm757, %v3026, 0
        %v3062 = vsel %vm757, %v3027, 0
        %v3065 = vsel %vm757, %v3028, 0
        %v3068 = vsel %vm757, %v3029, 0
        %v3071 = vsel %vm757, %v3030, 0
        %v3074 = vsel %vm757, %v3031, 0
        %v3077 = vsel %vm757, %v3032, 0
        %v3080 = vsel %vm757, %v3033, 0
        %v3083 = vsel %vm806, %v2985, 0
        %3085 = vmatprep.subr.bf16.mxu0 0
        %3086 = vmatpush1.bf16.msra.mxu0 %v3083
        %3087 = vmatprep.subr.bf16.mxu0 0
        %3088 = vmatpush1.bf16.msra.mxu0 0
        %3089 = vmatprep.subr.bf16.mxu0 0
        %3090 = vmatpush1.bf16.msra.mxu0 0
        %3091 = vmatprep.subr.bf16.mxu0 0
        %3092 = vmatpush1.bf16.msra.mxu0 0
        %3093 = vmatprep.subr.bf16.mxu0 0
        %3094 = vmatpush1.bf16.msra.mxu0 0
        %3095 = vmatprep.subr.bf16.mxu0 0
        %3096 = vmatpush1.bf16.msra.mxu0 0
        %3097 = vmatprep.subr.bf16.mxu0 0
        %3098 = vmatpush1.bf16.msra.mxu0 0
        %3099 = vmatprep.subr.bf16.mxu0 0
        %3100 = vmatpush1.bf16.msra.mxu0 0
        %3101 = vmatprep.subr.bf16.mxu0 0
        %3102 = vmatpush1.bf16.msra.mxu0 0
        %3103 = vmatprep.subr.bf16.mxu0 0
        %3104 = vmatpush1.bf16.msra.mxu0 0
        %3105 = vmatprep.subr.bf16.mxu0 0
        %3106 = vmatpush1.bf16.msra.mxu0 0
        %3107 = vmatprep.subr.bf16.mxu0 0
        %3108 = vmatpush1.bf16.msra.mxu0 0
        %3109 = vmatprep.subr.bf16.mxu0 0
        %3110 = vmatpush1.bf16.msra.mxu0 0
        %3111 = vmatprep.subr.bf16.mxu0 0
        %3112 = vmatpush1.bf16.msra.mxu0 0
        %3113 = vmatprep.subr.bf16.mxu0 0
        %3114 = vmatpush1.bf16.msra.mxu0 0
        %3115 = vmatprep.subr.bf16.mxu0 0
        %3116 = vmatpush1.bf16.msra.mxu0 0
        %3117 = vmatprep.mubr.bf16.mxu0 0
        %3118 = vmatmul.mubr.bf16.gmra.mrb[0].mxu0 %v3035
        %v3119 = vpop.f32.mrb[0].mxu0
        %v3120 = vadd.f32 0.0, %v3119
        %v3121 = vpop.f32.mrb[0].mxu0
        %v3122 = vpop.f32.mrb[0].mxu0
        %v3123 = vadd.f32 0.0, %v3122
        %v3124 = vpop.f32.mrb[0].mxu0
        %3125 = vmatprep.mubr.bf16.mxu0 0
        %3126 = vmatmul.mubr.bf16.gmra.mrb[0].mxu0 %v3038
        %v3127 = vpop.f32.mrb[0].mxu0
        %v3128 = vadd.f32 0.0, %v3127
        %v3129 = vpop.f32.mrb[0].mxu0
        %v3130 = vpop.f32.mrb[0].mxu0
        %v3131 = vadd.f32 0.0, %v3130
        %v3132 = vpop.f32.mrb[0].mxu0
        %3133 = vmatprep.mubr.bf16.mxu0 0
        %3134 = vmatmul.mubr.bf16.gmra.mrb[0].mxu0 %v3041
        %v3135 = vpop.f32.mrb[0].mxu0
        %v3136 = vadd.f32 0.0, %v3135
        %v3137 = vpop.f32.mrb[0].mxu0
        %v3138 = vpop.f32.mrb[0].mxu0
        %v3139 = vadd.f32 0.0, %v3138
        %v3140 = vpop.f32.mrb[0].mxu0
        %3141 = vmatprep.mubr.bf16.mxu0 0
        %3142 = vmatmul.mubr.bf16.gmra.mrb[0].mxu0 %v3044
        %v3143 = vpop.f32.mrb[0].mxu0
        %v3144 = vadd.f32 0.0, %v3143
        %v3145 = vpop.f32.mrb[0].mxu0
        %v3146 = vpop.f32.mrb[0].mxu0
        %v3147 = vadd.f32 0.0, %v3146
        %v3148 = vpop.f32.mrb[0].mxu0
        %3149 = vmatprep.mubr.bf16.mxu0 0
        %3150 = vmatmul.mubr.bf16.gmra.mrb[0].mxu0 %v3047
        %v3151 = vpop.f32.mrb[0].mxu0
        %v3152 = vadd.f32 0.0, %v3151
        %v3153 = vpop.f32.mrb[0].mxu0
        %v3154 = vpop.f32.mrb[0].mxu0
        %v3155 = vadd.f32 0.0, %v3154
        %v3156 = vpop.f32.mrb[0].mxu0
        %3157 = vmatprep.mubr.bf16.mxu0 0
        %3158 = vmatmul.mubr.bf16.gmra.mrb[0].mxu0 %v3050
        %v3159 = vpop.f32.mrb[0].mxu0
        %v3160 = vadd.f32 0.0, %v3159
        %v3161 = vpop.f32.mrb[0].mxu0
        %v3162 = vpop.f32.mrb[0].mxu0
        %v3163 = vadd.f32 0.0, %v3162
        %v3164 = vpop.f32.mrb[0].mxu0
        %3165 = vmatprep.mubr.bf16.mxu0 0
        %3166 = vmatmul.mubr.bf16.gmra.mrb[0].mxu0 %v3053
        %v3167 = vpop.f32.mrb[0].mxu0
        %v3168 = vadd.f32 0.0, %v3167
        %v3169 = vpop.f32.mrb[0].mxu0
        %v3170 = vpop.f32.mrb[0].mxu0
        %v3171 = vadd.f32 0.0, %v3170
        %v3172 = vpop.f32.mrb[0].mxu0
        %3173 = vmatprep.mubr.bf16.mxu0 0
        %3174 = vmatmul.mubr.bf16.gmra.mrb[0].mxu0 %v3056
        %v3175 = vpop.f32.mrb[0].mxu0
        %v3176 = vadd.f32 0.0, %v3175
        %v3177 = vpop.f32.mrb[0].mxu0
        %v3178 = vpop.f32.mrb[0].mxu0
        %v3179 = vadd.f32 0.0, %v3178
        %v3180 = vpop.f32.mrb[0].mxu0
        %3181 = vmatprep.mubr.bf16.mxu0 0
        %3182 = vmatmul.mubr.bf16.gmra.mrb[0].mxu0 %v3059
        %v3183 = vpop.f32.mrb[0].mxu0
        %v3184 = vadd.f32 0.0, %v3183
        %v3185 = vpop.f32.mrb[0].mxu0
        %v3186 = vpop.f32.mrb[0].mxu0
        %v3187 = vadd.f32 0.0, %v3186
        %v3188 = vpop.f32.mrb[0].mxu0
        %3189 = vmatprep.mubr.bf16.mxu0 0
        %3190 = vmatmul.mubr.bf16.gmra.mrb[0].mxu0 %v3062
        %v3191 = vpop.f32.mrb[0].mxu0
        %v3192 = vadd.f32 0.0, %v3191
        %v3193 = vpop.f32.mrb[0].mxu0
        %v3194 = vpop.f32.mrb[0].mxu0
        %v3195 = vadd.f32 0.0, %v3194
        %v3196 = vpop.f32.mrb[0].mxu0
        %3197 = vmatprep.mubr.bf16.mxu0 0
        %3198 = vmatmul.mubr.bf16.gmra.mrb[0].mxu0 %v3065
        %v3199 = vpop.f32.mrb[0].mxu0
        %v3200 = vadd.f32 0.0, %v3199
        %v3201 = vpop.f32.mrb[0].mxu0
        %v3202 = vpop.f32.mrb[0].mxu0
        %v3203 = vadd.f32 0.0, %v3202
        %v3204 = vpop.f32.mrb[0].mxu0
        %3205 = vmatprep.mubr.bf16.mxu0 0
        %3206 = vmatmul.mubr.bf16.gmra.mrb[0].mxu0 %v3068
        %v3207 = vpop.f32.mrb[0].mxu0
        %v3208 = vadd.f32 0.0, %v3207
        %v3209 = vpop.f32.mrb[0].mxu0
        %v3210 = vpop.f32.mrb[0].mxu0
        %v3211 = vadd.f32 0.0, %v3210
        %v3212 = vpop.f32.mrb[0].mxu0
        %3213 = vmatprep.mubr.bf16.mxu0 0
        %3214 = vmatmul.mubr.bf16.gmra.mrb[0].mxu0 %v3071
        %v3215 = vpop.f32.mrb[0].mxu0
        %v3216 = vadd.f32 0.0, %v3215
        %v3217 = vpop.f32.mrb[0].mxu0
        %v3218 = vpop.f32.mrb[0].mxu0
        %v3219 = vadd.f32 0.0, %v3218
        %v3220 = vpop.f32.mrb[0].mxu0
        %3221 = vmatprep.mubr.bf16.mxu0 0
        %3222 = vmatmul.mubr.bf16.gmra.mrb[0].mxu0 %v3074
        %v3223 = vpop.f32.mrb[0].mxu0
        %v3224 = vadd.f32 0.0, %v3223
        %v3225 = vpop.f32.mrb[0].mxu0
        %v3226 = vpop.f32.mrb[0].mxu0
        %v3227 = vadd.f32 0.0, %v3226
        %v3228 = vpop.f32.mrb[0].mxu0
        %3229 = vmatprep.mubr.bf16.mxu0 0
        %3230 = vmatmul.mubr.bf16.gmra.mrb[0].mxu0 %v3077
        %v3231 = vpop.f32.mrb[0].mxu0
        %v3232 = vadd.f32 0.0, %v3231
        %v3233 = vpop.f32.mrb[0].mxu0
        %v3234 = vpop.f32.mrb[0].mxu0
        %v3235 = vadd.f32 0.0, %v3234
        %v3236 = vpop.f32.mrb[0].mxu0
        %3237 = vmatprep.mubr.bf16.mxu0 0
        %3238 = vmatmul.mubr.bf16.gmra.mrb[0].mxu0 %v3080
        %v3239 = vpop.f32.mrb[0].mxu0
        %v3240 = vadd.f32 0.0, %v3239
        %v3241 = vpop.f32.mrb[0].mxu0
        %v3242 = vpop.f32.mrb[0].mxu0
        %v3243 = vadd.f32 0.0, %v3242
        %v3244 = vpop.f32.mrb[0].mxu0
        %3245 = vdwg.mxu0
        %v3246 = vadd.f32 %v2776, %v3120
        %v3247 = vadd.f32 %v2777, %v3123
        %v3248 = vadd.f32 %v2778, %v3128
        %v3249 = vadd.f32 %v2779, %v3131
        %v3250 = vadd.f32 %v2780, %v3136
        %v3251 = vadd.f32 %v2781, %v3139
        %v3252 = vadd.f32 %v2782, %v3144
        %v3253 = vadd.f32 %v2783, %v3147
        %v3254 = vadd.f32 %v2784, %v3152
        %v3255 = vadd.f32 %v2785, %v3155
        %v3256 = vadd.f32 %v2786, %v3160
        %v3257 = vadd.f32 %v2787, %v3163
        %v3258 = vadd.f32 %v2788, %v3168
        %v3259 = vadd.f32 %v2789, %v3171
        %v3260 = vadd.f32 %v2790, %v3176
        %v3261 = vadd.f32 %v2791, %v3179
        %v3262 = vadd.f32 %v2792, %v3184
        %v3263 = vadd.f32 %v2793, %v3187
        %v3264 = vadd.f32 %v2794, %v3192
        %v3265 = vadd.f32 %v2795, %v3195
        %v3266 = vadd.f32 %v2796, %v3200
        %v3267 = vadd.f32 %v2797, %v3203
        %v3268 = vadd.f32 %v2798, %v3208
        %v3269 = vadd.f32 %v2799, %v3211
        %v3270 = vadd.f32 %v2800, %v3216
        %v3271 = vadd.f32 %v2801, %v3219
        %v3272 = vadd.f32 %v2802, %v3224
        %v3273 = vadd.f32 %v2803, %v3227
        %v3274 = vadd.f32 %v2804, %v3232
        %v3275 = vadd.f32 %v2805, %v3235
        %v3276 = vadd.f32 %v2806, %v3240
        %v3277 = vadd.f32 %v2807, %v3243
        %s3278 = sadd.s32 %s267, 2
        %s3279 = smul.u32 %s3278, 3
        %s3280 = smul.addr %s3279, 4
        %s3281 = scalar_lea.vmem %s253, %s3280
        %v3282 = vld [vmem:[%s3281] sm:$0xf]
        %v3283 = vld [vmem:[%s3281 + $0x4] sm:$0xf]
        %v3284 = vld [vmem:[%s3281 + $0xc] sm:$0xf]
        %v3285 = vld [vmem:[%s3281 + $0x10] sm:$0xf]
        %v3286 = vld [vmem:[%s3281 + $0x18] sm:$0xf]
        %v3287 = vld [vmem:[%s3281 + $0x1c] sm:$0xf]
        %v3288 = vld [vmem:[%s3281 + $0x24] sm:$0xf]
        %v3289 = vld [vmem:[%s3281 + $0x28] sm:$0xf]
        %v3290 = vld [vmem:[%s3281 + $0x30] sm:$0xf]
        %v3291 = vld [vmem:[%s3281 + $0x34] sm:$0xf]
        %v3292 = vld [vmem:[%s3281 + $0x3c] sm:$0xf]
        %v3293 = vld [vmem:[%s3281 + $0x40] sm:$0xf]
        %v3294 = vld [vmem:[%s3281 + $0x48] sm:$0xf]
        %v3295 = vld [vmem:[%s3281 + $0x4c] sm:$0xf]
        %v3296 = vld [vmem:[%s3281 + $0x54] sm:$0xf]
        %v3297 = vld [vmem:[%s3281 + $0x58] sm:$0xf]
        %v3298 = vld [vmem:[%s3281 + $0x60] sm:$0xf]
        %v3299 = vld [vmem:[%s3281 + $0x64] sm:$0xf]
        %v3300 = vld [vmem:[%s3281 + $0x6c] sm:$0xf]
        %v3301 = vld [vmem:[%s3281 + $0x70] sm:$0xf]
        %v3302 = vld [vmem:[%s3281 + $0x78] sm:$0xf]
        %v3303 = vld [vmem:[%s3281 + $0x7c] sm:$0xf]
        %v3304 = vld [vmem:[%s3281 + $0x84] sm:$0xf]
        %v3305 = vld [vmem:[%s3281 + $0x88] sm:$0xf]
        %v3306 = vld [vmem:[%s3281 + $0x90] sm:$0xf]
        %v3307 = vld [vmem:[%s3281 + $0x94] sm:$0xf]
        %v3308 = vld [vmem:[%s3281 + $0x9c] sm:$0xf]
        %v3309 = vld [vmem:[%s3281 + $0xa0] sm:$0xf]
        %v3310 = vld [vmem:[%s3281 + $0xa8] sm:$0xf]
        %v3311 = vld [vmem:[%s3281 + $0xac] sm:$0xf]
        %v3312 = vld [vmem:[%s3281 + $0xb4] sm:$0xf]
        %v3313 = vld [vmem:[%s3281 + $0xb8] sm:$0xf]
        %s3314 = scalar_lea.vmem %s257, 12
        %v3315 = vld [vmem:[%s3314] sm:$0x3]
        %v3348 = vunpack.c.l.b16 %v3282
        %v3349 = vunpack.c.l.b16 %v3283
        %v3350 = vunpack.c.l.b16 %v3284
        %v3351 = vunpack.c.l.b16 %v3285
        %v3352 = vunpack.c.l.b16 %v3286
        %v3353 = vunpack.c.l.b16 %v3287
        %v3354 = vunpack.c.l.b16 %v3288
        %v3355 = vunpack.c.l.b16 %v3289
        %v3356 = vunpack.c.l.b16 %v3290
        %v3357 = vunpack.c.l.b16 %v3291
        %v3358 = vunpack.c.l.b16 %v3292
        %v3359 = vunpack.c.l.b16 %v3293
        %v3360 = vunpack.c.l.b16 %v3294
        %v3361 = vunpack.c.l.b16 %v3295
        %v3362 = vunpack.c.l.b16 %v3296
        %v3363 = vunpack.c.l.b16 %v3297
        %v3364 = vunpack.c.l.b16 %v3298
        %v3365 = vunpack.c.l.b16 %v3299
        %v3366 = vunpack.c.l.b16 %v3300
        %v3367 = vunpack.c.l.b16 %v3301
        %v3368 = vunpack.c.l.b16 %v3302
        %v3369 = vunpack.c.l.b16 %v3303
        %v3370 = vunpack.c.l.b16 %v3304
        %v3371 = vunpack.c.l.b16 %v3305
        %v3372 = vunpack.c.l.b16 %v3306
        %v3373 = vunpack.c.l.b16 %v3307
        %v3374 = vunpack.c.l.b16 %v3308
        %v3375 = vunpack.c.l.b16 %v3309
        %v3376 = vunpack.c.l.b16 %v3310
        %v3377 = vunpack.c.l.b16 %v3311
        %v3378 = vunpack.c.l.b16 %v3312
        %v3379 = vunpack.c.l.b16 %v3313
        %v3380 = vpack.c.b16 %v3349, %v3348
        %v3381 = vpack.c.b16 %v3351, %v3350
        %v3382 = vpack.c.b16 %v3353, %v3352
        %v3383 = vpack.c.b16 %v3355, %v3354
        %v3384 = vpack.c.b16 %v3357, %v3356
        %v3385 = vpack.c.b16 %v3359, %v3358
        %v3386 = vpack.c.b16 %v3361, %v3360
        %v3387 = vpack.c.b16 %v3363, %v3362
        %v3388 = vpack.c.b16 %v3365, %v3364
        %v3389 = vpack.c.b16 %v3367, %v3366
        %v3390 = vpack.c.b16 %v3369, %v3368
        %v3391 = vpack.c.b16 %v3371, %v3370
        %v3392 = vpack.c.b16 %v3373, %v3372
        %v3393 = vpack.c.b16 %v3375, %v3374
        %v3394 = vpack.c.b16 %v3377, %v3376
        %v3395 = vpack.c.b16 %v3379, %v3378
        %v3397 = vsel %vm757, %v3380, 0
        %v3400 = vsel %vm757, %v3381, 0
        %v3403 = vsel %vm757, %v3382, 0
        %v3406 = vsel %vm757, %v3383, 0
        %v3409 = vsel %vm757, %v3384, 0
        %v3412 = vsel %vm757, %v3385, 0
        %v3415 = vsel %vm757, %v3386, 0
        %v3418 = vsel %vm757, %v3387, 0
        %v3421 = vsel %vm757, %v3388, 0
        %v3424 = vsel %vm757, %v3389, 0
        %v3427 = vsel %vm757, %v3390, 0
        %v3430 = vsel %vm757, %v3391, 0
        %v3433 = vsel %vm757, %v3392, 0
        %v3436 = vsel %vm757, %v3393, 0
        %v3439 = vsel %vm757, %v3394, 0
        %v3442 = vsel %vm757, %v3395, 0
        %v3445 = vsel %vm806, %v3315, 0
        %3447 = vmatprep.subr.bf16.mxu0 0
        %3448 = vmatpush1.bf16.msra.mxu0 %v3445
        %3449 = vmatprep.subr.bf16.mxu0 0
        %3450 = vmatpush1.bf16.msra.mxu0 0
        %3451 = vmatprep.subr.bf16.mxu0 0
        %3452 = vmatpush1.bf16.msra.mxu0 0
        %3453 = vmatprep.subr.bf16.mxu0 0
        %3454 = vmatpush1.bf16.msra.mxu0 0
        %3455 = vmatprep.subr.bf16.mxu0 0
        %3456 = vmatpush1.bf16.msra.mxu0 0
        %3457 = vmatprep.subr.bf16.mxu0 0
        %3458 = vmatpush1.bf16.msra.mxu0 0
        %3459 = vmatprep.subr.bf16.mxu0 0
        %3460 = vmatpush1.bf16.msra.mxu0 0
        %3461 = vmatprep.subr.bf16.mxu0 0
        %3462 = vmatpush1.bf16.msra.mxu0 0
        %3463 = vmatprep.subr.bf16.mxu0 0
        %3464 = vmatpush1.bf16.msra.mxu0 0
        %3465 = vmatprep.subr.bf16.mxu0 0
        %3466 = vmatpush1.bf16.msra.mxu0 0
        %3467 = vmatprep.subr.bf16.mxu0 0
        %3468 = vmatpush1.bf16.msra.mxu0 0
        %3469 = vmatprep.subr.bf16.mxu0 0
        %3470 = vmatpush1.bf16.msra.mxu0 0
        %3471 = vmatprep.subr.bf16.mxu0 0
        %3472 = vmatpush1.bf16.msra.mxu0 0
        %3473 = vmatprep.subr.bf16.mxu0 0
        %3474 = vmatpush1.bf16.msra.mxu0 0
        %3475 = vmatprep.subr.bf16.mxu0 0
        %3476 = vmatpush1.bf16.msra.mxu0 0
        %3477 = vmatprep.subr.bf16.mxu0 0
        %3478 = vmatpush1.bf16.msra.mxu0 0
        %3479 = vmatprep.mubr.bf16.mxu0 0
        %3480 = vmatmul.mubr.bf16.gmra.mrb[0].mxu0 %v3397
        %v3481 = vpop.f32.mrb[0].mxu0
        %v3482 = vadd.f32 0.0, %v3481
        %v3483 = vpop.f32.mrb[0].mxu0
        %v3484 = vpop.f32.mrb[0].mxu0
        %v3485 = vadd.f32 0.0, %v3484
        %v3486 = vpop.f32.mrb[0].mxu0
        %3487 = vmatprep.mubr.bf16.mxu0 0
        %3488 = vmatmul.mubr.bf16.gmra.mrb[0].mxu0 %v3400
        %v3489 = vpop.f32.mrb[0].mxu0
        %v3490 = vadd.f32 0.0, %v3489
        %v3491 = vpop.f32.mrb[0].mxu0
        %v3492 = vpop.f32.mrb[0].mxu0
        %v3493 = vadd.f32 0.0, %v3492
        %v3494 = vpop.f32.mrb[0].mxu0
        %3495 = vmatprep.mubr.bf16.mxu0 0
        %3496 = vmatmul.mubr.bf16.gmra.mrb[0].mxu0 %v3403
        %v3497 = vpop.f32.mrb[0].mxu0
        %v3498 = vadd.f32 0.0, %v3497
        %v3499 = vpop.f32.mrb[0].mxu0
        %v3500 = vpop.f32.mrb[0].mxu0
        %v3501 = vadd.f32 0.0, %v3500
        %v3502 = vpop.f32.mrb[0].mxu0
        %3503 = vmatprep.mubr.bf16.mxu0 0
        %3504 = vmatmul.mubr.bf16.gmra.mrb[0].mxu0 %v3406
        %v3505 = vpop.f32.mrb[0].mxu0
        %v3506 = vadd.f32 0.0, %v3505
        %v3507 = vpop.f32.mrb[0].mxu0
        %v3508 = vpop.f32.mrb[0].mxu0
        %v3509 = vadd.f32 0.0, %v3508
        %v3510 = vpop.f32.mrb[0].mxu0
        %3511 = vmatprep.mubr.bf16.mxu0 0
        %3512 = vmatmul.mubr.bf16.gmra.mrb[0].mxu0 %v3409
        %v3513 = vpop.f32.mrb[0].mxu0
        %v3514 = vadd.f32 0.0, %v3513
        %v3515 = vpop.f32.mrb[0].mxu0
        %v3516 = vpop.f32.mrb[0].mxu0
        %v3517 = vadd.f32 0.0, %v3516
        %v3518 = vpop.f32.mrb[0].mxu0
        %3519 = vmatprep.mubr.bf16.mxu0 0
        %3520 = vmatmul.mubr.bf16.gmra.mrb[0].mxu0 %v3412
        %v3521 = vpop.f32.mrb[0].mxu0
        %v3522 = vadd.f32 0.0, %v3521
        %v3523 = vpop.f32.mrb[0].mxu0
        %v3524 = vpop.f32.mrb[0].mxu0
        %v3525 = vadd.f32 0.0, %v3524
        %v3526 = vpop.f32.mrb[0].mxu0
        %3527 = vmatprep.mubr.bf16.mxu0 0
        %3528 = vmatmul.mubr.bf16.gmra.mrb[0].mxu0 %v3415
        %v3529 = vpop.f32.mrb[0].mxu0
        %v3530 = vadd.f32 0.0, %v3529
        %v3531 = vpop.f32.mrb[0].mxu0
        %v3532 = vpop.f32.mrb[0].mxu0
        %v3533 = vadd.f32 0.0, %v3532
        %v3534 = vpop.f32.mrb[0].mxu0
        %3535 = vmatprep.mubr.bf16.mxu0 0
        %3536 = vmatmul.mubr.bf16.gmra.mrb[0].mxu0 %v3418
        %v3537 = vpop.f32.mrb[0].mxu0
        %v3538 = vadd.f32 0.0, %v3537
        %v3539 = vpop.f32.mrb[0].mxu0
        %v3540 = vpop.f32.mrb[0].mxu0
        %v3541 = vadd.f32 0.0, %v3540
        %v3542 = vpop.f32.mrb[0].mxu0
        %3543 = vmatprep.mubr.bf16.mxu0 0
        %3544 = vmatmul.mubr.bf16.gmra.mrb[0].mxu0 %v3421
        %v3545 = vpop.f32.mrb[0].mxu0
        %v3546 = vadd.f32 0.0, %v3545
        %v3547 = vpop.f32.mrb[0].mxu0
        %v3548 = vpop.f32.mrb[0].mxu0
        %v3549 = vadd.f32 0.0, %v3548
        %v3550 = vpop.f32.mrb[0].mxu0
        %3551 = vmatprep.mubr.bf16.mxu0 0
        %3552 = vmatmul.mubr.bf16.gmra.mrb[0].mxu0 %v3424
        %v3553 = vpop.f32.mrb[0].mxu0
        %v3554 = vadd.f32 0.0, %v3553
        %v3555 = vpop.f32.mrb[0].mxu0
        %v3556 = vpop.f32.mrb[0].mxu0
        %v3557 = vadd.f32 0.0, %v3556
        %v3558 = vpop.f32.mrb[0].mxu0
        %3559 = vmatprep.mubr.bf16.mxu0 0
        %3560 = vmatmul.mubr.bf16.gmra.mrb[0].mxu0 %v3427
        %v3561 = vpop.f32.mrb[0].mxu0
        %v3562 = vadd.f32 0.0, %v3561
        %v3563 = vpop.f32.mrb[0].mxu0
        %v3564 = vpop.f32.mrb[0].mxu0
        %v3565 = vadd.f32 0.0, %v3564
        %v3566 = vpop.f32.mrb[0].mxu0
        %3567 = vmatprep.mubr.bf16.mxu0 0
        %3568 = vmatmul.mubr.bf16.gmra.mrb[0].mxu0 %v3430
        %v3569 = vpop.f32.mrb[0].mxu0
        %v3570 = vadd.f32 0.0, %v3569
        %v3571 = vpop.f32.mrb[0].mxu0
        %v3572 = vpop.f32.mrb[0].mxu0
        %v3573 = vadd.f32 0.0, %v3572
        %v3574 = vpop.f32.mrb[0].mxu0
        %3575 = vmatprep.mubr.bf16.mxu0 0
        %3576 = vmatmul.mubr.bf16.gmra.mrb[0].mxu0 %v3433
        %v3577 = vpop.f32.mrb[0].mxu0
        %v3578 = vadd.f32 0.0, %v3577
        %v3579 = vpop.f32.mrb[0].mxu0
        %v3580 = vpop.f32.mrb[0].mxu0
        %v3581 = vadd.f32 0.0, %v3580
        %v3582 = vpop.f32.mrb[0].mxu0
        %3583 = vmatprep.mubr.bf16.mxu0 0
        %3584 = vmatmul.mubr.bf16.gmra.mrb[0].mxu0 %v3436
        %v3585 = vpop.f32.mrb[0].mxu0
        %v3586 = vadd.f32 0.0, %v3585
        %v3587 = vpop.f32.mrb[0].mxu0
        %v3588 = vpop.f32.mrb[0].mxu0
        %v3589 = vadd.f32 0.0, %v3588
        %v3590 = vpop.f32.mrb[0].mxu0
        %3591 = vmatprep.mubr.bf16.mxu0 0
        %3592 = vmatmul.mubr.bf16.gmra.mrb[0].mxu0 %v3439
        %v3593 = vpop.f32.mrb[0].mxu0
        %v3594 = vadd.f32 0.0, %v3593
        %v3595 = vpop.f32.mrb[0].mxu0
        %v3596 = vpop.f32.mrb[0].mxu0
        %v3597 = vadd.f32 0.0, %v3596
        %v3598 = vpop.f32.mrb[0].mxu0
        %3599 = vmatprep.mubr.bf16.mxu0 0
        %3600 = vmatmul.mubr.bf16.gmra.mrb[0].mxu0 %v3442
        %v3601 = vpop.f32.mrb[0].mxu0
        %v3602 = vadd.f32 0.0, %v3601
        %v3603 = vpop.f32.mrb[0].mxu0
        %v3604 = vpop.f32.mrb[0].mxu0
        %v3605 = vadd.f32 0.0, %v3604
        %v3606 = vpop.f32.mrb[0].mxu0
        %3607 = vdwg.mxu0
        %v3608 = vadd.f32 %v3246, %v3482
        %v3609 = vadd.f32 %v3247, %v3485
        %v3610 = vadd.f32 %v3248, %v3490
        %v3611 = vadd.f32 %v3249, %v3493
        %v3612 = vadd.f32 %v3250, %v3498
        %v3613 = vadd.f32 %v3251, %v3501
        %v3614 = vadd.f32 %v3252, %v3506
        %v3615 = vadd.f32 %v3253, %v3509
        %v3616 = vadd.f32 %v3254, %v3514
        %v3617 = vadd.f32 %v3255, %v3517
        %v3618 = vadd.f32 %v3256, %v3522
        %v3619 = vadd.f32 %v3257, %v3525
        %v3620 = vadd.f32 %v3258, %v3530
        %v3621 = vadd.f32 %v3259, %v3533
        %v3622 = vadd.f32 %v3260, %v3538
        %v3623 = vadd.f32 %v3261, %v3541
        %v3624 = vadd.f32 %v3262, %v3546
        %v3625 = vadd.f32 %v3263, %v3549
        %v3626 = vadd.f32 %v3264, %v3554
        %v3627 = vadd.f32 %v3265, %v3557
        %v3628 = vadd.f32 %v3266, %v3562
        %v3629 = vadd.f32 %v3267, %v3565
        %v3630 = vadd.f32 %v3268, %v3570
        %v3631 = vadd.f32 %v3269, %v3573
        %v3632 = vadd.f32 %v3270, %v3578
        %v3633 = vadd.f32 %v3271, %v3581
        %v3634 = vadd.f32 %v3272, %v3586
        %v3635 = vadd.f32 %v3273, %v3589
        %v3636 = vadd.f32 %v3274, %v3594
        %v3637 = vadd.f32 %v3275, %v3597
        %v3638 = vadd.f32 %v3276, %v3602
        %v3639 = vadd.f32 %v3277, %v3605
        %v3640 = vld [vmem:[%s3281] sm:$0xf]
        %v3641 = vld [vmem:[%s3281 + $0x4] sm:$0xf]
        %v3642 = vld [vmem:[%s3281 + $0x8] sm:$0x1]
        %v3643 = vld [vmem:[%s3281 + $0xc] sm:$0xf]
        %v3644 = vld [vmem:[%s3281 + $0x10] sm:$0xf]
        %v3645 = vld [vmem:[%s3281 + $0x14] sm:$0x1]
        %v3646 = vld [vmem:[%s3281 + $0x18] sm:$0xf]
        %v3647 = vld [vmem:[%s3281 + $0x1c] sm:$0xf]
        %v3648 = vld [vmem:[%s3281 + $0x20] sm:$0x1]
        %v3649 = vld [vmem:[%s3281 + $0x24] sm:$0xf]
        %v3650 = vld [vmem:[%s3281 + $0x28] sm:$0xf]
        %v3651 = vld [vmem:[%s3281 + $0x2c] sm:$0x1]
        %v3652 = vld [vmem:[%s3281 + $0x30] sm:$0xf]
        %v3653 = vld [vmem:[%s3281 + $0x34] sm:$0xf]
        %v3654 = vld [vmem:[%s3281 + $0x38] sm:$0x1]
        %v3655 = vld [vmem:[%s3281 + $0x3c] sm:$0xf]
        %v3656 = vld [vmem:[%s3281 + $0x40] sm:$0xf]
        %v3657 = vld [vmem:[%s3281 + $0x44] sm:$0x1]
        %v3658 = vld [vmem:[%s3281 + $0x48] sm:$0xf]
        %v3659 = vld [vmem:[%s3281 + $0x4c] sm:$0xf]
        %v3660 = vld [vmem:[%s3281 + $0x50] sm:$0x1]
        %v3661 = vld [vmem:[%s3281 + $0x54] sm:$0xf]
        %v3662 = vld [vmem:[%s3281 + $0x58] sm:$0xf]
        %v3663 = vld [vmem:[%s3281 + $0x5c] sm:$0x1]
        %v3664 = vld [vmem:[%s3281 + $0x60] sm:$0xf]
        %v3665 = vld [vmem:[%s3281 + $0x64] sm:$0xf]
        %v3666 = vld [vmem:[%s3281 + $0x68] sm:$0x1]
        %v3667 = vld [vmem:[%s3281 + $0x6c] sm:$0xf]
        %v3668 = vld [vmem:[%s3281 + $0x70] sm:$0xf]
        %v3669 = vld [vmem:[%s3281 + $0x74] sm:$0x1]
        %v3670 = vld [vmem:[%s3281 + $0x78] sm:$0xf]
        %v3671 = vld [vmem:[%s3281 + $0x7c] sm:$0xf]
        %v3672 = vld [vmem:[%s3281 + $0x80] sm:$0x1]
        %v3673 = vld [vmem:[%s3281 + $0x84] sm:$0xf]
        %v3674 = vld [vmem:[%s3281 + $0x88] sm:$0xf]
        %v3675 = vld [vmem:[%s3281 + $0x8c] sm:$0x1]
        %v3676 = vld [vmem:[%s3281 + $0x90] sm:$0xf]
        %v3677 = vld [vmem:[%s3281 + $0x94] sm:$0xf]
        %v3678 = vld [vmem:[%s3281 + $0x98] sm:$0x1]
        %v3679 = vld [vmem:[%s3281 + $0x9c] sm:$0xf]
        %v3680 = vld [vmem:[%s3281 + $0xa0] sm:$0xf]
        %v3681 = vld [vmem:[%s3281 + $0xa4] sm:$0x1]
        %v3682 = vld [vmem:[%s3281 + $0xa8] sm:$0xf]
        %v3683 = vld [vmem:[%s3281 + $0xac] sm:$0xf]
        %v3684 = vld [vmem:[%s3281 + $0xb0] sm:$0x1]
        %v3685 = vld [vmem:[%s3281 + $0xb4] sm:$0xf]
        %v3686 = vld [vmem:[%s3281 + $0xb8] sm:$0xf]
        %v3687 = vld [vmem:[%s3281 + $0xbc] sm:$0x1]
        %v3689 = vshrl.u32 %v3640, 16
        %v3691 = vrot.slane %v3689, 4
        %v3692 = vshll.u32 %v3640, 16
        %v3694 = vrot.slane %v3692, 5
        %v3695 = vor.u32 %v3691, %v3694
        %v3696 = vrot.slane %v3695, 4
        %v3698 = vshll.u32 %v3641, 16
        %v3700 = vrot.slane %v3698, 5
        %v3701 = vsel %vm322, %v3696, %v3700
        %v3702 = vshrl.u32 %v3641, 16
        %v3704 = vrot.slane %v3702, 4
        %v3705 = vor.u32 %v3704, %v3700
        %v3706 = vrot.slane %v3705, 4
        %v3708 = vshll.u32 %v3642, 16
        %v3710 = vrot.slane %v3708, 5
        %v3711 = vsel %vm322, %v3706, %v3710
        %v3713 = vshrl.u32 %v3643, 16
        %v3715 = vrot.slane %v3713, 4
        %v3716 = vshll.u32 %v3643, 16
        %v3718 = vrot.slane %v3716, 5
        %v3719 = vor.u32 %v3715, %v3718
        %v3720 = vrot.slane %v3719, 4
        %v3722 = vshll.u32 %v3644, 16
        %v3724 = vrot.slane %v3722, 5
        %v3725 = vsel %vm322, %v3720, %v3724
        %v3726 = vshrl.u32 %v3644, 16
        %v3728 = vrot.slane %v3726, 4
        %v3729 = vor.u32 %v3728, %v3724
        %v3730 = vrot.slane %v3729, 4
        %v3732 = vshll.u32 %v3645, 16
        %v3734 = vrot.slane %v3732, 5
        %v3735 = vsel %vm322, %v3730, %v3734
        %v3737 = vshrl.u32 %v3646, 16
        %v3739 = vrot.slane %v3737, 4
        %v3740 = vshll.u32 %v3646, 16
        %v3742 = vrot.slane %v3740, 5
        %v3743 = vor.u32 %v3739, %v3742
        %v3744 = vrot.slane %v3743, 4
        %v3746 = vshll.u32 %v3647, 16
        %v3748 = vrot.slane %v3746, 5
        %v3749 = vsel %vm322, %v3744, %v3748
        %v3750 = vshrl.u32 %v3647, 16
        %v3752 = vrot.slane %v3750, 4
        %v3753 = vor.u32 %v3752, %v3748
        %v3754 = vrot.slane %v3753, 4
        %v3756 = vshll.u32 %v3648, 16
        %v3758 = vrot.slane %v3756, 5
        %v3759 = vsel %vm322, %v3754, %v3758
        %v3761 = vshrl.u32 %v3649, 16
        %v3763 = vrot.slane %v3761, 4
        %v3764 = vshll.u32 %v3649, 16
        %v3766 = vrot.slane %v3764, 5
        %v3767 = vor.u32 %v3763, %v3766
        %v3768 = vrot.slane %v3767, 4
        %v3770 = vshll.u32 %v3650, 16
        %v3772 = vrot.slane %v3770, 5
        %v3773 = vsel %vm322, %v3768, %v3772
        %v3774 = vshrl.u32 %v3650, 16
        %v3776 = vrot.slane %v3774, 4
        %v3777 = vor.u32 %v3776, %v3772
        %v3778 = vrot.slane %v3777, 4
        %v3780 = vshll.u32 %v3651, 16
        %v3782 = vrot.slane %v3780, 5
        %v3783 = vsel %vm322, %v3778, %v3782
        %v3785 = vshrl.u32 %v3652, 16
        %v3787 = vrot.slane %v3785, 4
        %v3788 = vshll.u32 %v3652, 16
        %v3790 = vrot.slane %v3788, 5
        %v3791 = vor.u32 %v3787, %v3790
        %v3792 = vrot.slane %v3791, 4
        %v3794 = vshll.u32 %v3653, 16
        %v3796 = vrot.slane %v3794, 5
        %v3797 = vsel %vm322, %v3792, %v3796
        %v3798 = vshrl.u32 %v3653, 16
        %v3800 = vrot.slane %v3798, 4
        %v3801 = vor.u32 %v3800, %v3796
        %v3802 = vrot.slane %v3801, 4
        %v3804 = vshll.u32 %v3654, 16
        %v3806 = vrot.slane %v3804, 5
        %v3807 = vsel %vm322, %v3802, %v3806
        %v3809 = vshrl.u32 %v3655, 16
        %v3811 = vrot.slane %v3809, 4
        %v3812 = vshll.u32 %v3655, 16
        %v3814 = vrot.slane %v3812, 5
        %v3815 = vor.u32 %v3811, %v3814
        %v3816 = vrot.slane %v3815, 4
        %v3818 = vshll.u32 %v3656, 16
        %v3820 = vrot.slane %v3818, 5
        %v3821 = vsel %vm322, %v3816, %v3820
        %v3822 = vshrl.u32 %v3656, 16
        %v3824 = vrot.slane %v3822, 4
        %v3825 = vor.u32 %v3824, %v3820
        %v3826 = vrot.slane %v3825, 4
        %v3828 = vshll.u32 %v3657, 16
        %v3830 = vrot.slane %v3828, 5
        %v3831 = vsel %vm322, %v3826, %v3830
        %v3833 = vshrl.u32 %v3658, 16
        %v3835 = vrot.slane %v3833, 4
        %v3836 = vshll.u32 %v3658, 16
        %v3838 = vrot.slane %v3836, 5
        %v3839 = vor.u32 %v3835, %v3838
        %v3840 = vrot.slane %v3839, 4
        %v3842 = vshll.u32 %v3659, 16
        %v3844 = vrot.slane %v3842, 5
        %v3845 = vsel %vm322, %v3840, %v3844
        %v3846 = vshrl.u32 %v3659, 16
        %v3848 = vrot.slane %v3846, 4
        %v3849 = vor.u32 %v3848, %v3844
        %v3850 = vrot.slane %v3849, 4
        %v3852 = vshll.u32 %v3660, 16
        %v3854 = vrot.slane %v3852, 5
        %v3855 = vsel %vm322, %v3850, %v3854
        %v3857 = vshrl.u32 %v3661, 16
        %v3859 = vrot.slane %v3857, 4
        %v3860 = vshll.u32 %v3661, 16
        %v3862 = vrot.slane %v3860, 5
        %v3863 = vor.u32 %v3859, %v3862
        %v3864 = vrot.slane %v3863, 4
        %v3866 = vshll.u32 %v3662, 16
        %v3868 = vrot.slane %v3866, 5
        %v3869 = vsel %vm322, %v3864, %v3868
        %v3870 = vshrl.u32 %v3662, 16
        %v3872 = vrot.slane %v3870, 4
        %v3873 = vor.u32 %v3872, %v3868
        %v3874 = vrot.slane %v3873, 4
        %v3876 = vshll.u32 %v3663, 16
        %v3878 = vrot.slane %v3876, 5
        %v3879 = vsel %vm322, %v3874, %v3878
        %v3881 = vshrl.u32 %v3664, 16
        %v3883 = vrot.slane %v3881, 4
        %v3884 = vshll.u32 %v3664, 16
        %v3886 = vrot.slane %v3884, 5
        %v3887 = vor.u32 %v3883, %v3886
        %v3888 = vrot.slane %v3887, 4
        %v3890 = vshll.u32 %v3665, 16
        %v3892 = vrot.slane %v3890, 5
        %v3893 = vsel %vm322, %v3888, %v3892
        %v3894 = vshrl.u32 %v3665, 16
        %v3896 = vrot.slane %v3894, 4
        %v3897 = vor.u32 %v3896, %v3892
        %v3898 = vrot.slane %v3897, 4
        %v3900 = vshll.u32 %v3666, 16
        %v3902 = vrot.slane %v3900, 5
        %v3903 = vsel %vm322, %v3898, %v3902
        %v3905 = vshrl.u32 %v3667, 16
        %v3907 = vrot.slane %v3905, 4
        %v3908 = vshll.u32 %v3667, 16
        %v3910 = vrot.slane %v3908, 5
        %v3911 = vor.u32 %v3907, %v3910
        %v3912 = vrot.slane %v3911, 4
        %v3914 = vshll.u32 %v3668, 16
        %v3916 = vrot.slane %v3914, 5
        %v3917 = vsel %vm322, %v3912, %v3916
        %v3918 = vshrl.u32 %v3668, 16
        %v3920 = vrot.slane %v3918, 4
        %v3921 = vor.u32 %v3920, %v3916
        %v3922 = vrot.slane %v3921, 4
        %v3924 = vshll.u32 %v3669, 16
        %v3926 = vrot.slane %v3924, 5
        %v3927 = vsel %vm322, %v3922, %v3926
        %v3929 = vshrl.u32 %v3670, 16
        %v3931 = vrot.slane %v3929, 4
        %v3932 = vshll.u32 %v3670, 16
        %v3934 = vrot.slane %v3932, 5
        %v3935 = vor.u32 %v3931, %v3934
        %v3936 = vrot.slane %v3935, 4
        %v3938 = vshll.u32 %v3671, 16
        %v3940 = vrot.slane %v3938, 5
        %v3941 = vsel %vm322, %v3936, %v3940
        %v3942 = vshrl.u32 %v3671, 16
        %v3944 = vrot.slane %v3942, 4
        %v3945 = vor.u32 %v3944, %v3940
        %v3946 = vrot.slane %v3945, 4
        %v3948 = vshll.u32 %v3672, 16
        %v3950 = vrot.slane %v3948, 5
        %v3951 = vsel %vm322, %v3946, %v3950
        %v3953 = vshrl.u32 %v3673, 16
        %v3955 = vrot.slane %v3953, 4
        %v3956 = vshll.u32 %v3673, 16
        %v3958 = vrot.slane %v3956, 5
        %v3959 = vor.u32 %v3955, %v3958
        %v3960 = vrot.slane %v3959, 4
        %v3962 = vshll.u32 %v3674, 16
        %v3964 = vrot.slane %v3962, 5
        %v3965 = vsel %vm322, %v3960, %v3964
        %v3966 = vshrl.u32 %v3674, 16
        %v3968 = vrot.slane %v3966, 4
        %v3969 = vor.u32 %v3968, %v3964
        %v3970 = vrot.slane %v3969, 4
        %v3972 = vshll.u32 %v3675, 16
        %v3974 = vrot.slane %v3972, 5
        %v3975 = vsel %vm322, %v3970, %v3974
        %v3977 = vshrl.u32 %v3676, 16
        %v3979 = vrot.slane %v3977, 4
        %v3980 = vshll.u32 %v3676, 16
        %v3982 = vrot.slane %v3980, 5
        %v3983 = vor.u32 %v3979, %v3982
        %v3984 = vrot.slane %v3983, 4
        %v3986 = vshll.u32 %v3677, 16
        %v3988 = vrot.slane %v3986, 5
        %v3989 = vsel %vm322, %v3984, %v3988
        %v3990 = vshrl.u32 %v3677, 16
        %v3992 = vrot.slane %v3990, 4
        %v3993 = vor.u32 %v3992, %v3988
        %v3994 = vrot.slane %v3993, 4
        %v3996 = vshll.u32 %v3678, 16
        %v3998 = vrot.slane %v3996, 5
        %v3999 = vsel %vm322, %v3994, %v3998
        %v4001 = vshrl.u32 %v3679, 16
        %v4003 = vrot.slane %v4001, 4
        %v4004 = vshll.u32 %v3679, 16
        %v4006 = vrot.slane %v4004, 5
        %v4007 = vor.u32 %v4003, %v4006
        %v4008 = vrot.slane %v4007, 4
        %v4010 = vshll.u32 %v3680, 16
        %v4012 = vrot.slane %v4010, 5
        %v4013 = vsel %vm322, %v4008, %v4012
        %v4014 = vshrl.u32 %v3680, 16
        %v4016 = vrot.slane %v4014, 4
        %v4017 = vor.u32 %v4016, %v4012
        %v4018 = vrot.slane %v4017, 4
        %v4020 = vshll.u32 %v3681, 16
        %v4022 = vrot.slane %v4020, 5
        %v4023 = vsel %vm322, %v4018, %v4022
        %v4025 = vshrl.u32 %v3682, 16
        %v4027 = vrot.slane %v4025, 4
        %v4028 = vshll.u32 %v3682, 16
        %v4030 = vrot.slane %v4028, 5
        %v4031 = vor.u32 %v4027, %v4030
        %v4032 = vrot.slane %v4031, 4
        %v4034 = vshll.u32 %v3683, 16
        %v4036 = vrot.slane %v4034, 5
        %v4037 = vsel %vm322, %v4032, %v4036
        %v4038 = vshrl.u32 %v3683, 16
        %v4040 = vrot.slane %v4038, 4
        %v4041 = vor.u32 %v4040, %v4036
        %v4042 = vrot.slane %v4041, 4
        %v4044 = vshll.u32 %v3684, 16
        %v4046 = vrot.slane %v4044, 5
        %v4047 = vsel %vm322, %v4042, %v4046
        %v4049 = vshrl.u32 %v3685, 16
        %v4051 = vrot.slane %v4049, 4
        %v4052 = vshll.u32 %v3685, 16
        %v4054 = vrot.slane %v4052, 5
        %v4055 = vor.u32 %v4051, %v4054
        %v4056 = vrot.slane %v4055, 4
        %v4058 = vshll.u32 %v3686, 16
        %v4060 = vrot.slane %v4058, 5
        %v4061 = vsel %vm322, %v4056, %v4060
        %v4062 = vshrl.u32 %v3686, 16
        %v4064 = vrot.slane %v4062, 4
        %v4065 = vor.u32 %v4064, %v4060
        %v4066 = vrot.slane %v4065, 4
        %v4068 = vshll.u32 %v3687, 16
        %v4070 = vrot.slane %v4068, 5
        %v4071 = vsel %vm322, %v4066, %v4070
        %s4072 = scalar_lea.vmem %s257, 14
        %v4073 = vld [vmem:[%s4072] sm:$0x3]
        %v4074 = vunpack.c.l.b16 %v3701
        %v4075 = vunpack.c.l.b16 %v3711
        %v4076 = vunpack.c.l.b16 %v3725
        %v4077 = vunpack.c.l.b16 %v3735
        %v4078 = vunpack.c.l.b16 %v3749
        %v4079 = vunpack.c.l.b16 %v3759
        %v4080 = vunpack.c.l.b16 %v3773
        %v4081 = vunpack.c.l.b16 %v3783
        %v4082 = vunpack.c.l.b16 %v3797
        %v4083 = vunpack.c.l.b16 %v3807
        %v4084 = vunpack.c.l.b16 %v3821
        %v4085 = vunpack.c.l.b16 %v3831
        %v4086 = vunpack.c.l.b16 %v3845
        %v4087 = vunpack.c.l.b16 %v3855
        %v4088 = vunpack.c.l.b16 %v3869
        %v4089 = vunpack.c.l.b16 %v3879
        %v4090 = vunpack.c.l.b16 %v3893
        %v4091 = vunpack.c.l.b16 %v3903
        %v4092 = vunpack.c.l.b16 %v3917
        %v4093 = vunpack.c.l.b16 %v3927
        %v4094 = vunpack.c.l.b16 %v3941
        %v4095 = vunpack.c.l.b16 %v3951
        %v4096 = vunpack.c.l.b16 %v3965
        %v4097 = vunpack.c.l.b16 %v3975
        %v4098 = vunpack.c.l.b16 %v3989
        %v4099 = vunpack.c.l.b16 %v3999
        %v4100 = vunpack.c.l.b16 %v4013
        %v4101 = vunpack.c.l.b16 %v4023
        %v4102 = vunpack.c.l.b16 %v4037
        %v4103 = vunpack.c.l.b16 %v4047
        %v4104 = vunpack.c.l.b16 %v4061
        %v4105 = vunpack.c.l.b16 %v4071
        %v4106 = vpack.c.b16 %v4075, %v4074
        %v4107 = vpack.c.b16 %v4077, %v4076
        %v4108 = vpack.c.b16 %v4079, %v4078
        %v4109 = vpack.c.b16 %v4081, %v4080
        %v4110 = vpack.c.b16 %v4083, %v4082
        %v4111 = vpack.c.b16 %v4085, %v4084
        %v4112 = vpack.c.b16 %v4087, %v4086
        %v4113 = vpack.c.b16 %v4089, %v4088
        %v4114 = vpack.c.b16 %v4091, %v4090
        %v4115 = vpack.c.b16 %v4093, %v4092
        %v4116 = vpack.c.b16 %v4095, %v4094
        %v4117 = vpack.c.b16 %v4097, %v4096
        %v4118 = vpack.c.b16 %v4099, %v4098
        %v4119 = vpack.c.b16 %v4101, %v4100
        %v4120 = vpack.c.b16 %v4103, %v4102
        %v4121 = vpack.c.b16 %v4105, %v4104
        %v4123 = vsel %vm757, %v4106, 0
        %v4126 = vsel %vm757, %v4107, 0
        %v4129 = vsel %vm757, %v4108, 0
        %v4132 = vsel %vm757, %v4109, 0
        %v4135 = vsel %vm757, %v4110, 0
        %v4138 = vsel %vm757, %v4111, 0
        %v4141 = vsel %vm757, %v4112, 0
        %v4144 = vsel %vm757, %v4113, 0
        %v4147 = vsel %vm757, %v4114, 0
        %v4150 = vsel %vm757, %v4115, 0
        %v4153 = vsel %vm757, %v4116, 0
        %v4156 = vsel %vm757, %v4117, 0
        %v4159 = vsel %vm757, %v4118, 0
        %v4162 = vsel %vm757, %v4119, 0
        %v4165 = vsel %vm757, %v4120, 0
        %v4168 = vsel %vm757, %v4121, 0
        %v4171 = vsel %vm806, %v4073, 0
        %4173 = vmatprep.subr.bf16.mxu0 0
        %4174 = vmatpush1.bf16.msra.mxu0 %v4171
        %4175 = vmatprep.subr.bf16.mxu0 0
        %4176 = vmatpush1.bf16.msra.mxu0 0
        %4177 = vmatprep.subr.bf16.mxu0 0
        %4178 = vmatpush1.bf16.msra.mxu0 0
        %4179 = vmatprep.subr.bf16.mxu0 0
        %4180 = vmatpush1.bf16.msra.mxu0 0
        %4181 = vmatprep.subr.bf16.mxu0 0
        %4182 = vmatpush1.bf16.msra.mxu0 0
        %4183 = vmatprep.subr.bf16.mxu0 0
        %4184 = vmatpush1.bf16.msra.mxu0 0
        %4185 = vmatprep.subr.bf16.mxu0 0
        %4186 = vmatpush1.bf16.msra.mxu0 0
        %4187 = vmatprep.subr.bf16.mxu0 0
        %4188 = vmatpush1.bf16.msra.mxu0 0
        %4189 = vmatprep.subr.bf16.mxu0 0
        %4190 = vmatpush1.bf16.msra.mxu0 0
        %4191 = vmatprep.subr.bf16.mxu0 0
        %4192 = vmatpush1.bf16.msra.mxu0 0
        %4193 = vmatprep.subr.bf16.mxu0 0
        %4194 = vmatpush1.bf16.msra.mxu0 0
        %4195 = vmatprep.subr.bf16.mxu0 0
        %4196 = vmatpush1.bf16.msra.mxu0 0
        %4197 = vmatprep.subr.bf16.mxu0 0
        %4198 = vmatpush1.bf16.msra.mxu0 0
        %4199 = vmatprep.subr.bf16.mxu0 0
        %4200 = vmatpush1.bf16.msra.mxu0 0
        %4201 = vmatprep.subr.bf16.mxu0 0
        %4202 = vmatpush1.bf16.msra.mxu0 0
        %4203 = vmatprep.subr.bf16.mxu0 0
        %4204 = vmatpush1.bf16.msra.mxu0 0
        %4205 = vmatprep.mubr.bf16.mxu0 0
        %4206 = vmatmul.mubr.bf16.gmra.mrb[0].mxu0 %v4123
        %v4207 = vpop.f32.mrb[0].mxu0
        %v4208 = vadd.f32 0.0, %v4207
        %v4209 = vpop.f32.mrb[0].mxu0
        %v4210 = vpop.f32.mrb[0].mxu0
        %v4211 = vadd.f32 0.0, %v4210
        %v4212 = vpop.f32.mrb[0].mxu0
        %4213 = vmatprep.mubr.bf16.mxu0 0
        %4214 = vmatmul.mubr.bf16.gmra.mrb[0].mxu0 %v4126
        %v4215 = vpop.f32.mrb[0].mxu0
        %v4216 = vadd.f32 0.0, %v4215
        %v4217 = vpop.f32.mrb[0].mxu0
        %v4218 = vpop.f32.mrb[0].mxu0
        %v4219 = vadd.f32 0.0, %v4218
        %v4220 = vpop.f32.mrb[0].mxu0
        %4221 = vmatprep.mubr.bf16.mxu0 0
        %4222 = vmatmul.mubr.bf16.gmra.mrb[0].mxu0 %v4129
        %v4223 = vpop.f32.mrb[0].mxu0
        %v4224 = vadd.f32 0.0, %v4223
        %v4225 = vpop.f32.mrb[0].mxu0
        %v4226 = vpop.f32.mrb[0].mxu0
        %v4227 = vadd.f32 0.0, %v4226
        %v4228 = vpop.f32.mrb[0].mxu0
        %4229 = vmatprep.mubr.bf16.mxu0 0
        %4230 = vmatmul.mubr.bf16.gmra.mrb[0].mxu0 %v4132
        %v4231 = vpop.f32.mrb[0].mxu0
        %v4232 = vadd.f32 0.0, %v4231
        %v4233 = vpop.f32.mrb[0].mxu0
        %v4234 = vpop.f32.mrb[0].mxu0
        %v4235 = vadd.f32 0.0, %v4234
        %v4236 = vpop.f32.mrb[0].mxu0
        %4237 = vmatprep.mubr.bf16.mxu0 0
        %4238 = vmatmul.mubr.bf16.gmra.mrb[0].mxu0 %v4135
        %v4239 = vpop.f32.mrb[0].mxu0
        %v4240 = vadd.f32 0.0, %v4239
        %v4241 = vpop.f32.mrb[0].mxu0
        %v4242 = vpop.f32.mrb[0].mxu0
        %v4243 = vadd.f32 0.0, %v4242
        %v4244 = vpop.f32.mrb[0].mxu0
        %4245 = vmatprep.mubr.bf16.mxu0 0
        %4246 = vmatmul.mubr.bf16.gmra.mrb[0].mxu0 %v4138
        %v4247 = vpop.f32.mrb[0].mxu0
        %v4248 = vadd.f32 0.0, %v4247
        %v4249 = vpop.f32.mrb[0].mxu0
        %v4250 = vpop.f32.mrb[0].mxu0
        %v4251 = vadd.f32 0.0, %v4250
        %v4252 = vpop.f32.mrb[0].mxu0
        %4253 = vmatprep.mubr.bf16.mxu0 0
        %4254 = vmatmul.mubr.bf16.gmra.mrb[0].mxu0 %v4141
        %v4255 = vpop.f32.mrb[0].mxu0
        %v4256 = vadd.f32 0.0, %v4255
        %v4257 = vpop.f32.mrb[0].mxu0
        %v4258 = vpop.f32.mrb[0].mxu0
        %v4259 = vadd.f32 0.0, %v4258
        %v4260 = vpop.f32.mrb[0].mxu0
        %4261 = vmatprep.mubr.bf16.mxu0 0
        %4262 = vmatmul.mubr.bf16.gmra.mrb[0].mxu0 %v4144
        %v4263 = vpop.f32.mrb[0].mxu0
        %v4264 = vadd.f32 0.0, %v4263
        %v4265 = vpop.f32.mrb[0].mxu0
        %v4266 = vpop.f32.mrb[0].mxu0
        %v4267 = vadd.f32 0.0, %v4266
        %v4268 = vpop.f32.mrb[0].mxu0
        %4269 = vmatprep.mubr.bf16.mxu0 0
        %4270 = vmatmul.mubr.bf16.gmra.mrb[0].mxu0 %v4147
        %v4271 = vpop.f32.mrb[0].mxu0
        %v4272 = vadd.f32 0.0, %v4271
        %v4273 = vpop.f32.mrb[0].mxu0
        %v4274 = vpop.f32.mrb[0].mxu0
        %v4275 = vadd.f32 0.0, %v4274
        %v4276 = vpop.f32.mrb[0].mxu0
        %4277 = vmatprep.mubr.bf16.mxu0 0
        %4278 = vmatmul.mubr.bf16.gmra.mrb[0].mxu0 %v4150
        %v4279 = vpop.f32.mrb[0].mxu0
        %v4280 = vadd.f32 0.0, %v4279
        %v4281 = vpop.f32.mrb[0].mxu0
        %v4282 = vpop.f32.mrb[0].mxu0
        %v4283 = vadd.f32 0.0, %v4282
        %v4284 = vpop.f32.mrb[0].mxu0
        %4285 = vmatprep.mubr.bf16.mxu0 0
        %4286 = vmatmul.mubr.bf16.gmra.mrb[0].mxu0 %v4153
        %v4287 = vpop.f32.mrb[0].mxu0
        %v4288 = vadd.f32 0.0, %v4287
        %v4289 = vpop.f32.mrb[0].mxu0
        %v4290 = vpop.f32.mrb[0].mxu0
        %v4291 = vadd.f32 0.0, %v4290
        %v4292 = vpop.f32.mrb[0].mxu0
        %4293 = vmatprep.mubr.bf16.mxu0 0
        %4294 = vmatmul.mubr.bf16.gmra.mrb[0].mxu0 %v4156
        %v4295 = vpop.f32.mrb[0].mxu0
        %v4296 = vadd.f32 0.0, %v4295
        %v4297 = vpop.f32.mrb[0].mxu0
        %v4298 = vpop.f32.mrb[0].mxu0
        %v4299 = vadd.f32 0.0, %v4298
        %v4300 = vpop.f32.mrb[0].mxu0
        %4301 = vmatprep.mubr.bf16.mxu0 0
        %4302 = vmatmul.mubr.bf16.gmra.mrb[0].mxu0 %v4159
        %v4303 = vpop.f32.mrb[0].mxu0
        %v4304 = vadd.f32 0.0, %v4303
        %v4305 = vpop.f32.mrb[0].mxu0
        %v4306 = vpop.f32.mrb[0].mxu0
        %v4307 = vadd.f32 0.0, %v4306
        %v4308 = vpop.f32.mrb[0].mxu0
        %4309 = vmatprep.mubr.bf16.mxu0 0
        %4310 = vmatmul.mubr.bf16.gmra.mrb[0].mxu0 %v4162
        %v4311 = vpop.f32.mrb[0].mxu0
        %v4312 = vadd.f32 0.0, %v4311
        %v4313 = vpop.f32.mrb[0].mxu0
        %v4314 = vpop.f32.mrb[0].mxu0
        %v4315 = vadd.f32 0.0, %v4314
        %v4316 = vpop.f32.mrb[0].mxu0
        %4317 = vmatprep.mubr.bf16.mxu0 0
        %4318 = vmatmul.mubr.bf16.gmra.mrb[0].mxu0 %v4165
        %v4319 = vpop.f32.mrb[0].mxu0
        %v4320 = vadd.f32 0.0, %v4319
        %v4321 = vpop.f32.mrb[0].mxu0
        %v4322 = vpop.f32.mrb[0].mxu0
        %v4323 = vadd.f32 0.0, %v4322
        %v4324 = vpop.f32.mrb[0].mxu0
        %4325 = vmatprep.mubr.bf16.mxu0 0
        %4326 = vmatmul.mubr.bf16.gmra.mrb[0].mxu0 %v4168
        %v4327 = vpop.f32.mrb[0].mxu0
        %v4328 = vadd.f32 0.0, %v4327
        %v4329 = vpop.f32.mrb[0].mxu0
        %v4330 = vpop.f32.mrb[0].mxu0
        %v4331 = vadd.f32 0.0, %v4330
        %v4332 = vpop.f32.mrb[0].mxu0
        %4333 = vdwg.mxu0
        %v4334 = vadd.f32 %v3608, %v4208
        %v4335 = vadd.f32 %v3609, %v4211
        %v4336 = vadd.f32 %v3610, %v4216
        %v4337 = vadd.f32 %v3611, %v4219
        %v4338 = vadd.f32 %v3612, %v4224
        %v4339 = vadd.f32 %v3613, %v4227
        %v4340 = vadd.f32 %v3614, %v4232
        %v4341 = vadd.f32 %v3615, %v4235
        %v4342 = vadd.f32 %v3616, %v4240
        %v4343 = vadd.f32 %v3617, %v4243
        %v4344 = vadd.f32 %v3618, %v4248
        %v4345 = vadd.f32 %v3619, %v4251
        %v4346 = vadd.f32 %v3620, %v4256
        %v4347 = vadd.f32 %v3621, %v4259
        %v4348 = vadd.f32 %v3622, %v4264
        %v4349 = vadd.f32 %v3623, %v4267
        %v4350 = vadd.f32 %v3624, %v4272
        %v4351 = vadd.f32 %v3625, %v4275
        %v4352 = vadd.f32 %v3626, %v4280
        %v4353 = vadd.f32 %v3627, %v4283
        %v4354 = vadd.f32 %v3628, %v4288
        %v4355 = vadd.f32 %v3629, %v4291
        %v4356 = vadd.f32 %v3630, %v4296
        %v4357 = vadd.f32 %v3631, %v4299
        %v4358 = vadd.f32 %v3632, %v4304
        %v4359 = vadd.f32 %v3633, %v4307
        %v4360 = vadd.f32 %v3634, %v4312
        %v4361 = vadd.f32 %v3635, %v4315
        %v4362 = vadd.f32 %v3636, %v4320
        %v4363 = vadd.f32 %v3637, %v4323
        %v4364 = vadd.f32 %v3638, %v4328
        %v4365 = vadd.f32 %v3639, %v4331
        %v4366 = vld [vmem:[%s3281] sm:$0xe]
        %v4367 = vld [vmem:[%s3281 + $0xc] sm:$0xe]
        %v4368 = vld [vmem:[%s3281 + $0x18] sm:$0xe]
        %v4369 = vld [vmem:[%s3281 + $0x24] sm:$0xe]
        %v4370 = vld [vmem:[%s3281 + $0x30] sm:$0xe]
        %v4371 = vld [vmem:[%s3281 + $0x3c] sm:$0xe]
        %v4372 = vld [vmem:[%s3281 + $0x48] sm:$0xe]
        %v4373 = vld [vmem:[%s3281 + $0x54] sm:$0xe]
        %v4374 = vld [vmem:[%s3281 + $0x60] sm:$0xe]
        %v4375 = vld [vmem:[%s3281 + $0x6c] sm:$0xe]
        %v4376 = vld [vmem:[%s3281 + $0x78] sm:$0xe]
        %v4377 = vld [vmem:[%s3281 + $0x84] sm:$0xe]
        %v4378 = vld [vmem:[%s3281 + $0x90] sm:$0xe]
        %v4379 = vld [vmem:[%s3281 + $0x9c] sm:$0xe]
        %v4380 = vld [vmem:[%s3281 + $0xa8] sm:$0xe]
        %v4381 = vld [vmem:[%s3281 + $0xb4] sm:$0xe]
        %v4430 = vrot.slane %v4366, 5
        %v4431 = vrot.slane %v4430, 4
        %v4432 = vrot.slane %v3641, 5
        %v4433 = vsel %vm1313, %v4431, %v4432
        %v4434 = vrot.slane %v4432, 4
        %v4435 = vrot.slane %v3642, 5
        %v4436 = vsel %vm1313, %v4434, %v4435
        %v4437 = vrot.slane %v4367, 5
        %v4438 = vrot.slane %v4437, 4
        %v4439 = vrot.slane %v3644, 5
        %v4440 = vsel %vm1313, %v4438, %v4439
        %v4441 = vrot.slane %v4439, 4
        %v4442 = vrot.slane %v3645, 5
        %v4443 = vsel %vm1313, %v4441, %v4442
        %v4444 = vrot.slane %v4368, 5
        %v4445 = vrot.slane %v4444, 4
        %v4446 = vrot.slane %v3647, 5
        %v4447 = vsel %vm1313, %v4445, %v4446
        %v4448 = vrot.slane %v4446, 4
        %v4449 = vrot.slane %v3648, 5
        %v4450 = vsel %vm1313, %v4448, %v4449
        %v4451 = vrot.slane %v4369, 5
        %v4452 = vrot.slane %v4451, 4
        %v4453 = vrot.slane %v3650, 5
        %v4454 = vsel %vm1313, %v4452, %v4453
        %v4455 = vrot.slane %v4453, 4
        %v4456 = vrot.slane %v3651, 5
        %v4457 = vsel %vm1313, %v4455, %v4456
        %v4458 = vrot.slane %v4370, 5
        %v4459 = vrot.slane %v4458, 4
        %v4460 = vrot.slane %v3653, 5
        %v4461 = vsel %vm1313, %v4459, %v4460
        %v4462 = vrot.slane %v4460, 4
        %v4463 = vrot.slane %v3654, 5
        %v4464 = vsel %vm1313, %v4462, %v4463
        %v4465 = vrot.slane %v4371, 5
        %v4466 = vrot.slane %v4465, 4
        %v4467 = vrot.slane %v3656, 5
        %v4468 = vsel %vm1313, %v4466, %v4467
        %v4469 = vrot.slane %v4467, 4
        %v4470 = vrot.slane %v3657, 5
        %v4471 = vsel %vm1313, %v4469, %v4470
        %v4472 = vrot.slane %v4372, 5
        %v4473 = vrot.slane %v4472, 4
        %v4474 = vrot.slane %v3659, 5
        %v4475 = vsel %vm1313, %v4473, %v4474
        %v4476 = vrot.slane %v4474, 4
        %v4477 = vrot.slane %v3660, 5
        %v4478 = vsel %vm1313, %v4476, %v4477
        %v4479 = vrot.slane %v4373, 5
        %v4480 = vrot.slane %v4479, 4
        %v4481 = vrot.slane %v3662, 5
        %v4482 = vsel %vm1313, %v4480, %v4481
        %v4483 = vrot.slane %v4481, 4
        %v4484 = vrot.slane %v3663, 5
        %v4485 = vsel %vm1313, %v4483, %v4484
        %v4486 = vrot.slane %v4374, 5
        %v4487 = vrot.slane %v4486, 4
        %v4488 = vrot.slane %v3665, 5
        %v4489 = vsel %vm1313, %v4487, %v4488
        %v4490 = vrot.slane %v4488, 4
        %v4491 = vrot.slane %v3666, 5
        %v4492 = vsel %vm1313, %v4490, %v4491
        %v4493 = vrot.slane %v4375, 5
        %v4494 = vrot.slane %v4493, 4
        %v4495 = vrot.slane %v3668, 5
        %v4496 = vsel %vm1313, %v4494, %v4495
        %v4497 = vrot.slane %v4495, 4
        %v4498 = vrot.slane %v3669, 5
        %v4499 = vsel %vm1313, %v4497, %v4498
        %v4500 = vrot.slane %v4376, 5
        %v4501 = vrot.slane %v4500, 4
        %v4502 = vrot.slane %v3671, 5
        %v4503 = vsel %vm1313, %v4501, %v4502
        %v4504 = vrot.slane %v4502, 4
        %v4505 = vrot.slane %v3672, 5
        %v4506 = vsel %vm1313, %v4504, %v4505
        %v4507 = vrot.slane %v4377, 5
        %v4508 = vrot.slane %v4507, 4
        %v4509 = vrot.slane %v3674, 5
        %v4510 = vsel %vm1313, %v4508, %v4509
        %v4511 = vrot.slane %v4509, 4
        %v4512 = vrot.slane %v3675, 5
        %v4513 = vsel %vm1313, %v4511, %v4512
        %v4514 = vrot.slane %v4378, 5
        %v4515 = vrot.slane %v4514, 4
        %v4516 = vrot.slane %v3677, 5
        %v4517 = vsel %vm1313, %v4515, %v4516
        %v4518 = vrot.slane %v4516, 4
        %v4519 = vrot.slane %v3678, 5
        %v4520 = vsel %vm1313, %v4518, %v4519
        %v4521 = vrot.slane %v4379, 5
        %v4522 = vrot.slane %v4521, 4
        %v4523 = vrot.slane %v3680, 5
        %v4524 = vsel %vm1313, %v4522, %v4523
        %v4525 = vrot.slane %v4523, 4
        %v4526 = vrot.slane %v3681, 5
        %v4527 = vsel %vm1313, %v4525, %v4526
        %v4528 = vrot.slane %v4380, 5
        %v4529 = vrot.slane %v4528, 4
        %v4530 = vrot.slane %v3683, 5
        %v4531 = vsel %vm1313, %v4529, %v4530
        %v4532 = vrot.slane %v4530, 4
        %v4533 = vrot.slane %v3684, 5
        %v4534 = vsel %vm1313, %v4532, %v4533
        %v4535 = vrot.slane %v4381, 5
        %v4536 = vrot.slane %v4535, 4
        %v4537 = vrot.slane %v3686, 5
        %v4538 = vsel %vm1313, %v4536, %v4537
        %v4539 = vrot.slane %v4537, 4
        %v4540 = vrot.slane %v3687, 5
        %v4541 = vsel %vm1313, %v4539, %v4540
        %s4542 = scalar_lea.vmem %s257, 16
        %v4543 = vld [vmem:[%s4542] sm:$0x3]
        %v4544 = vunpack.c.l.b16 %v4433
        %v4545 = vunpack.c.l.b16 %v4436
        %v4546 = vunpack.c.l.b16 %v4440
        %v4547 = vunpack.c.l.b16 %v4443
        %v4548 = vunpack.c.l.b16 %v4447
        %v4549 = vunpack.c.l.b16 %v4450
        %v4550 = vunpack.c.l.b16 %v4454
        %v4551 = vunpack.c.l.b16 %v4457
        %v4552 = vunpack.c.l.b16 %v4461
        %v4553 = vunpack.c.l.b16 %v4464
        %v4554 = vunpack.c.l.b16 %v4468
        %v4555 = vunpack.c.l.b16 %v4471
        %v4556 = vunpack.c.l.b16 %v4475
        %v4557 = vunpack.c.l.b16 %v4478
        %v4558 = vunpack.c.l.b16 %v4482
        %v4559 = vunpack.c.l.b16 %v4485
        %v4560 = vunpack.c.l.b16 %v4489
        %v4561 = vunpack.c.l.b16 %v4492
        %v4562 = vunpack.c.l.b16 %v4496
        %v4563 = vunpack.c.l.b16 %v4499
        %v4564 = vunpack.c.l.b16 %v4503
        %v4565 = vunpack.c.l.b16 %v4506
        %v4566 = vunpack.c.l.b16 %v4510
        %v4567 = vunpack.c.l.b16 %v4513
        %v4568 = vunpack.c.l.b16 %v4517
        %v4569 = vunpack.c.l.b16 %v4520
        %v4570 = vunpack.c.l.b16 %v4524
        %v4571 = vunpack.c.l.b16 %v4527
        %v4572 = vunpack.c.l.b16 %v4531
        %v4573 = vunpack.c.l.b16 %v4534
        %v4574 = vunpack.c.l.b16 %v4538
        %v4575 = vunpack.c.l.b16 %v4541
        %v4576 = vpack.c.b16 %v4545, %v4544
        %v4577 = vpack.c.b16 %v4547, %v4546
        %v4578 = vpack.c.b16 %v4549, %v4548
        %v4579 = vpack.c.b16 %v4551, %v4550
        %v4580 = vpack.c.b16 %v4553, %v4552
        %v4581 = vpack.c.b16 %v4555, %v4554
        %v4582 = vpack.c.b16 %v4557, %v4556
        %v4583 = vpack.c.b16 %v4559, %v4558
        %v4584 = vpack.c.b16 %v4561, %v4560
        %v4585 = vpack.c.b16 %v4563, %v4562
        %v4586 = vpack.c.b16 %v4565, %v4564
        %v4587 = vpack.c.b16 %v4567, %v4566
        %v4588 = vpack.c.b16 %v4569, %v4568
        %v4589 = vpack.c.b16 %v4571, %v4570
        %v4590 = vpack.c.b16 %v4573, %v4572
        %v4591 = vpack.c.b16 %v4575, %v4574
        %v4593 = vsel %vm757, %v4576, 0
        %v4596 = vsel %vm757, %v4577, 0
        %v4599 = vsel %vm757, %v4578, 0
        %v4602 = vsel %vm757, %v4579, 0
        %v4605 = vsel %vm757, %v4580, 0
        %v4608 = vsel %vm757, %v4581, 0
        %v4611 = vsel %vm757, %v4582, 0
        %v4614 = vsel %vm757, %v4583, 0
        %v4617 = vsel %vm757, %v4584, 0
        %v4620 = vsel %vm757, %v4585, 0
        %v4623 = vsel %vm757, %v4586, 0
        %v4626 = vsel %vm757, %v4587, 0
        %v4629 = vsel %vm757, %v4588, 0
        %v4632 = vsel %vm757, %v4589, 0
        %v4635 = vsel %vm757, %v4590, 0
        %v4638 = vsel %vm757, %v4591, 0
        %v4641 = vsel %vm806, %v4543, 0
        %4643 = vmatprep.subr.bf16.mxu0 0
        %4644 = vmatpush1.bf16.msra.mxu0 %v4641
        %4645 = vmatprep.subr.bf16.mxu0 0
        %4646 = vmatpush1.bf16.msra.mxu0 0
        %4647 = vmatprep.subr.bf16.mxu0 0
        %4648 = vmatpush1.bf16.msra.mxu0 0
        %4649 = vmatprep.subr.bf16.mxu0 0
        %4650 = vmatpush1.bf16.msra.mxu0 0
        %4651 = vmatprep.subr.bf16.mxu0 0
        %4652 = vmatpush1.bf16.msra.mxu0 0
        %4653 = vmatprep.subr.bf16.mxu0 0
        %4654 = vmatpush1.bf16.msra.mxu0 0
        %4655 = vmatprep.subr.bf16.mxu0 0
        %4656 = vmatpush1.bf16.msra.mxu0 0
        %4657 = vmatprep.subr.bf16.mxu0 0
        %4658 = vmatpush1.bf16.msra.mxu0 0
        %4659 = vmatprep.subr.bf16.mxu0 0
        %4660 = vmatpush1.bf16.msra.mxu0 0
        %4661 = vmatprep.subr.bf16.mxu0 0
        %4662 = vmatpush1.bf16.msra.mxu0 0
        %4663 = vmatprep.subr.bf16.mxu0 0
        %4664 = vmatpush1.bf16.msra.mxu0 0
        %4665 = vmatprep.subr.bf16.mxu0 0
        %4666 = vmatpush1.bf16.msra.mxu0 0
        %4667 = vmatprep.subr.bf16.mxu0 0
        %4668 = vmatpush1.bf16.msra.mxu0 0
        %4669 = vmatprep.subr.bf16.mxu0 0
        %4670 = vmatpush1.bf16.msra.mxu0 0
        %4671 = vmatprep.subr.bf16.mxu0 0
        %4672 = vmatpush1.bf16.msra.mxu0 0
        %4673 = vmatprep.subr.bf16.mxu0 0
        %4674 = vmatpush1.bf16.msra.mxu0 0
        %4675 = vmatprep.mubr.bf16.mxu0 0
        %4676 = vmatmul.mubr.bf16.gmra.mrb[0].mxu0 %v4593
        %v4677 = vpop.f32.mrb[0].mxu0
        %v4678 = vadd.f32 0.0, %v4677
        %v4679 = vpop.f32.mrb[0].mxu0
        %v4680 = vpop.f32.mrb[0].mxu0
        %v4681 = vadd.f32 0.0, %v4680
        %v4682 = vpop.f32.mrb[0].mxu0
        %4683 = vmatprep.mubr.bf16.mxu0 0
        %4684 = vmatmul.mubr.bf16.gmra.mrb[0].mxu0 %v4596
        %v4685 = vpop.f32.mrb[0].mxu0
        %v4686 = vadd.f32 0.0, %v4685
        %v4687 = vpop.f32.mrb[0].mxu0
        %v4688 = vpop.f32.mrb[0].mxu0
        %v4689 = vadd.f32 0.0, %v4688
        %v4690 = vpop.f32.mrb[0].mxu0
        %4691 = vmatprep.mubr.bf16.mxu0 0
        %4692 = vmatmul.mubr.bf16.gmra.mrb[0].mxu0 %v4599
        %v4693 = vpop.f32.mrb[0].mxu0
        %v4694 = vadd.f32 0.0, %v4693
        %v4695 = vpop.f32.mrb[0].mxu0
        %v4696 = vpop.f32.mrb[0].mxu0
        %v4697 = vadd.f32 0.0, %v4696
        %v4698 = vpop.f32.mrb[0].mxu0
        %4699 = vmatprep.mubr.bf16.mxu0 0
        %4700 = vmatmul.mubr.bf16.gmra.mrb[0].mxu0 %v4602
        %v4701 = vpop.f32.mrb[0].mxu0
        %v4702 = vadd.f32 0.0, %v4701
        %v4703 = vpop.f32.mrb[0].mxu0
        %v4704 = vpop.f32.mrb[0].mxu0
        %v4705 = vadd.f32 0.0, %v4704
        %v4706 = vpop.f32.mrb[0].mxu0
        %4707 = vmatprep.mubr.bf16.mxu0 0
        %4708 = vmatmul.mubr.bf16.gmra.mrb[0].mxu0 %v4605
        %v4709 = vpop.f32.mrb[0].mxu0
        %v4710 = vadd.f32 0.0, %v4709
        %v4711 = vpop.f32.mrb[0].mxu0
        %v4712 = vpop.f32.mrb[0].mxu0
        %v4713 = vadd.f32 0.0, %v4712
        %v4714 = vpop.f32.mrb[0].mxu0
        %4715 = vmatprep.mubr.bf16.mxu0 0
        %4716 = vmatmul.mubr.bf16.gmra.mrb[0].mxu0 %v4608
        %v4717 = vpop.f32.mrb[0].mxu0
        %v4718 = vadd.f32 0.0, %v4717
        %v4719 = vpop.f32.mrb[0].mxu0
        %v4720 = vpop.f32.mrb[0].mxu0
        %v4721 = vadd.f32 0.0, %v4720
        %v4722 = vpop.f32.mrb[0].mxu0
        %4723 = vmatprep.mubr.bf16.mxu0 0
        %4724 = vmatmul.mubr.bf16.gmra.mrb[0].mxu0 %v4611
        %v4725 = vpop.f32.mrb[0].mxu0
        %v4726 = vadd.f32 0.0, %v4725
        %v4727 = vpop.f32.mrb[0].mxu0
        %v4728 = vpop.f32.mrb[0].mxu0
        %v4729 = vadd.f32 0.0, %v4728
        %v4730 = vpop.f32.mrb[0].mxu0
        %4731 = vmatprep.mubr.bf16.mxu0 0
        %4732 = vmatmul.mubr.bf16.gmra.mrb[0].mxu0 %v4614
        %v4733 = vpop.f32.mrb[0].mxu0
        %v4734 = vadd.f32 0.0, %v4733
        %v4735 = vpop.f32.mrb[0].mxu0
        %v4736 = vpop.f32.mrb[0].mxu0
        %v4737 = vadd.f32 0.0, %v4736
        %v4738 = vpop.f32.mrb[0].mxu0
        %4739 = vmatprep.mubr.bf16.mxu0 0
        %4740 = vmatmul.mubr.bf16.gmra.mrb[0].mxu0 %v4617
        %v4741 = vpop.f32.mrb[0].mxu0
        %v4742 = vadd.f32 0.0, %v4741
        %v4743 = vpop.f32.mrb[0].mxu0
        %v4744 = vpop.f32.mrb[0].mxu0
        %v4745 = vadd.f32 0.0, %v4744
        %v4746 = vpop.f32.mrb[0].mxu0
        %4747 = vmatprep.mubr.bf16.mxu0 0
        %4748 = vmatmul.mubr.bf16.gmra.mrb[0].mxu0 %v4620
        %v4749 = vpop.f32.mrb[0].mxu0
        %v4750 = vadd.f32 0.0, %v4749
        %v4751 = vpop.f32.mrb[0].mxu0
        %v4752 = vpop.f32.mrb[0].mxu0
        %v4753 = vadd.f32 0.0, %v4752
        %v4754 = vpop.f32.mrb[0].mxu0
        %4755 = vmatprep.mubr.bf16.mxu0 0
        %4756 = vmatmul.mubr.bf16.gmra.mrb[0].mxu0 %v4623
        %v4757 = vpop.f32.mrb[0].mxu0
        %v4758 = vadd.f32 0.0, %v4757
        %v4759 = vpop.f32.mrb[0].mxu0
        %v4760 = vpop.f32.mrb[0].mxu0
        %v4761 = vadd.f32 0.0, %v4760
        %v4762 = vpop.f32.mrb[0].mxu0
        %4763 = vmatprep.mubr.bf16.mxu0 0
        %4764 = vmatmul.mubr.bf16.gmra.mrb[0].mxu0 %v4626
        %v4765 = vpop.f32.mrb[0].mxu0
        %v4766 = vadd.f32 0.0, %v4765
        %v4767 = vpop.f32.mrb[0].mxu0
        %v4768 = vpop.f32.mrb[0].mxu0
        %v4769 = vadd.f32 0.0, %v4768
        %v4770 = vpop.f32.mrb[0].mxu0
        %4771 = vmatprep.mubr.bf16.mxu0 0
        %4772 = vmatmul.mubr.bf16.gmra.mrb[0].mxu0 %v4629
        %v4773 = vpop.f32.mrb[0].mxu0
        %v4774 = vadd.f32 0.0, %v4773
        %v4775 = vpop.f32.mrb[0].mxu0
        %v4776 = vpop.f32.mrb[0].mxu0
        %v4777 = vadd.f32 0.0, %v4776
        %v4778 = vpop.f32.mrb[0].mxu0
        %4779 = vmatprep.mubr.bf16.mxu0 0
        %4780 = vmatmul.mubr.bf16.gmra.mrb[0].mxu0 %v4632
        %v4781 = vpop.f32.mrb[0].mxu0
        %v4782 = vadd.f32 0.0, %v4781
        %v4783 = vpop.f32.mrb[0].mxu0
        %v4784 = vpop.f32.mrb[0].mxu0
        %v4785 = vadd.f32 0.0, %v4784
        %v4786 = vpop.f32.mrb[0].mxu0
        %4787 = vmatprep.mubr.bf16.mxu0 0
        %4788 = vmatmul.mubr.bf16.gmra.mrb[0].mxu0 %v4635
        %v4789 = vpop.f32.mrb[0].mxu0
        %v4790 = vadd.f32 0.0, %v4789
        %v4791 = vpop.f32.mrb[0].mxu0
        %v4792 = vpop.f32.mrb[0].mxu0
        %v4793 = vadd.f32 0.0, %v4792
        %v4794 = vpop.f32.mrb[0].mxu0
        %4795 = vmatprep.mubr.bf16.mxu0 0
        %4796 = vmatmul.mubr.bf16.gmra.mrb[0].mxu0 %v4638
        %v4797 = vpop.f32.mrb[0].mxu0
        %v4798 = vadd.f32 0.0, %v4797
        %v4799 = vpop.f32.mrb[0].mxu0
        %v4800 = vpop.f32.mrb[0].mxu0
        %v4801 = vadd.f32 0.0, %v4800
        %v4802 = vpop.f32.mrb[0].mxu0
        %4803 = vdwg.mxu0
        %v4804 = vadd.f32 %v4334, %v4678
        %v4805 = vadd.f32 %v4335, %v4681
        %v4806 = vadd.f32 %v4336, %v4686
        %v4807 = vadd.f32 %v4337, %v4689
        %v4808 = vadd.f32 %v4338, %v4694
        %v4809 = vadd.f32 %v4339, %v4697
        %v4810 = vadd.f32 %v4340, %v4702
        %v4811 = vadd.f32 %v4341, %v4705
        %v4812 = vadd.f32 %v4342, %v4710
        %v4813 = vadd.f32 %v4343, %v4713
        %v4814 = vadd.f32 %v4344, %v4718
        %v4815 = vadd.f32 %v4345, %v4721
        %v4816 = vadd.f32 %v4346, %v4726
        %v4817 = vadd.f32 %v4347, %v4729
        %v4818 = vadd.f32 %v4348, %v4734
        %v4819 = vadd.f32 %v4349, %v4737
        %v4820 = vadd.f32 %v4350, %v4742
        %v4821 = vadd.f32 %v4351, %v4745
        %v4822 = vadd.f32 %v4352, %v4750
        %v4823 = vadd.f32 %v4353, %v4753
        %v4824 = vadd.f32 %v4354, %v4758
        %v4825 = vadd.f32 %v4355, %v4761
        %v4826 = vadd.f32 %v4356, %v4766
        %v4827 = vadd.f32 %v4357, %v4769
        %v4828 = vadd.f32 %v4358, %v4774
        %v4829 = vadd.f32 %v4359, %v4777
        %v4830 = vadd.f32 %v4360, %v4782
        %v4831 = vadd.f32 %v4361, %v4785
        %v4832 = vadd.f32 %v4362, %v4790
        %v4833 = vadd.f32 %v4363, %v4793
        %v4834 = vadd.f32 %v4364, %v4798
        %v4835 = vadd.f32 %v4365, %v4801
        %v4836 = vld [vmem:[%s260] sm:$0x1]
        %v4838 = vlaneseq
        %v4839 = vshrl.u32 %v4838, 7
        %v4840 = vsub.s32 0, %v4839
        %v4841 = vrot.slane %v4836, %v4840
        %v4843 = vmul.f32 %v4804, %v4841
        %v4844 = vmul.f32 %v4805, %v4841
        %v4845 = vmul.f32 %v4806, %v4841
        %v4846 = vmul.f32 %v4807, %v4841
        %v4847 = vmul.f32 %v4808, %v4841
        %v4848 = vmul.f32 %v4809, %v4841
        %v4849 = vmul.f32 %v4810, %v4841
        %v4850 = vmul.f32 %v4811, %v4841
        %v4851 = vmul.f32 %v4812, %v4841
        %v4852 = vmul.f32 %v4813, %v4841
        %v4853 = vmul.f32 %v4814, %v4841
        %v4854 = vmul.f32 %v4815, %v4841
        %v4855 = vmul.f32 %v4816, %v4841
        %v4856 = vmul.f32 %v4817, %v4841
        %v4857 = vmul.f32 %v4818, %v4841
        %v4858 = vmul.f32 %v4819, %v4841
        %v4859 = vmul.f32 %v4820, %v4841
        %v4860 = vmul.f32 %v4821, %v4841
        %v4861 = vmul.f32 %v4822, %v4841
        %v4862 = vmul.f32 %v4823, %v4841
        %v4863 = vmul.f32 %v4824, %v4841
        %v4864 = vmul.f32 %v4825, %v4841
        %v4865 = vmul.f32 %v4826, %v4841
        %v4866 = vmul.f32 %v4827, %v4841
        %v4867 = vmul.f32 %v4828, %v4841
        %v4868 = vmul.f32 %v4829, %v4841
        %v4869 = vmul.f32 %v4830, %v4841
        %v4870 = vmul.f32 %v4831, %v4841
        %v4871 = vmul.f32 %v4832, %v4841
        %v4872 = vmul.f32 %v4833, %v4841
        %v4873 = vmul.f32 %v4834, %v4841
        %v4874 = vmul.f32 %v4835, %v4841
        %v4875 = vld [vmem:[%s263] sm:$0x1]
        %v4877 = vlaneseq
        %v4878 = vshrl.u32 %v4877, 7
        %v4879 = vsub.s32 0, %v4878
        %v4880 = vrot.slane %v4875, %v4879
        %v4882 = vadd.f32 %v4843, %v4880
        %v4883 = vadd.f32 %v4844, %v4880
        %v4884 = vadd.f32 %v4845, %v4880
        %v4885 = vadd.f32 %v4846, %v4880
        %v4886 = vadd.f32 %v4847, %v4880
        %v4887 = vadd.f32 %v4848, %v4880
        %v4888 = vadd.f32 %v4849, %v4880
        %v4889 = vadd.f32 %v4850, %v4880
        %v4890 = vadd.f32 %v4851, %v4880
        %v4891 = vadd.f32 %v4852, %v4880
        %v4892 = vadd.f32 %v4853, %v4880
        %v4893 = vadd.f32 %v4854, %v4880
        %v4894 = vadd.f32 %v4855, %v4880
        %v4895 = vadd.f32 %v4856, %v4880
        %v4896 = vadd.f32 %v4857, %v4880
        %v4897 = vadd.f32 %v4858, %v4880
        %v4898 = vadd.f32 %v4859, %v4880
        %v4899 = vadd.f32 %v4860, %v4880
        %v4900 = vadd.f32 %v4861, %v4880
        %v4901 = vadd.f32 %v4862, %v4880
        %v4902 = vadd.f32 %v4863, %v4880
        %v4903 = vadd.f32 %v4864, %v4880
        %v4904 = vadd.f32 %v4865, %v4880
        %v4905 = vadd.f32 %v4866, %v4880
        %v4906 = vadd.f32 %v4867, %v4880
        %v4907 = vadd.f32 %v4868, %v4880
        %v4908 = vadd.f32 %v4869, %v4880
        %v4909 = vadd.f32 %v4870, %v4880
        %v4910 = vadd.f32 %v4871, %v4880
        %v4911 = vadd.f32 %v4872, %v4880
        %v4912 = vadd.f32 %v4873, %v4880
        %v4913 = vadd.f32 %v4874, %v4880
        %v4914 = vmax.f32 %v4882, 0.0
        %v4915 = vmax.f32 %v4883, 0.0
        %v4916 = vmax.f32 %v4884, 0.0
        %v4917 = vmax.f32 %v4885, 0.0
        %v4918 = vmax.f32 %v4886, 0.0
        %v4919 = vmax.f32 %v4887, 0.0
        %v4920 = vmax.f32 %v4888, 0.0
        %v4921 = vmax.f32 %v4889, 0.0
        %v4922 = vmax.f32 %v4890, 0.0
        %v4923 = vmax.f32 %v4891, 0.0
        %v4924 = vmax.f32 %v4892, 0.0
        %v4925 = vmax.f32 %v4893, 0.0
        %v4926 = vmax.f32 %v4894, 0.0
        %v4927 = vmax.f32 %v4895, 0.0
        %v4928 = vmax.f32 %v4896, 0.0
        %v4929 = vmax.f32 %v4897, 0.0
        %v4930 = vmax.f32 %v4898, 0.0
        %v4931 = vmax.f32 %v4899, 0.0
        %v4932 = vmax.f32 %v4900, 0.0
        %v4933 = vmax.f32 %v4901, 0.0
        %v4934 = vmax.f32 %v4902, 0.0
        %v4935 = vmax.f32 %v4903, 0.0
        %v4936 = vmax.f32 %v4904, 0.0
        %v4937 = vmax.f32 %v4905, 0.0
        %v4938 = vmax.f32 %v4906, 0.0
        %v4939 = vmax.f32 %v4907, 0.0
        %v4940 = vmax.f32 %v4908, 0.0
        %v4941 = vmax.f32 %v4909, 0.0
        %v4942 = vmax.f32 %v4910, 0.0
        %v4943 = vmax.f32 %v4911, 0.0
        %v4944 = vmax.f32 %v4912, 0.0
        %v4945 = vmax.f32 %v4913, 0.0
        %4946 = vst [vmem:[%s248] sm:$0xff] %v4914
        %4947 = vst [vmem:[%s248 + $0x8] sm:$0xff] %v4915
        %4948 = vst [vmem:[%s248 + $0x10] sm:$0xff] %v4916
        %4949 = vst [vmem:[%s248 + $0x18] sm:$0xff] %v4917
        %4950 = vst [vmem:[%s248 + $0x20] sm:$0xff] %v4918
        %4951 = vst [vmem:[%s248 + $0x28] sm:$0xff] %v4919
        %4952 = vst [vmem:[%s248 + $0x30] sm:$0xff] %v4920
        %4953 = vst [vmem:[%s248 + $0x38] sm:$0xff] %v4921
        %4954 = vst [vmem:[%s248 + $0x40] sm:$0xff] %v4922
        %4955 = vst [vmem:[%s248 + $0x48] sm:$0xff] %v4923
        %4956 = vst [vmem:[%s248 + $0x50] sm:$0xff] %v4924
        %4957 = vst [vmem:[%s248 + $0x58] sm:$0xff] %v4925
        %4958 = vst [vmem:[%s248 + $0x60] sm:$0xff] %v4926
        %4959 = vst [vmem:[%s248 + $0x68] sm:$0xff] %v4927
        %4960 = vst [vmem:[%s248 + $0x70] sm:$0xff] %v4928
        %4961 = vst [vmem:[%s248 + $0x78] sm:$0xff] %v4929
        %4962 = vst [vmem:[%s248 + $0x80] sm:$0xff] %v4930
        %4963 = vst [vmem:[%s248 + $0x88] sm:$0xff] %v4931
        %4964 = vst [vmem:[%s248 + $0x90] sm:$0xff] %v4932
        %4965 = vst [vmem:[%s248 + $0x98] sm:$0xff] %v4933
        %4966 = vst [vmem:[%s248 + $0xa0] sm:$0xff] %v4934
        %4967 = vst [vmem:[%s248 + $0xa8] sm:$0xff] %v4935
        %4968 = vst [vmem:[%s248 + $0xb0] sm:$0xff] %v4936
        %4969 = vst [vmem:[%s248 + $0xb8] sm:$0xff] %v4937
        %4970 = vst [vmem:[%s248 + $0xc0] sm:$0xff] %v4938
        %4971 = vst [vmem:[%s248 + $0xc8] sm:$0xff] %v4939
        %4972 = vst [vmem:[%s248 + $0xd0] sm:$0xff] %v4940
        %4973 = vst [vmem:[%s248 + $0xd8] sm:$0xff] %v4941
        %4974 = vst [vmem:[%s248 + $0xe0] sm:$0xff] %v4942
        %4975 = vst [vmem:[%s248 + $0xe8] sm:$0xff] %v4943
        %4976 = vst [vmem:[%s248 + $0xf0] sm:$0xff] %v4944
        %4977 = vst [vmem:[%s248 + $0xf8] sm:$0xff] %v4945
        %s4978 = sand.u32 %s153, 1
        %s4979 = scalar_lea.sflag [#allocation3], %s4978
        %s4980 = sand.u32 %s153, 1
        %s4981 = smul.addr %s4980, 256
        %s4982 = scalar_lea.vmem [#allocation2], %s4981
        // Predicated region
        $region37: #{tpu_custom_call.1} parent=35 // pred_check
          %p4983 = pneg %p163
        $region38: #{tpu_custom_call.1} parent=35 // pred_check_branch
          %4985 = sbr.rel (%p4983) target = $region40
        $region39: #{tpu_custom_call.1} parent=35 // pred_region
          %s4986 = sadd.s32 %s23, %s25
          %s4987 = smul.u32 32, %s4986
          %s4989 = ssub.s32 4096, 4096
          %4990 = vsyncadd %s4979, %s4989
          %s4991 = sadd.s32 %s24, %s4987
          %s4992 = smul.addr %s4991, 128
          %s4993 = scalar_lea.hbm %s4, %s4992
          %s4994 = sshll.u32 %s4982, 4
          %s4995 = int_to_ptr.vmem [resolvable:$true] %s4994
          %5000 = dma.vmem_to_hbm [thread:$0]  %s4995, 4096, %s4993, %s4979, 128, 128, 8
        $region40: #{tpu_custom_call.1} parent=35 // pred_fallthru
          _
      $region36: #{tpu_custom_call.1} parent=5 // pred_fallthru
        _
      %p5001 = scmp.le.s32.totalorder 2, %s13
      // Predicated region
      $region41: #{tpu_custom_call.1} parent=5 // pred_check
        %p5002 = pneg %p5001
      $region42: #{tpu_custom_call.1} parent=5 // pred_check_branch
        %5004 = sbr.rel (%p5002) target = $region44
      $region43: #{tpu_custom_call.1} parent=5 // pred_region
        %s5005 = ssub.s32 %s13, 2
        // Predicated region
        $region45: #{tpu_custom_call.1} parent=43 // pred_check
          %p5006 = pneg %p169
        $region46: #{tpu_custom_call.1} parent=43 // pred_check_branch
          %5008 = sbr.rel (%p5006) target = $region48
        $region47: #{tpu_custom_call.1} parent=43 // pred_region
          %s5009 = sand.u32 %s154, 1
          %s5010 = scalar_lea.sflag [#allocation3], %s5009
          %s5011 = sand.u32 %s154, 1
          %s5012 = smul.addr %s5011, 256
          %s5013 = scalar_lea.vmem [#allocation2], %s5012
          %5014 = dma.done %s5010, 4096
        $region48: #{tpu_custom_call.1} parent=43 // pred_fallthru
          _
      $region44: #{tpu_custom_call.1} parent=5 // pred_fallthru
        _
    $region6: #{tpu_custom_call.1} parent=1 // loop_footer
      %s17 = sadd.s32 1, %s13
    $region7: #{tpu_custom_call.1} parent=1 // loop_footer_branch
      %12 = sbr.rel target = $region3
    $region8: #{tpu_custom_call.1} parent=1 // loop_exit
      _
    %5015 = vsyncpa [#allocation3], 1
    %s5016 = scalar_lea.sflag [#allocation3], 1
    %5017 = vsyncpa %s5016, 1

</llo_original>
